<compile_context>
chip_gen: v5e
topology: v5e:2x2
jax: 0.10.0
libtpu: 0.0.40
codegen_flags: <defaults>
</compile_context>

<pallas_src>
from functools import partial

import jax
import jax.numpy as jnp
from jax.experimental import pallas as pl
from jax.experimental.pallas import tpu as pltpu

# Dims fixed by Gen.__init__
C_FEAT = 1024                 # densenet121 feature channels
IN_DIM = 2 * C_FEAT           # 2048  (decoder input)
OUT_DIM = 32 * 16 * 3         # 1536  (decoder output)
POOL = 5                      # AvgPool2d(5), stride 5


def gen_decoder_kernel(x_ref, w_ref, s_ref, b_ref, o_ref):
    """x: (B,2048) bf16; w: (2048,TN) int8; s,b: (1,TN) f32; o: (B,TN) f32."""
    # int8 values (|q| <= 127) are exactly representable in bf16, so the cast is
    # lossless; the matmul runs bf16 x bf16 on the MXU with f32 accumulation.
    w = w_ref[...].astype(jnp.bfloat16)
    y = jnp.dot(x_ref[...], w, preferred_element_type=jnp.float32)
    # Fold the per-column dequant scale into the bias + tanh epilogue.
    o_ref[...] = jnp.tanh(y * s_ref[...] + b_ref[...])


def prepare_decoder_params(weight, bias):
    """One-time param prep (do NOT redo per call): transpose + per-output-column
    symmetric int8 quantization of the decoder weight."""
    w_t = jnp.asarray(weight, jnp.float32).T                          # (2048, 1536)
    absmax = jnp.max(jnp.abs(w_t), axis=0)                            # (1536,)
    scale = jnp.maximum(absmax, 1e-12) / 127.0
    w_q = jnp.clip(jnp.round(w_t / scale[None, :]), -127, 127).astype(jnp.int8)
    s2d = scale.reshape(1, OUT_DIM).astype(jnp.float32)               # (1, 1536)
    b2d = jnp.asarray(bias, jnp.float32).reshape(1, OUT_DIM)          # (1, 1536)
    return w_q, s2d, b2d


_SINGLE_TC_KINDS = ("v5e", "v5 lite", "v5lite", "v6e", "v6 lite", "v6lite")


def pick_tn():
    """Weight-column tile width: full 1536 on single-TC chips (one grid step),
    768 elsewhere so 2-TC chips (v7x / megacore) get one tile per TensorCore."""
    try:
        kind = jax.devices()[0].device_kind.lower()
    except Exception:
        return 768
    if any(k in kind for k in _SINGLE_TC_KINDS):
        return 1536
    return 768


@partial(jax.jit, static_argnames=("tn",))
def gen_forward(features_nchw, w_q, s2d, b2d, *, tn=768):
    """features_nchw: (B, 1024, 5, 10) f32 NCHW (PyTorch layout);
    w_q: (2048, 1536) int8 (pre-transposed, quantized); s2d/b2d: (1, 1536) f32."""
    B, C, H, W = features_nchw.shape
    assert C == C_FEAT and H == POOL and W == 2 * POOL
    assert OUT_DIM % tn == 0 and tn % 128 == 0

    # AvgPool2d(5): (B, 1024, 5, 10) -> (B, 1024, 1, 2).  Flattening the NCHW
    # pooled map gives index k = 2*c + w, identical to features.view(B, 2048),
    # so no weight-row permutation is needed.
    pooled = features_nchw.reshape(B, C, H // POOL, POOL, W // POOL, POOL).mean(axis=(3, 5))
    x = pooled.reshape(B, IN_DIM).astype(jnp.bfloat16)                # (B, 2048) bf16

    cost = pl.CostEstimate(
        flops=2 * B * IN_DIM * OUT_DIM,
        bytes_accessed=(IN_DIM * OUT_DIM            # int8 weight (~3 MiB, dominant)
                        + B * IN_DIM * 2            # bf16 activations
                        + 2 * OUT_DIM * 4           # scale + bias
                        + B * OUT_DIM * 4),         # f32 output
        transcendentals=B * OUT_DIM,
    )

    out = pl.pallas_call(
        gen_decoder_kernel,
        out_shape=jax.ShapeDtypeStruct((B, OUT_DIM), jnp.float32),
        grid_spec=pltpu.PrefetchScalarGridSpec(
            num_scalar_prefetch=0,
            grid=(OUT_DIM // tn,),                                    # 1 or 2 weight tiles
            in_specs=[
                pl.BlockSpec((B, IN_DIM), lambda j: (0, 0)),          # pooled features (8 KB)
                pl.BlockSpec((IN_DIM, tn), lambda j: (0, j)),         # int8 weight column tile
                pl.BlockSpec((1, tn), lambda j: (0, j)),              # dequant scale tile
                pl.BlockSpec((1, tn), lambda j: (0, j)),              # bias tile
            ],
            out_specs=pl.BlockSpec((B, tn), lambda j: (0, j)),        # lane-dense f32 output
        ),
        compiler_params=pltpu.CompilerParams(
            dimension_semantics=("parallel",),
            # Headroom for the tn=1536 single-block variant (2x3 MiB int8 weight
            # buffers + ~6 MiB bf16 widened tile); well under physical VMEM on
            # every generation (v7x: 64 MiB).
            vmem_limit_bytes=32 * 1024 * 1024,
        ),
        cost_estimate=cost,
    )(x, w_q, s2d, b2d)

    return out.reshape(B, 3, 16, 32)


if __name__ == "__main__":
    key = jax.random.PRNGKey(0)
    k_feat, k_w, k_b = jax.random.split(key, 3)

    B = 2
    features = jax.random.normal(k_feat, (B, C_FEAT, POOL, 2 * POOL), jnp.float32)
    # Deterministic decoder parameters (LinearBlock(2048, 1536, activation='tanh')).
    weight = jax.random.normal(k_w, (OUT_DIM, IN_DIM), jnp.float32) * 0.02
    bias = jax.random.normal(k_b, (OUT_DIM,), jnp.float32) * 0.01

    # One-time param prep (cached across calls in real use).
    w_q, s2d, b2d = prepare_decoder_params(weight, bias)
    tn = pick_tn()

    out = jax.block_until_ready(gen_forward(features, w_q, s2d, b2d, tn=tn))
    assert out.shape == (B, 3, 16, 32)

    # Plain-JAX f32 reference mirroring the PyTorch forward (pool -> flatten -> linear -> tanh).
    pooled_ref = features.reshape(B, C_FEAT, 1, POOL, 2, POOL).mean(axis=(3, 5))  # (B, C, 1, 2)
    x_ref = pooled_ref.reshape(B, IN_DIM)
    ref_fp32 = jnp.tanh(x_ref @ weight.T + bias).reshape(B, 3, 16, 32)
    assert jnp.allclose(out, ref_fp32, atol=2e-2, rtol=2e-2), (
        "max abs err vs f32 ref: %g" % float(jnp.max(jnp.abs(out - ref_fp32))))

    # Quantization-aware reference (isolates kernel error from int8 quant error).
    w_deq = w_q.astype(jnp.float32) * s2d                              # (2048, 1536)
    x_bf = x_ref.astype(jnp.bfloat16).astype(jnp.float32)
    ref_q = jnp.tanh(x_bf @ w_deq + b2d).reshape(B, 3, 16, 32)
    assert jnp.allclose(out, ref_q, atol=1e-2, rtol=1e-2), (
        "max abs err vs quantized ref: %g" % float(jnp.max(jnp.abs(out - ref_q))))

    print("KERNEL_OK")
</pallas_src>

<mosaic_0001>
module attributes {stable_mosaic.version = 11 : i64} {
  func.func @gen_decoder_kernel(%arg0: i32, %arg1: memref<2x2048xbf16, #tpu.memory_space<vmem>>, %arg2: memref<2048x768xi8, #tpu.memory_space<vmem>>, %arg3: memref<1x768xf32, #tpu.memory_space<vmem>>, %arg4: memref<1x768xf32, #tpu.memory_space<vmem>>, %arg5: memref<2x768xf32, #tpu.memory_space<vmem>>) attributes {dimension_semantics = [#tpu.dimension_semantics<parallel>], iteration_bounds = array<i64: 2>, scalar_prefetch = 0 : i64, scratch_operands = 0 : i64, tpu.core_type = #tpu.core_type<tc>, window_params = [{pipeline_mode = #tpu.pipeline_mode<synchronous>, transform_indices = @transform_0, window_bounds = array<i64: 2, 2048>}, {transform_indices = @transform_1, window_bounds = array<i64: 2048, 768>}, {transform_indices = @transform_2, window_bounds = array<i64: 1, 768>}, {transform_indices = @transform_3, window_bounds = array<i64: 1, 768>}, {transform_indices = @transform_4, window_bounds = array<i64: 2, 768>}]} {
    %c0 = arith.constant 0 : index
    %c0_0 = arith.constant 0 : index
    %0 = vector.load %arg2[%c0, %c0_0] : memref<2048x768xi8, #tpu.memory_space<vmem>>, vector<2048x768xi8>
    %1 = arith.sitofp %0 : vector<2048x768xi8> to vector<2048x768xbf16>
    %c0_1 = arith.constant 0 : index
    %c0_2 = arith.constant 0 : index
    %2 = vector.load %arg1[%c0_1, %c0_2] : memref<2x2048xbf16, #tpu.memory_space<vmem>>, vector<2x2048xbf16>
    %cst = arith.constant dense<0.000000e+00> : vector<2x768xf32>
    %3 = tpu.matmul %2, %1, %cst {dimension_numbers = #tpu.dot_dimension_numbers<[1], [0], [0], [1], [0, 0, 1, 1], [], []>} : vector<2x2048xbf16>, vector<2048x768xbf16>, vector<2x768xf32> -> vector<2x768xf32>
    %c0_3 = arith.constant 0 : index
    %c0_4 = arith.constant 0 : index
    %4 = vector.load %arg3[%c0_3, %c0_4] : memref<1x768xf32, #tpu.memory_space<vmem>>, vector<1x768xf32>
    %5 = vector.broadcast %4 : vector<1x768xf32> to vector<2x768xf32>
    %6 = arith.mulf %3, %5 : vector<2x768xf32>
    %c0_5 = arith.constant 0 : index
    %c0_6 = arith.constant 0 : index
    %7 = vector.load %arg4[%c0_5, %c0_6] : memref<1x768xf32, #tpu.memory_space<vmem>>, vector<1x768xf32>
    %8 = vector.broadcast %7 : vector<1x768xf32> to vector<2x768xf32>
    %9 = arith.addf %6, %8 : vector<2x768xf32>
    %10 = math.tanh %9 : vector<2x768xf32>
    %c0_7 = arith.constant 0 : index
    %c0_8 = arith.constant 0 : index
    %11 = vector.load %arg5[%c0_7, %c0_8] : memref<2x768xf32, #tpu.memory_space<vmem>>, vector<2x768xf32>
    tpu.vector_store %arg5[%c0_7, %c0_8], %10 {strides = array<i32>} : memref<2x768xf32, #tpu.memory_space<vmem>>, vector<2x768xf32>,
    return
  }
  func.func @transform_0(%arg0: i32) -> (i32, i32) {
    %c0_i32 = arith.constant 0 : i32
    %c0_i32_0 = arith.constant 0 : i32
    %c0_i32_1 = arith.constant 0 : i32
    return %c0_i32, %c0_i32_0 : i32, i32
  }
  func.func @transform_1(%arg0: i32) -> (i32, i32) {
    %c0_i32 = arith.constant 0 : i32
    %c0_i32_0 = arith.constant 0 : i32
    return %c0_i32, %arg0 : i32, i32
  }
  func.func @transform_2(%arg0: i32) -> (i32, i32) {
    %c0_i32 = arith.constant 0 : i32
    %c0_i32_0 = arith.constant 0 : i32
    return %c0_i32, %arg0 : i32, i32
  }
  func.func @transform_3(%arg0: i32) -> (i32, i32) {
    %c0_i32 = arith.constant 0 : i32
    %c0_i32_0 = arith.constant 0 : i32
    return %c0_i32, %arg0 : i32, i32
  }
  func.func @transform_4(%arg0: i32) -> (i32, i32) {
    %c0_i32 = arith.constant 0 : i32
    %c0_i32_0 = arith.constant 0 : i32
    return %c0_i32, %arg0 : i32, i32
  }
}

</mosaic_0001>

<llo_original>
// kernel: gen_forward.1
$region0: #{gen_forward.1}
  #allocation0 [shape = 'u32[]', space=smem, size = 0x4, offset = 0x4, fixed_abs, tag = 'smem constant byte address 0x4 - core index']
  #allocation1 [shape = 'u32[72,128]{1,0:T(1,128)}', space=vmem, size = 0x9000, scoped, tag = 'internal scratch']
  %s0 = inlined_call_operand.vmem [shape: bf16[2,2048], index: 0, kind: input, shape index: {}]
  %s1 = inlined_call_operand.hbm [shape: s8[2048,1536], index: 1, kind: input, shape index: {}]
  %s2 = inlined_call_operand.hbm [shape: f32[1,1536], index: 2, kind: input, shape index: {}]
  %s3 = inlined_call_operand.hbm [shape: f32[1,1536], index: 3, kind: input, shape index: {}]
  %s4 = inlined_call_operand.vmem [shape: f32[2,1536], index: 4, kind: output, shape index: {}]
  %s5 = sld [smem:[#allocation0]]
  $region61: #{gen_forward.1} parent=0
    _
  %s7 = ssub.s32 1, %s5
  %s8 = scalar_select 0, %s7, %s5
  $region1: #{gen_forward.1} parent=0
    #allocation2 [shape = 'u8[3145728]{0}', space=vmem, size = 0x300000, scoped, tag = 'input window, operand 1']
    #allocation3 [shape = 's32[2]{0}', space=sflag, size = 0x8, scoped, tag = 'scoped memory for gen_forward.1']
    #allocation4 [shape = 'u8[6144]{0}', space=vmem, size = 0x1800, scoped, tag = 'input window, operand 2']
    #allocation5 [shape = 's32[2]{0}', space=sflag, size = 0x8, scoped, tag = 'scoped memory for gen_forward.1']
    #allocation6 [shape = 'u8[6144]{0}', space=vmem, size = 0x1800, scoped, tag = 'input window, operand 3']
    %9 = vsyncpa [#allocation3], 0
    %s10 = scalar_lea.sflag [#allocation3], 1
    %11 = vsyncpa %s10, 0
    %12 = vsyncpa [#allocation5], 0
    %s13 = scalar_lea.sflag [#allocation5], 1
    %14 = vsyncpa %s13, 0
    loop: start=0, step=1, limit=4
    $region2: #{gen_forward.1} parent=1 // loop_pre_header
      _
    $region3: #{gen_forward.1} parent=1 // loop_header
      %s16 = sphi 0, %s20
      %p17 = scmp.ge.s32.totalorder %s16, 4
      %s24 = sphi 0, %s24
      %s26 = sphi 0, %s24
      %s27 = sphi 0, %s26
      %s41 = sphi 0, %s27
      %s47 = sphi 0, %s49
      %s50 = sphi 0, %s47
      %s51 = sphi 0, %s50
      %s67 = sphi 0, %s51
      %s73 = sphi 0, %s75
      %s76 = sphi 0, %s73
      %s77 = sphi 0, %s76
      %s93 = sphi 0, %s77
      %s99 = sphi 0, %s101
      %s102 = sphi 0, %s99
      %s103 = sphi 0, %s102
      %s119 = sphi 0, %s103
      %s125 = sphi 0, %s127
      %s128 = sphi 0, %s125
      %s129 = sphi 0, %s128
      %s145 = sphi 0, %s129
    $region4: #{gen_forward.1} parent=1 // loop_header_branch
      %19 = sbr.rel (%p17) target = $region8
    $region5: #{gen_forward.1} parent=1 // loop_body
      %s21 = ssub.s32 %s16, 1
      %s22 = ssub.s32 %s16, 2
      %s23 = sadd.s32 %s16, 1
      %s25 = sadd.s32 %s24, 1
      %p28 = scmp.eq.s32.totalorder %s16, 1
      %p29 = scmp.ne.s32.totalorder %s24, %s26
      %p30 = scmp.eq.s32.totalorder %s16, 0
      %p31 = por %p29, %p30
      %p32 = scmp.ne.s32.totalorder %s24, %s26
      %p33 = scmp.eq.s32.totalorder %s21, 1
      %p34 = por %p32, %p33
      %p35 = scmp.ne.s32.totalorder %s26, %s27
      %p36 = scmp.eq.s32.totalorder %s21, 0
      %p37 = por %p35, %p36
      %p38 = scmp.ne.s32.totalorder %s26, %s27
      %p39 = scmp.eq.s32.totalorder %s22, 1
      %p40 = por %p38, %p39
      %p42 = scmp.ne.s32.totalorder %s27, %s41
      %p43 = scmp.eq.s32.totalorder %s22, 0
      %p44 = por %p42, %p43
      %s45 = ssub.s32 %s16, %s23
      %p46 = scmp.eq.s32.totalorder %s45, 0
      %s48 = sadd.s32 %s47, 1
      %s49 = scalar_select %p46, %s47, %s48
      %p52 = pneg %p46
      %p53 = scmp.eq.s32.totalorder %s16, 1
      %p54 = por %p52, %p53
      %p55 = scmp.ne.s32.totalorder %s47, %s50
      %p56 = scmp.eq.s32.totalorder %s16, 0
      %p57 = por %p55, %p56
      %p58 = scmp.ne.s32.totalorder %s47, %s50
      %p59 = scmp.eq.s32.totalorder %s21, 1
      %p60 = por %p58, %p59
      %p61 = scmp.ne.s32.totalorder %s50, %s51
      %p62 = scmp.eq.s32.totalorder %s21, 0
      %p63 = por %p61, %p62
      %p64 = scmp.ne.s32.totalorder %s50, %s51
      %p65 = scmp.eq.s32.totalorder %s22, 1
      %p66 = por %p64, %p65
      %p68 = scmp.ne.s32.totalorder %s51, %s67
      %p69 = scmp.eq.s32.totalorder %s22, 0
      %p70 = por %p68, %p69
      %s71 = ssub.s32 %s16, %s23
      %p72 = scmp.eq.s32.totalorder %s71, 0
      %s74 = sadd.s32 %s73, 1
      %s75 = scalar_select %p72, %s73, %s74
      %p78 = pneg %p72
      %p79 = scmp.eq.s32.totalorder %s16, 1
      %p80 = por %p78, %p79
      %p81 = scmp.ne.s32.totalorder %s73, %s76
      %p82 = scmp.eq.s32.totalorder %s16, 0
      %p83 = por %p81, %p82
      %p84 = scmp.ne.s32.totalorder %s73, %s76
      %p85 = scmp.eq.s32.totalorder %s21, 1
      %p86 = por %p84, %p85
      %p87 = scmp.ne.s32.totalorder %s76, %s77
      %p88 = scmp.eq.s32.totalorder %s21, 0
      %p89 = por %p87, %p88
      %p90 = scmp.ne.s32.totalorder %s76, %s77
      %p91 = scmp.eq.s32.totalorder %s22, 1
      %p92 = por %p90, %p91
      %p94 = scmp.ne.s32.totalorder %s77, %s93
      %p95 = scmp.eq.s32.totalorder %s22, 0
      %p96 = por %p94, %p95
      %s97 = ssub.s32 %s16, %s23
      %p98 = scmp.eq.s32.totalorder %s97, 0
      %s100 = sadd.s32 %s99, 1
      %s101 = scalar_select %p98, %s99, %s100
      %p104 = pneg %p98
      %p105 = scmp.eq.s32.totalorder %s16, 1
      %p106 = por %p104, %p105
      %p107 = scmp.ne.s32.totalorder %s99, %s102
      %p108 = scmp.eq.s32.totalorder %s16, 0
      %p109 = por %p107, %p108
      %p110 = scmp.ne.s32.totalorder %s99, %s102
      %p111 = scmp.eq.s32.totalorder %s21, 1
      %p112 = por %p110, %p111
      %p113 = scmp.ne.s32.totalorder %s102, %s103
      %p114 = scmp.eq.s32.totalorder %s21, 0
      %p115 = por %p113, %p114
      %p116 = scmp.ne.s32.totalorder %s102, %s103
      %p117 = scmp.eq.s32.totalorder %s22, 1
      %p118 = por %p116, %p117
      %p120 = scmp.ne.s32.totalorder %s103, %s119
      %p121 = scmp.eq.s32.totalorder %s22, 0
      %p122 = por %p120, %p121
      %s123 = ssub.s32 %s16, %s23
      %p124 = scmp.eq.s32.totalorder %s123, 0
      %s126 = sadd.s32 %s125, 1
      %s127 = scalar_select %p124, %s125, %s126
      %p130 = pneg %p124
      %p131 = scmp.eq.s32.totalorder %s16, 1
      %p132 = por %p130, %p131
      %p133 = scmp.ne.s32.totalorder %s125, %s128
      %p134 = scmp.eq.s32.totalorder %s16, 0
      %p135 = por %p133, %p134
      %p136 = scmp.ne.s32.totalorder %s125, %s128
      %p137 = scmp.eq.s32.totalorder %s21, 1
      %p138 = por %p136, %p137
      %p139 = scmp.ne.s32.totalorder %s128, %s129
      %p140 = scmp.eq.s32.totalorder %s21, 0
      %p141 = por %p139, %p140
      %p142 = scmp.ne.s32.totalorder %s128, %s129
      %p143 = scmp.eq.s32.totalorder %s22, 1
      %p144 = por %p142, %p143
      %p146 = scmp.ne.s32.totalorder %s129, %s145
      %p147 = scmp.eq.s32.totalorder %s22, 0
      %p148 = por %p146, %p147
      %p149 = scmp.le.s32.totalorder 1, %s16
      %p150 = scmp.lt.s32.totalorder %s16, 3
      %p151 = pnand %p149, %p150
      %p152 = pneg %p151
      // Predicated region
      $region9: #{gen_forward.1} parent=5 // pred_check
        _
      $region10: #{gen_forward.1} parent=5 // pred_check_branch
        %154 = sbr.rel (%p151) target = $region12
      $region11: #{gen_forward.1} parent=5 // pred_region
        %s155 = ssub.s32 %s16, 1
        // Predicated region
        $region13: #{gen_forward.1} parent=11 // pred_check
          %p156 = pneg %p37
        $region14: #{gen_forward.1} parent=11 // pred_check_branch
          %158 = sbr.rel (%p156) target = $region16
        $region15: #{gen_forward.1} parent=11 // pred_region
          _
        $region16: #{gen_forward.1} parent=11 // pred_fallthru
          _
      $region12: #{gen_forward.1} parent=5 // pred_fallthru
        _
      %p159 = scmp.lt.s32.totalorder %s16, 2
      // Predicated region
      $region17: #{gen_forward.1} parent=5 // pred_check
        %p160 = pneg %p159
      $region18: #{gen_forward.1} parent=5 // pred_check_branch
        %162 = sbr.rel (%p160) target = $region20
      $region19: #{gen_forward.1} parent=5 // pred_region
        // Predicated region
        $region21: #{gen_forward.1} parent=19 // pred_check
          %p163 = pneg %p57
        $region22: #{gen_forward.1} parent=19 // pred_check_branch
          %165 = sbr.rel (%p163) target = $region24
        $region23: #{gen_forward.1} parent=19 // pred_region
          %s166 = sand.u32 %s47, 1
          %s167 = scalar_lea.sflag [#allocation3], %s166
          %s168 = sand.u32 %s47, 1
          %s169 = smul.addr %s168, 3072
          %s170 = scalar_lea.vmem [#allocation2], %s169
          %s171 = smul.u32 6, %s16
          %173 = vsyncadd %s167, 0
          %s174 = smul.addr %s171, 8
          %s175 = scalar_lea.hbm %s1, %s174
          %s176 = sshll.u32 %s175, 4
          %s177 = int_to_ptr.hbm [resolvable:$true] %s176
          %s178 = sshll.u32 %s170, 4
          %s179 = int_to_ptr.vmem [resolvable:$true] %s178
          %184 = dma.hbm_to_vmem [thread:$0]  %s177, 49152, %s179, %s167, 1536, 768, 48
        $region24: #{gen_forward.1} parent=19 // pred_fallthru
          _
        // Predicated region
        $region25: #{gen_forward.1} parent=19 // pred_check
          %p185 = pneg %p83
        $region26: #{gen_forward.1} parent=19 // pred_check_branch
          %187 = sbr.rel (%p185) target = $region28
        $region27: #{gen_forward.1} parent=19 // pred_region
          %s188 = sand.u32 %s16, 1
          %s189 = scalar_lea.sflag [#allocation5], %s188
          %s190 = sand.u32 %s73, 1
          %s191 = smul.addr %s190, 6
          %s192 = scalar_lea.vmem [#allocation4], %s191
          %s193 = smul.u32 6, %s16
          %195 = vsyncadd %s189, 0
          %s196 = scalar_lea.hbm %s2, %s193
          %s198 = sshll.u32 %s196, 4
          %s199 = int_to_ptr.hbm [resolvable:$true] %s198
          %s200 = sshll.u32 %s192, 4
          %s201 = int_to_ptr.vmem [resolvable:$true] %s200
          %203 = dma.hbm_to_vmem [thread:$0]  %s199, 96, %s201, %s189
        $region28: #{gen_forward.1} parent=19 // pred_fallthru
          _
        // Predicated region
        $region29: #{gen_forward.1} parent=19 // pred_check
          %p204 = pneg %p109
        $region30: #{gen_forward.1} parent=19 // pred_check_branch
          %206 = sbr.rel (%p204) target = $region32
        $region31: #{gen_forward.1} parent=19 // pred_region
          %s207 = sand.u32 %s16, 1
          %s208 = scalar_lea.sflag [#allocation5], %s207
          %s209 = sand.u32 %s99, 1
          %s210 = smul.addr %s209, 6
          %s211 = scalar_lea.vmem [#allocation6], %s210
          %s212 = smul.u32 6, %s16
          %214 = vsyncadd %s208, 0
          %s215 = scalar_lea.hbm %s3, %s212
          %s217 = sshll.u32 %s215, 4
          %s218 = int_to_ptr.hbm [resolvable:$true] %s217
          %s219 = sshll.u32 %s211, 4
          %s220 = int_to_ptr.vmem [resolvable:$true] %s219
          %222 = dma.hbm_to_vmem [thread:$0]  %s218, 96, %s220, %s208
        $region32: #{gen_forward.1} parent=19 // pred_fallthru
          _
      $region20: #{gen_forward.1} parent=5 // pred_fallthru
        _
      %p223 = scmp.le.s32.totalorder 1, %s16
      %p224 = scmp.lt.s32.totalorder %s16, 3
      %p225 = pnand %p223, %p224
      %p226 = pneg %p225
      // Predicated region
      $region33: #{gen_forward.1} parent=5 // pred_check
        _
      $region34: #{gen_forward.1} parent=5 // pred_check_branch
        %228 = sbr.rel (%p225) target = $region36
      $region35: #{gen_forward.1} parent=5 // pred_region
        %s229 = ssub.s32 %s16, 1
        %s230 = sand.u32 %s50, 1
        %s231 = scalar_lea.sflag [#allocation3], %s230
        %s232 = sand.u32 %s50, 1
        %s233 = smul.addr %s232, 3072
        %s234 = scalar_lea.vmem [#allocation2], %s233
        // Predicated region
        $region37: #{gen_forward.1} parent=35 // pred_check
          %p235 = pneg %p63
        $region38: #{gen_forward.1} parent=35 // pred_check_branch
          %237 = sbr.rel (%p235) target = $region40
        $region39: #{gen_forward.1} parent=35 // pred_region
          %239 = dma.done %s231, 49152
        $region40: #{gen_forward.1} parent=35 // pred_fallthru
          _
        %s240 = sand.u32 %s21, 1
        %s241 = scalar_lea.sflag [#allocation5], %s240
        %s242 = sand.u32 %s76, 1
        %s243 = smul.addr %s242, 6
        %s244 = scalar_lea.vmem [#allocation4], %s243
        // Predicated region
        $region41: #{gen_forward.1} parent=35 // pred_check
          %p245 = pneg %p89
        $region42: #{gen_forward.1} parent=35 // pred_check_branch
          %247 = sbr.rel (%p245) target = $region44
        $region43: #{gen_forward.1} parent=35 // pred_region
          %249 = dma.done %s241, 96
        $region44: #{gen_forward.1} parent=35 // pred_fallthru
          _
        %s250 = sand.u32 %s21, 1
        %s251 = scalar_lea.sflag [#allocation5], %s250
        %s252 = sand.u32 %s102, 1
        %s253 = smul.addr %s252, 6
        %s254 = scalar_lea.vmem [#allocation6], %s253
        // Predicated region
        $region45: #{gen_forward.1} parent=35 // pred_check
          %p255 = pneg %p115
        $region46: #{gen_forward.1} parent=35 // pred_check_branch
          %257 = sbr.rel (%p255) target = $region48
        $region47: #{gen_forward.1} parent=35 // pred_region
          %259 = dma.done %s251, 96
        $region48: #{gen_forward.1} parent=35 // pred_fallthru
          _
        %p260 = pneg %p37
        %p261 = pneg %p34
        %s262 = sand.u32 %s50, 1
        %s263 = scalar_lea.sflag [#allocation3], %s262
        %s264 = sand.u32 %s50, 1
        %s265 = smul.addr %s264, 3072
        %s266 = scalar_lea.vmem [#allocation2], %s265
        %p267 = pneg %p63
        %p268 = pneg %p60
        %s269 = sand.u32 %s21, 1
        %s270 = scalar_lea.sflag [#allocation5], %s269
        %s271 = sand.u32 %s76, 1
        %s272 = smul.addr %s271, 6
        %s273 = scalar_lea.vmem [#allocation4], %s272
        %p274 = pneg %p89
        %p275 = pneg %p86
        %s276 = sand.u32 %s21, 1
        %s277 = scalar_lea.sflag [#allocation5], %s276
        %s278 = sand.u32 %s102, 1
        %s279 = smul.addr %s278, 6
        %s280 = scalar_lea.vmem [#allocation6], %s279
        %p281 = pneg %p115
        %p282 = pneg %p112
        %p283 = pneg %p141
        %p284 = pneg %p138
        %s285 = smul.u32 6, %s21
        %p286 = scmp.lt.s32.totalorder %s285, 11
        %s287 = scalar_select %p286, %s285, 11
        %s288 = smul.addr %s287, 2
        %s289 = scalar_lea.vmem %s4, %s288
        %s290 = smul.u32 6, %s21
        %s291 = smul.u32 6, %s21
        %s292 = smul.u32 6, %s21
        %s293 = smul.u32 6, %s21
        %p294 = scmp.lt.s32.totalorder %s293, 11
        %s295 = scalar_select %p294, %s293, 11
        %s296 = smul.addr %s295, 2
        %s297 = scalar_lea.vmem %s4, %s296
        %s298 = smul.u32 6, %s21
        %v299 = vld [vmem:[%s234] sm:$0xff]
        %v300 = vld [vmem:[%s234 + $0x8] sm:$0xff]
        %v301 = vld [vmem:[%s234 + $0x10] sm:$0xff]
        %v302 = vld [vmem:[%s234 + $0x18] sm:$0xff]
        %v303 = vld [vmem:[%s234 + $0x20] sm:$0xff]
        %v304 = vld [vmem:[%s234 + $0x28] sm:$0xff]
        %v305 = vld [vmem:[%s234 + $0x30] sm:$0xff]
        %v306 = vld [vmem:[%s234 + $0x38] sm:$0xff]
        %v307 = vld [vmem:[%s234 + $0x40] sm:$0xff]
        %v308 = vld [vmem:[%s234 + $0x48] sm:$0xff]
        %v309 = vld [vmem:[%s234 + $0x50] sm:$0xff]
        %v310 = vld [vmem:[%s234 + $0x58] sm:$0xff]
        %v311 = vld [vmem:[%s234 + $0x60] sm:$0xff]
        %v312 = vld [vmem:[%s234 + $0x68] sm:$0xff]
        %v313 = vld [vmem:[%s234 + $0x70] sm:$0xff]
        %v314 = vld [vmem:[%s234 + $0x78] sm:$0xff]
        %v315 = vld [vmem:[%s234 + $0x80] sm:$0xff]
        %v316 = vld [vmem:[%s234 + $0x88] sm:$0xff]
        %v317 = vld [vmem:[%s234 + $0x90] sm:$0xff]
        %v318 = vld [vmem:[%s234 + $0x98] sm:$0xff]
        %v319 = vld [vmem:[%s234 + $0xa0] sm:$0xff]
        %v320 = vld [vmem:[%s234 + $0xa8] sm:$0xff]
        %v321 = vld [vmem:[%s234 + $0xb0] sm:$0xff]
        %v322 = vld [vmem:[%s234 + $0xb8] sm:$0xff]
        %v323 = vld [vmem:[%s234 + $0xc0] sm:$0xff]
        %v324 = vld [vmem:[%s234 + $0xc8] sm:$0xff]
        %v325 = vld [vmem:[%s234 + $0xd0] sm:$0xff]
        %v326 = vld [vmem:[%s234 + $0xd8] sm:$0xff]
        %v327 = vld [vmem:[%s234 + $0xe0] sm:$0xff]
        %v328 = vld [vmem:[%s234 + $0xe8] sm:$0xff]
        %v329 = vld [vmem:[%s234 + $0xf0] sm:$0xff]
        %v330 = vld [vmem:[%s234 + $0xf8] sm:$0xff]
        %v331 = vld [vmem:[%s234 + $0x100] sm:$0xff]
        %v332 = vld [vmem:[%s234 + $0x108] sm:$0xff]
        %v333 = vld [vmem:[%s234 + $0x110] sm:$0xff]
        %v334 = vld [vmem:[%s234 + $0x118] sm:$0xff]
        %v335 = vld [vmem:[%s234 + $0x120] sm:$0xff]
        %v336 = vld [vmem:[%s234 + $0x128] sm:$0xff]
        %v337 = vld [vmem:[%s234 + $0x130] sm:$0xff]
        %v338 = vld [vmem:[%s234 + $0x138] sm:$0xff]
        %v339 = vld [vmem:[%s234 + $0x140] sm:$0xff]
        %v340 = vld [vmem:[%s234 + $0x148] sm:$0xff]
        %v341 = vld [vmem:[%s234 + $0x150] sm:$0xff]
        %v342 = vld [vmem:[%s234 + $0x158] sm:$0xff]
        %v343 = vld [vmem:[%s234 + $0x160] sm:$0xff]
        %v344 = vld [vmem:[%s234 + $0x168] sm:$0xff]
        %v345 = vld [vmem:[%s234 + $0x170] sm:$0xff]
        %v346 = vld [vmem:[%s234 + $0x178] sm:$0xff]
        %v347 = vld [vmem:[%s234 + $0x180] sm:$0xff]
        %v348 = vld [vmem:[%s234 + $0x188] sm:$0xff]
        %v349 = vld [vmem:[%s234 + $0x190] sm:$0xff]
        %v350 = vld [vmem:[%s234 + $0x198] sm:$0xff]
        %v351 = vld [vmem:[%s234 + $0x1a0] sm:$0xff]
        %v352 = vld [vmem:[%s234 + $0x1a8] sm:$0xff]
        %v353 = vld [vmem:[%s234 + $0x1b0] sm:$0xff]
        %v354 = vld [vmem:[%s234 + $0x1b8] sm:$0xff]
        %v355 = vld [vmem:[%s234 + $0x1c0] sm:$0xff]
        %v356 = vld [vmem:[%s234 + $0x1c8] sm:$0xff]
        %v357 = vld [vmem:[%s234 + $0x1d0] sm:$0xff]
        %v358 = vld [vmem:[%s234 + $0x1d8] sm:$0xff]
        %v359 = vld [vmem:[%s234 + $0x1e0] sm:$0xff]
        %v360 = vld [vmem:[%s234 + $0x1e8] sm:$0xff]
        %v361 = vld [vmem:[%s234 + $0x1f0] sm:$0xff]
        %v362 = vld [vmem:[%s234 + $0x1f8] sm:$0xff]
        %v363 = vld [vmem:[%s234 + $0x200] sm:$0xff]
        %v364 = vld [vmem:[%s234 + $0x208] sm:$0xff]
        %v365 = vld [vmem:[%s234 + $0x210] sm:$0xff]
        %v366 = vld [vmem:[%s234 + $0x218] sm:$0xff]
        %v367 = vld [vmem:[%s234 + $0x220] sm:$0xff]
        %v368 = vld [vmem:[%s234 + $0x228] sm:$0xff]
        %v369 = vld [vmem:[%s234 + $0x230] sm:$0xff]
        %v370 = vld [vmem:[%s234 + $0x238] sm:$0xff]
        %v371 = vld [vmem:[%s234 + $0x240] sm:$0xff]
        %v372 = vld [vmem:[%s234 + $0x248] sm:$0xff]
        %v373 = vld [vmem:[%s234 + $0x250] sm:$0xff]
        %v374 = vld [vmem:[%s234 + $0x258] sm:$0xff]
        %v375 = vld [vmem:[%s234 + $0x260] sm:$0xff]
        %v376 = vld [vmem:[%s234 + $0x268] sm:$0xff]
        %v377 = vld [vmem:[%s234 + $0x270] sm:$0xff]
        %v378 = vld [vmem:[%s234 + $0x278] sm:$0xff]
        %v379 = vld [vmem:[%s234 + $0x280] sm:$0xff]
        %v380 = vld [vmem:[%s234 + $0x288] sm:$0xff]
        %v381 = vld [vmem:[%s234 + $0x290] sm:$0xff]
        %v382 = vld [vmem:[%s234 + $0x298] sm:$0xff]
        %v383 = vld [vmem:[%s234 + $0x2a0] sm:$0xff]
        %v384 = vld [vmem:[%s234 + $0x2a8] sm:$0xff]
        %v385 = vld [vmem:[%s234 + $0x2b0] sm:$0xff]
        %v386 = vld [vmem:[%s234 + $0x2b8] sm:$0xff]
        %v387 = vld [vmem:[%s234 + $0x2c0] sm:$0xff]
        %v388 = vld [vmem:[%s234 + $0x2c8] sm:$0xff]
        %v389 = vld [vmem:[%s234 + $0x2d0] sm:$0xff]
        %v390 = vld [vmem:[%s234 + $0x2d8] sm:$0xff]
        %v391 = vld [vmem:[%s234 + $0x2e0] sm:$0xff]
        %v392 = vld [vmem:[%s234 + $0x2e8] sm:$0xff]
        %v393 = vld [vmem:[%s234 + $0x2f0] sm:$0xff]
        %v394 = vld [vmem:[%s234 + $0x2f8] sm:$0xff]
        %v395 = vld [vmem:[%s234 + $0x300] sm:$0xff]
        %v396 = vld [vmem:[%s234 + $0x308] sm:$0xff]
        %v397 = vld [vmem:[%s234 + $0x310] sm:$0xff]
        %v398 = vld [vmem:[%s234 + $0x318] sm:$0xff]
        %v399 = vld [vmem:[%s234 + $0x320] sm:$0xff]
        %v400 = vld [vmem:[%s234 + $0x328] sm:$0xff]
        %v401 = vld [vmem:[%s234 + $0x330] sm:$0xff]
        %v402 = vld [vmem:[%s234 + $0x338] sm:$0xff]
        %v403 = vld [vmem:[%s234 + $0x340] sm:$0xff]
        %v404 = vld [vmem:[%s234 + $0x348] sm:$0xff]
        %v405 = vld [vmem:[%s234 + $0x350] sm:$0xff]
        %v406 = vld [vmem:[%s234 + $0x358] sm:$0xff]
        %v407 = vld [vmem:[%s234 + $0x360] sm:$0xff]
        %v408 = vld [vmem:[%s234 + $0x368] sm:$0xff]
        %v409 = vld [vmem:[%s234 + $0x370] sm:$0xff]
        %v410 = vld [vmem:[%s234 + $0x378] sm:$0xff]
        %v411 = vld [vmem:[%s234 + $0x380] sm:$0xff]
        %v412 = vld [vmem:[%s234 + $0x388] sm:$0xff]
        %v413 = vld [vmem:[%s234 + $0x390] sm:$0xff]
        %v414 = vld [vmem:[%s234 + $0x398] sm:$0xff]
        %v415 = vld [vmem:[%s234 + $0x3a0] sm:$0xff]
        %v416 = vld [vmem:[%s234 + $0x3a8] sm:$0xff]
        %v417 = vld [vmem:[%s234 + $0x3b0] sm:$0xff]
        %v418 = vld [vmem:[%s234 + $0x3b8] sm:$0xff]
        %v419 = vld [vmem:[%s234 + $0x3c0] sm:$0xff]
        %v420 = vld [vmem:[%s234 + $0x3c8] sm:$0xff]
        %v421 = vld [vmem:[%s234 + $0x3d0] sm:$0xff]
        %v422 = vld [vmem:[%s234 + $0x3d8] sm:$0xff]
        %v423 = vld [vmem:[%s234 + $0x3e0] sm:$0xff]
        %v424 = vld [vmem:[%s234 + $0x3e8] sm:$0xff]
        %v425 = vld [vmem:[%s234 + $0x3f0] sm:$0xff]
        %v426 = vld [vmem:[%s234 + $0x3f8] sm:$0xff]
        %v427 = vld [vmem:[%s234 + $0x400] sm:$0xff]
        %v428 = vld [vmem:[%s234 + $0x408] sm:$0xff]
        %v429 = vld [vmem:[%s234 + $0x410] sm:$0xff]
        %v430 = vld [vmem:[%s234 + $0x418] sm:$0xff]
        %v431 = vld [vmem:[%s234 + $0x420] sm:$0xff]
        %v432 = vld [vmem:[%s234 + $0x428] sm:$0xff]
        %v433 = vld [vmem:[%s234 + $0x430] sm:$0xff]
        %v434 = vld [vmem:[%s234 + $0x438] sm:$0xff]
        %v435 = vld [vmem:[%s234 + $0x440] sm:$0xff]
        %v436 = vld [vmem:[%s234 + $0x448] sm:$0xff]
        %v437 = vld [vmem:[%s234 + $0x450] sm:$0xff]
        %v438 = vld [vmem:[%s234 + $0x458] sm:$0xff]
        %v439 = vld [vmem:[%s234 + $0x460] sm:$0xff]
        %v440 = vld [vmem:[%s234 + $0x468] sm:$0xff]
        %v441 = vld [vmem:[%s234 + $0x470] sm:$0xff]
        %v442 = vld [vmem:[%s234 + $0x478] sm:$0xff]
        %v443 = vld [vmem:[%s234 + $0x480] sm:$0xff]
        %v444 = vld [vmem:[%s234 + $0x488] sm:$0xff]
        %v445 = vld [vmem:[%s234 + $0x490] sm:$0xff]
        %v446 = vld [vmem:[%s234 + $0x498] sm:$0xff]
        %v447 = vld [vmem:[%s234 + $0x4a0] sm:$0xff]
        %v448 = vld [vmem:[%s234 + $0x4a8] sm:$0xff]
        %v449 = vld [vmem:[%s234 + $0x4b0] sm:$0xff]
        %v450 = vld [vmem:[%s234 + $0x4b8] sm:$0xff]
        %v451 = vld [vmem:[%s234 + $0x4c0] sm:$0xff]
        %v452 = vld [vmem:[%s234 + $0x4c8] sm:$0xff]
        %v453 = vld [vmem:[%s234 + $0x4d0] sm:$0xff]
        %v454 = vld [vmem:[%s234 + $0x4d8] sm:$0xff]
        %v455 = vld [vmem:[%s234 + $0x4e0] sm:$0xff]
        %v456 = vld [vmem:[%s234 + $0x4e8] sm:$0xff]
        %v457 = vld [vmem:[%s234 + $0x4f0] sm:$0xff]
        %v458 = vld [vmem:[%s234 + $0x4f8] sm:$0xff]
        %v459 = vld [vmem:[%s234 + $0x500] sm:$0xff]
        %v460 = vld [vmem:[%s234 + $0x508] sm:$0xff]
        %v461 = vld [vmem:[%s234 + $0x510] sm:$0xff]
        %v462 = vld [vmem:[%s234 + $0x518] sm:$0xff]
        %v463 = vld [vmem:[%s234 + $0x520] sm:$0xff]
        %v464 = vld [vmem:[%s234 + $0x528] sm:$0xff]
        %v465 = vld [vmem:[%s234 + $0x530] sm:$0xff]
        %v466 = vld [vmem:[%s234 + $0x538] sm:$0xff]
        %v467 = vld [vmem:[%s234 + $0x540] sm:$0xff]
        %v468 = vld [vmem:[%s234 + $0x548] sm:$0xff]
        %v469 = vld [vmem:[%s234 + $0x550] sm:$0xff]
        %v470 = vld [vmem:[%s234 + $0x558] sm:$0xff]
        %v471 = vld [vmem:[%s234 + $0x560] sm:$0xff]
        %v472 = vld [vmem:[%s234 + $0x568] sm:$0xff]
        %v473 = vld [vmem:[%s234 + $0x570] sm:$0xff]
        %v474 = vld [vmem:[%s234 + $0x578] sm:$0xff]
        %v475 = vld [vmem:[%s234 + $0x580] sm:$0xff]
        %v476 = vld [vmem:[%s234 + $0x588] sm:$0xff]
        %v477 = vld [vmem:[%s234 + $0x590] sm:$0xff]
        %v478 = vld [vmem:[%s234 + $0x598] sm:$0xff]
        %v479 = vld [vmem:[%s234 + $0x5a0] sm:$0xff]
        %v480 = vld [vmem:[%s234 + $0x5a8] sm:$0xff]
        %v481 = vld [vmem:[%s234 + $0x5b0] sm:$0xff]
        %v482 = vld [vmem:[%s234 + $0x5b8] sm:$0xff]
        %v483 = vld [vmem:[%s234 + $0x5c0] sm:$0xff]
        %v484 = vld [vmem:[%s234 + $0x5c8] sm:$0xff]
        %v485 = vld [vmem:[%s234 + $0x5d0] sm:$0xff]
        %v486 = vld [vmem:[%s234 + $0x5d8] sm:$0xff]
        %v487 = vld [vmem:[%s234 + $0x5e0] sm:$0xff]
        %v488 = vld [vmem:[%s234 + $0x5e8] sm:$0xff]
        %v489 = vld [vmem:[%s234 + $0x5f0] sm:$0xff]
        %v490 = vld [vmem:[%s234 + $0x5f8] sm:$0xff]
        %v491 = vld [vmem:[%s234 + $0x600] sm:$0xff]
        %v492 = vld [vmem:[%s234 + $0x608] sm:$0xff]
        %v493 = vld [vmem:[%s234 + $0x610] sm:$0xff]
        %v494 = vld [vmem:[%s234 + $0x618] sm:$0xff]
        %v495 = vld [vmem:[%s234 + $0x620] sm:$0xff]
        %v496 = vld [vmem:[%s234 + $0x628] sm:$0xff]
        %v497 = vld [vmem:[%s234 + $0x630] sm:$0xff]
        %v498 = vld [vmem:[%s234 + $0x638] sm:$0xff]
        %v499 = vld [vmem:[%s234 + $0x640] sm:$0xff]
        %v500 = vld [vmem:[%s234 + $0x648] sm:$0xff]
        %v501 = vld [vmem:[%s234 + $0x650] sm:$0xff]
        %v502 = vld [vmem:[%s234 + $0x658] sm:$0xff]
        %v503 = vld [vmem:[%s234 + $0x660] sm:$0xff]
        %v504 = vld [vmem:[%s234 + $0x668] sm:$0xff]
        %v505 = vld [vmem:[%s234 + $0x670] sm:$0xff]
        %v506 = vld [vmem:[%s234 + $0x678] sm:$0xff]
        %v507 = vld [vmem:[%s234 + $0x680] sm:$0xff]
        %v508 = vld [vmem:[%s234 + $0x688] sm:$0xff]
        %v509 = vld [vmem:[%s234 + $0x690] sm:$0xff]
        %v510 = vld [vmem:[%s234 + $0x698] sm:$0xff]
        %v511 = vld [vmem:[%s234 + $0x6a0] sm:$0xff]
        %v512 = vld [vmem:[%s234 + $0x6a8] sm:$0xff]
        %v513 = vld [vmem:[%s234 + $0x6b0] sm:$0xff]
        %v514 = vld [vmem:[%s234 + $0x6b8] sm:$0xff]
        %v515 = vld [vmem:[%s234 + $0x6c0] sm:$0xff]
        %v516 = vld [vmem:[%s234 + $0x6c8] sm:$0xff]
        %v517 = vld [vmem:[%s234 + $0x6d0] sm:$0xff]
        %v518 = vld [vmem:[%s234 + $0x6d8] sm:$0xff]
        %v519 = vld [vmem:[%s234 + $0x6e0] sm:$0xff]
        %v520 = vld [vmem:[%s234 + $0x6e8] sm:$0xff]
        %v521 = vld [vmem:[%s234 + $0x6f0] sm:$0xff]
        %v522 = vld [vmem:[%s234 + $0x6f8] sm:$0xff]
        %v523 = vld [vmem:[%s234 + $0x700] sm:$0xff]
        %v524 = vld [vmem:[%s234 + $0x708] sm:$0xff]
        %v525 = vld [vmem:[%s234 + $0x710] sm:$0xff]
        %v526 = vld [vmem:[%s234 + $0x718] sm:$0xff]
        %v527 = vld [vmem:[%s234 + $0x720] sm:$0xff]
        %v528 = vld [vmem:[%s234 + $0x728] sm:$0xff]
        %v529 = vld [vmem:[%s234 + $0x730] sm:$0xff]
        %v530 = vld [vmem:[%s234 + $0x738] sm:$0xff]
        %v531 = vld [vmem:[%s234 + $0x740] sm:$0xff]
        %v532 = vld [vmem:[%s234 + $0x748] sm:$0xff]
        %v533 = vld [vmem:[%s234 + $0x750] sm:$0xff]
        %v534 = vld [vmem:[%s234 + $0x758] sm:$0xff]
        %v535 = vld [vmem:[%s234 + $0x760] sm:$0xff]
        %v536 = vld [vmem:[%s234 + $0x768] sm:$0xff]
        %v537 = vld [vmem:[%s234 + $0x770] sm:$0xff]
        %v538 = vld [vmem:[%s234 + $0x778] sm:$0xff]
        %v539 = vld [vmem:[%s234 + $0x780] sm:$0xff]
        %v540 = vld [vmem:[%s234 + $0x788] sm:$0xff]
        %v541 = vld [vmem:[%s234 + $0x790] sm:$0xff]
        %v542 = vld [vmem:[%s234 + $0x798] sm:$0xff]
        %v543 = vld [vmem:[%s234 + $0x7a0] sm:$0xff]
        %v544 = vld [vmem:[%s234 + $0x7a8] sm:$0xff]
        %v545 = vld [vmem:[%s234 + $0x7b0] sm:$0xff]
        %v546 = vld [vmem:[%s234 + $0x7b8] sm:$0xff]
        %v547 = vld [vmem:[%s234 + $0x7c0] sm:$0xff]
        %v548 = vld [vmem:[%s234 + $0x7c8] sm:$0xff]
        %v549 = vld [vmem:[%s234 + $0x7d0] sm:$0xff]
        %v550 = vld [vmem:[%s234 + $0x7d8] sm:$0xff]
        %v551 = vld [vmem:[%s234 + $0x7e0] sm:$0xff]
        %v552 = vld [vmem:[%s234 + $0x7e8] sm:$0xff]
        %v553 = vld [vmem:[%s234 + $0x7f0] sm:$0xff]
        %v554 = vld [vmem:[%s234 + $0x7f8] sm:$0xff]
        %v555 = vld [vmem:[%s234 + $0x800] sm:$0xff]
        %v556 = vld [vmem:[%s234 + $0x808] sm:$0xff]
        %v557 = vld [vmem:[%s234 + $0x810] sm:$0xff]
        %v558 = vld [vmem:[%s234 + $0x818] sm:$0xff]
        %v559 = vld [vmem:[%s234 + $0x820] sm:$0xff]
        %v560 = vld [vmem:[%s234 + $0x828] sm:$0xff]
        %v561 = vld [vmem:[%s234 + $0x830] sm:$0xff]
        %v562 = vld [vmem:[%s234 + $0x838] sm:$0xff]
        %v563 = vld [vmem:[%s234 + $0x840] sm:$0xff]
        %v564 = vld [vmem:[%s234 + $0x848] sm:$0xff]
        %v565 = vld [vmem:[%s234 + $0x850] sm:$0xff]
        %v566 = vld [vmem:[%s234 + $0x858] sm:$0xff]
        %v567 = vld [vmem:[%s234 + $0x860] sm:$0xff]
        %v568 = vld [vmem:[%s234 + $0x868] sm:$0xff]
        %v569 = vld [vmem:[%s234 + $0x870] sm:$0xff]
        %v570 = vld [vmem:[%s234 + $0x878] sm:$0xff]
        %v571 = vld [vmem:[%s234 + $0x880] sm:$0xff]
        %v572 = vld [vmem:[%s234 + $0x888] sm:$0xff]
        %v573 = vld [vmem:[%s234 + $0x890] sm:$0xff]
        %v574 = vld [vmem:[%s234 + $0x898] sm:$0xff]
        %v575 = vld [vmem:[%s234 + $0x8a0] sm:$0xff]
        %v576 = vld [vmem:[%s234 + $0x8a8] sm:$0xff]
        %v577 = vld [vmem:[%s234 + $0x8b0] sm:$0xff]
        %v578 = vld [vmem:[%s234 + $0x8b8] sm:$0xff]
        %v579 = vld [vmem:[%s234 + $0x8c0] sm:$0xff]
        %v580 = vld [vmem:[%s234 + $0x8c8] sm:$0xff]
        %v581 = vld [vmem:[%s234 + $0x8d0] sm:$0xff]
        %v582 = vld [vmem:[%s234 + $0x8d8] sm:$0xff]
        %v583 = vld [vmem:[%s234 + $0x8e0] sm:$0xff]
        %v584 = vld [vmem:[%s234 + $0x8e8] sm:$0xff]
        %v585 = vld [vmem:[%s234 + $0x8f0] sm:$0xff]
        %v586 = vld [vmem:[%s234 + $0x8f8] sm:$0xff]
        %v587 = vld [vmem:[%s234 + $0x900] sm:$0xff]
        %v588 = vld [vmem:[%s234 + $0x908] sm:$0xff]
        %v589 = vld [vmem:[%s234 + $0x910] sm:$0xff]
        %v590 = vld [vmem:[%s234 + $0x918] sm:$0xff]
        %v591 = vld [vmem:[%s234 + $0x920] sm:$0xff]
        %v592 = vld [vmem:[%s234 + $0x928] sm:$0xff]
        %v593 = vld [vmem:[%s234 + $0x930] sm:$0xff]
        %v594 = vld [vmem:[%s234 + $0x938] sm:$0xff]
        %v595 = vld [vmem:[%s234 + $0x940] sm:$0xff]
        %v596 = vld [vmem:[%s234 + $0x948] sm:$0xff]
        %v597 = vld [vmem:[%s234 + $0x950] sm:$0xff]
        %v598 = vld [vmem:[%s234 + $0x958] sm:$0xff]
        %v599 = vld [vmem:[%s234 + $0x960] sm:$0xff]
        %v600 = vld [vmem:[%s234 + $0x968] sm:$0xff]
        %v601 = vld [vmem:[%s234 + $0x970] sm:$0xff]
        %v602 = vld [vmem:[%s234 + $0x978] sm:$0xff]
        %v603 = vld [vmem:[%s234 + $0x980] sm:$0xff]
        %v604 = vld [vmem:[%s234 + $0x988] sm:$0xff]
        %v605 = vld [vmem:[%s234 + $0x990] sm:$0xff]
        %v606 = vld [vmem:[%s234 + $0x998] sm:$0xff]
        %v607 = vld [vmem:[%s234 + $0x9a0] sm:$0xff]
        %v608 = vld [vmem:[%s234 + $0x9a8] sm:$0xff]
        %v609 = vld [vmem:[%s234 + $0x9b0] sm:$0xff]
        %v610 = vld [vmem:[%s234 + $0x9b8] sm:$0xff]
        %v611 = vld [vmem:[%s234 + $0x9c0] sm:$0xff]
        %v612 = vld [vmem:[%s234 + $0x9c8] sm:$0xff]
        %v613 = vld [vmem:[%s234 + $0x9d0] sm:$0xff]
        %v614 = vld [vmem:[%s234 + $0x9d8] sm:$0xff]
        %v615 = vld [vmem:[%s234 + $0x9e0] sm:$0xff]
        %v616 = vld [vmem:[%s234 + $0x9e8] sm:$0xff]
        %v617 = vld [vmem:[%s234 + $0x9f0] sm:$0xff]
        %v618 = vld [vmem:[%s234 + $0x9f8] sm:$0xff]
        %v619 = vld [vmem:[%s234 + $0xa00] sm:$0xff]
        %v620 = vld [vmem:[%s234 + $0xa08] sm:$0xff]
        %v621 = vld [vmem:[%s234 + $0xa10] sm:$0xff]
        %v622 = vld [vmem:[%s234 + $0xa18] sm:$0xff]
        %v623 = vld [vmem:[%s234 + $0xa20] sm:$0xff]
        %v624 = vld [vmem:[%s234 + $0xa28] sm:$0xff]
        %v625 = vld [vmem:[%s234 + $0xa30] sm:$0xff]
        %v626 = vld [vmem:[%s234 + $0xa38] sm:$0xff]
        %v627 = vld [vmem:[%s234 + $0xa40] sm:$0xff]
        %v628 = vld [vmem:[%s234 + $0xa48] sm:$0xff]
        %v629 = vld [vmem:[%s234 + $0xa50] sm:$0xff]
        %v630 = vld [vmem:[%s234 + $0xa58] sm:$0xff]
        %v631 = vld [vmem:[%s234 + $0xa60] sm:$0xff]
        %v632 = vld [vmem:[%s234 + $0xa68] sm:$0xff]
        %v633 = vld [vmem:[%s234 + $0xa70] sm:$0xff]
        %v634 = vld [vmem:[%s234 + $0xa78] sm:$0xff]
        %v635 = vld [vmem:[%s234 + $0xa80] sm:$0xff]
        %v636 = vld [vmem:[%s234 + $0xa88] sm:$0xff]
        %v637 = vld [vmem:[%s234 + $0xa90] sm:$0xff]
        %v638 = vld [vmem:[%s234 + $0xa98] sm:$0xff]
        %v639 = vld [vmem:[%s234 + $0xaa0] sm:$0xff]
        %v640 = vld [vmem:[%s234 + $0xaa8] sm:$0xff]
        %v641 = vld [vmem:[%s234 + $0xab0] sm:$0xff]
        %v642 = vld [vmem:[%s234 + $0xab8] sm:$0xff]
        %v643 = vld [vmem:[%s234 + $0xac0] sm:$0xff]
        %v644 = vld [vmem:[%s234 + $0xac8] sm:$0xff]
        %v645 = vld [vmem:[%s234 + $0xad0] sm:$0xff]
        %v646 = vld [vmem:[%s234 + $0xad8] sm:$0xff]
        %v647 = vld [vmem:[%s234 + $0xae0] sm:$0xff]
        %v648 = vld [vmem:[%s234 + $0xae8] sm:$0xff]
        %v649 = vld [vmem:[%s234 + $0xaf0] sm:$0xff]
        %v650 = vld [vmem:[%s234 + $0xaf8] sm:$0xff]
        %v651 = vld [vmem:[%s234 + $0xb00] sm:$0xff]
        %v652 = vld [vmem:[%s234 + $0xb08] sm:$0xff]
        %v653 = vld [vmem:[%s234 + $0xb10] sm:$0xff]
        %v654 = vld [vmem:[%s234 + $0xb18] sm:$0xff]
        %v655 = vld [vmem:[%s234 + $0xb20] sm:$0xff]
        %v656 = vld [vmem:[%s234 + $0xb28] sm:$0xff]
        %v657 = vld [vmem:[%s234 + $0xb30] sm:$0xff]
        %v658 = vld [vmem:[%s234 + $0xb38] sm:$0xff]
        %v659 = vld [vmem:[%s234 + $0xb40] sm:$0xff]
        %v660 = vld [vmem:[%s234 + $0xb48] sm:$0xff]
        %v661 = vld [vmem:[%s234 + $0xb50] sm:$0xff]
        %v662 = vld [vmem:[%s234 + $0xb58] sm:$0xff]
        %v663 = vld [vmem:[%s234 + $0xb60] sm:$0xff]
        %v664 = vld [vmem:[%s234 + $0xb68] sm:$0xff]
        %v665 = vld [vmem:[%s234 + $0xb70] sm:$0xff]
        %v666 = vld [vmem:[%s234 + $0xb78] sm:$0xff]
        %v667 = vld [vmem:[%s234 + $0xb80] sm:$0xff]
        %v668 = vld [vmem:[%s234 + $0xb88] sm:$0xff]
        %v669 = vld [vmem:[%s234 + $0xb90] sm:$0xff]
        %v670 = vld [vmem:[%s234 + $0xb98] sm:$0xff]
        %v671 = vld [vmem:[%s234 + $0xba0] sm:$0xff]
        %v672 = vld [vmem:[%s234 + $0xba8] sm:$0xff]
        %v673 = vld [vmem:[%s234 + $0xbb0] sm:$0xff]
        %v674 = vld [vmem:[%s234 + $0xbb8] sm:$0xff]
        %v675 = vld [vmem:[%s234 + $0xbc0] sm:$0xff]
        %v676 = vld [vmem:[%s234 + $0xbc8] sm:$0xff]
        %v677 = vld [vmem:[%s234 + $0xbd0] sm:$0xff]
        %v678 = vld [vmem:[%s234 + $0xbd8] sm:$0xff]
        %v679 = vld [vmem:[%s234 + $0xbe0] sm:$0xff]
        %v680 = vld [vmem:[%s234 + $0xbe8] sm:$0xff]
        %v681 = vld [vmem:[%s234 + $0xbf0] sm:$0xff]
        %v682 = vld [vmem:[%s234 + $0xbf8] sm:$0xff]
        %v683 = vunpack.c.0.s8 %v299
        %v684 = vunpack.c.0.s8 %v300
        %v685 = vunpack.c.0.s8 %v301
        %v686 = vunpack.c.0.s8 %v302
        %v687 = vunpack.c.0.s8 %v303
        %v688 = vunpack.c.0.s8 %v304
        %v689 = vunpack.c.1.s8 %v299
        %v690 = vunpack.c.1.s8 %v300
        %v691 = vunpack.c.1.s8 %v301
        %v692 = vunpack.c.1.s8 %v302
        %v693 = vunpack.c.1.s8 %v303
        %v694 = vunpack.c.1.s8 %v304
        %v695 = vunpack.c.2.s8 %v299
        %v696 = vunpack.c.2.s8 %v300
        %v697 = vunpack.c.2.s8 %v301
        %v698 = vunpack.c.2.s8 %v302
        %v699 = vunpack.c.2.s8 %v303
        %v700 = vunpack.c.2.s8 %v304
        %v701 = vunpack.c.3.s8 %v299
        %v702 = vunpack.c.3.s8 %v300
        %v703 = vunpack.c.3.s8 %v301
        %v704 = vunpack.c.3.s8 %v302
        %v705 = vunpack.c.3.s8 %v303
        %v706 = vunpack.c.3.s8 %v304
        %v707 = vunpack.c.0.s8 %v305
        %v708 = vunpack.c.0.s8 %v306
        %v709 = vunpack.c.0.s8 %v307
        %v710 = vunpack.c.0.s8 %v308
        %v711 = vunpack.c.0.s8 %v309
        %v712 = vunpack.c.0.s8 %v310
        %v713 = vunpack.c.1.s8 %v305
        %v714 = vunpack.c.1.s8 %v306
        %v715 = vunpack.c.1.s8 %v307
        %v716 = vunpack.c.1.s8 %v308
        %v717 = vunpack.c.1.s8 %v309
        %v718 = vunpack.c.1.s8 %v310
        %v719 = vunpack.c.2.s8 %v305
        %v720 = vunpack.c.2.s8 %v306
        %v721 = vunpack.c.2.s8 %v307
        %v722 = vunpack.c.2.s8 %v308
        %v723 = vunpack.c.2.s8 %v309
        %v724 = vunpack.c.2.s8 %v310
        %v725 = vunpack.c.3.s8 %v305
        %v726 = vunpack.c.3.s8 %v306
        %v727 = vunpack.c.3.s8 %v307
        %v728 = vunpack.c.3.s8 %v308
        %v729 = vunpack.c.3.s8 %v309
        %v730 = vunpack.c.3.s8 %v310
        %v731 = vunpack.c.0.s8 %v311
        %v732 = vunpack.c.0.s8 %v312
        %v733 = vunpack.c.0.s8 %v313
        %v734 = vunpack.c.0.s8 %v314
        %v735 = vunpack.c.0.s8 %v315
        %v736 = vunpack.c.0.s8 %v316
        %v737 = vunpack.c.1.s8 %v311
        %v738 = vunpack.c.1.s8 %v312
        %v739 = vunpack.c.1.s8 %v313
        %v740 = vunpack.c.1.s8 %v314
        %v741 = vunpack.c.1.s8 %v315
        %v742 = vunpack.c.1.s8 %v316
        %v743 = vunpack.c.2.s8 %v311
        %v744 = vunpack.c.2.s8 %v312
        %v745 = vunpack.c.2.s8 %v313
        %v746 = vunpack.c.2.s8 %v314
        %v747 = vunpack.c.2.s8 %v315
        %v748 = vunpack.c.2.s8 %v316
        %v749 = vunpack.c.3.s8 %v311
        %v750 = vunpack.c.3.s8 %v312
        %v751 = vunpack.c.3.s8 %v313
        %v752 = vunpack.c.3.s8 %v314
        %v753 = vunpack.c.3.s8 %v315
        %v754 = vunpack.c.3.s8 %v316
        %v755 = vunpack.c.0.s8 %v317
        %v756 = vunpack.c.0.s8 %v318
        %v757 = vunpack.c.0.s8 %v319
        %v758 = vunpack.c.0.s8 %v320
        %v759 = vunpack.c.0.s8 %v321
        %v760 = vunpack.c.0.s8 %v322
        %v761 = vunpack.c.1.s8 %v317
        %v762 = vunpack.c.1.s8 %v318
        %v763 = vunpack.c.1.s8 %v319
        %v764 = vunpack.c.1.s8 %v320
        %v765 = vunpack.c.1.s8 %v321
        %v766 = vunpack.c.1.s8 %v322
        %v767 = vunpack.c.2.s8 %v317
        %v768 = vunpack.c.2.s8 %v318
        %v769 = vunpack.c.2.s8 %v319
        %v770 = vunpack.c.2.s8 %v320
        %v771 = vunpack.c.2.s8 %v321
        %v772 = vunpack.c.2.s8 %v322
        %v773 = vunpack.c.3.s8 %v317
        %v774 = vunpack.c.3.s8 %v318
        %v775 = vunpack.c.3.s8 %v319
        %v776 = vunpack.c.3.s8 %v320
        %v777 = vunpack.c.3.s8 %v321
        %v778 = vunpack.c.3.s8 %v322
        %v779 = vunpack.c.0.s8 %v323
        %v780 = vunpack.c.0.s8 %v324
        %v781 = vunpack.c.0.s8 %v325
        %v782 = vunpack.c.0.s8 %v326
        %v783 = vunpack.c.0.s8 %v327
        %v784 = vunpack.c.0.s8 %v328
        %v785 = vunpack.c.1.s8 %v323
        %v786 = vunpack.c.1.s8 %v324
        %v787 = vunpack.c.1.s8 %v325
        %v788 = vunpack.c.1.s8 %v326
        %v789 = vunpack.c.1.s8 %v327
        %v790 = vunpack.c.1.s8 %v328
        %v791 = vunpack.c.2.s8 %v323
        %v792 = vunpack.c.2.s8 %v324
        %v793 = vunpack.c.2.s8 %v325
        %v794 = vunpack.c.2.s8 %v326
        %v795 = vunpack.c.2.s8 %v327
        %v796 = vunpack.c.2.s8 %v328
        %v797 = vunpack.c.3.s8 %v323
        %v798 = vunpack.c.3.s8 %v324
        %v799 = vunpack.c.3.s8 %v325
        %v800 = vunpack.c.3.s8 %v326
        %v801 = vunpack.c.3.s8 %v327
        %v802 = vunpack.c.3.s8 %v328
        %v803 = vunpack.c.0.s8 %v329
        %v804 = vunpack.c.0.s8 %v330
        %v805 = vunpack.c.0.s8 %v331
        %v806 = vunpack.c.0.s8 %v332
        %v807 = vunpack.c.0.s8 %v333
        %v808 = vunpack.c.0.s8 %v334
        %v809 = vunpack.c.1.s8 %v329
        %v810 = vunpack.c.1.s8 %v330
        %v811 = vunpack.c.1.s8 %v331
        %v812 = vunpack.c.1.s8 %v332
        %v813 = vunpack.c.1.s8 %v333
        %v814 = vunpack.c.1.s8 %v334
        %v815 = vunpack.c.2.s8 %v329
        %v816 = vunpack.c.2.s8 %v330
        %v817 = vunpack.c.2.s8 %v331
        %v818 = vunpack.c.2.s8 %v332
        %v819 = vunpack.c.2.s8 %v333
        %v820 = vunpack.c.2.s8 %v334
        %v821 = vunpack.c.3.s8 %v329
        %v822 = vunpack.c.3.s8 %v330
        %v823 = vunpack.c.3.s8 %v331
        %v824 = vunpack.c.3.s8 %v332
        %v825 = vunpack.c.3.s8 %v333
        %v826 = vunpack.c.3.s8 %v334
        %v827 = vunpack.c.0.s8 %v335
        %v828 = vunpack.c.0.s8 %v336
        %v829 = vunpack.c.0.s8 %v337
        %v830 = vunpack.c.0.s8 %v338
        %v831 = vunpack.c.0.s8 %v339
        %v832 = vunpack.c.0.s8 %v340
        %v833 = vunpack.c.1.s8 %v335
        %v834 = vunpack.c.1.s8 %v336
        %v835 = vunpack.c.1.s8 %v337
        %v836 = vunpack.c.1.s8 %v338
        %v837 = vunpack.c.1.s8 %v339
        %v838 = vunpack.c.1.s8 %v340
        %v839 = vunpack.c.2.s8 %v335
        %v840 = vunpack.c.2.s8 %v336
        %v841 = vunpack.c.2.s8 %v337
        %v842 = vunpack.c.2.s8 %v338
        %v843 = vunpack.c.2.s8 %v339
        %v844 = vunpack.c.2.s8 %v340
        %v845 = vunpack.c.3.s8 %v335
        %v846 = vunpack.c.3.s8 %v336
        %v847 = vunpack.c.3.s8 %v337
        %v848 = vunpack.c.3.s8 %v338
        %v849 = vunpack.c.3.s8 %v339
        %v850 = vunpack.c.3.s8 %v340
        %v851 = vunpack.c.0.s8 %v341
        %v852 = vunpack.c.0.s8 %v342
        %v853 = vunpack.c.0.s8 %v343
        %v854 = vunpack.c.0.s8 %v344
        %v855 = vunpack.c.0.s8 %v345
        %v856 = vunpack.c.0.s8 %v346
        %v857 = vunpack.c.1.s8 %v341
        %v858 = vunpack.c.1.s8 %v342
        %v859 = vunpack.c.1.s8 %v343
        %v860 = vunpack.c.1.s8 %v344
        %v861 = vunpack.c.1.s8 %v345
        %v862 = vunpack.c.1.s8 %v346
        %v863 = vunpack.c.2.s8 %v341
        %v864 = vunpack.c.2.s8 %v342
        %v865 = vunpack.c.2.s8 %v343
        %v866 = vunpack.c.2.s8 %v344
        %v867 = vunpack.c.2.s8 %v345
        %v868 = vunpack.c.2.s8 %v346
        %v869 = vunpack.c.3.s8 %v341
        %v870 = vunpack.c.3.s8 %v342
        %v871 = vunpack.c.3.s8 %v343
        %v872 = vunpack.c.3.s8 %v344
        %v873 = vunpack.c.3.s8 %v345
        %v874 = vunpack.c.3.s8 %v346
        %v875 = vunpack.c.0.s8 %v347
        %v876 = vunpack.c.0.s8 %v348
        %v877 = vunpack.c.0.s8 %v349
        %v878 = vunpack.c.0.s8 %v350
        %v879 = vunpack.c.0.s8 %v351
        %v880 = vunpack.c.0.s8 %v352
        %v881 = vunpack.c.1.s8 %v347
        %v882 = vunpack.c.1.s8 %v348
        %v883 = vunpack.c.1.s8 %v349
        %v884 = vunpack.c.1.s8 %v350
        %v885 = vunpack.c.1.s8 %v351
        %v886 = vunpack.c.1.s8 %v352
        %v887 = vunpack.c.2.s8 %v347
        %v888 = vunpack.c.2.s8 %v348
        %v889 = vunpack.c.2.s8 %v349
        %v890 = vunpack.c.2.s8 %v350
        %v891 = vunpack.c.2.s8 %v351
        %v892 = vunpack.c.2.s8 %v352
        %v893 = vunpack.c.3.s8 %v347
        %v894 = vunpack.c.3.s8 %v348
        %v895 = vunpack.c.3.s8 %v349
        %v896 = vunpack.c.3.s8 %v350
        %v897 = vunpack.c.3.s8 %v351
        %v898 = vunpack.c.3.s8 %v352
        %v899 = vunpack.c.0.s8 %v353
        %v900 = vunpack.c.0.s8 %v354
        %v901 = vunpack.c.0.s8 %v355
        %v902 = vunpack.c.0.s8 %v356
        %v903 = vunpack.c.0.s8 %v357
        %v904 = vunpack.c.0.s8 %v358
        %v905 = vunpack.c.1.s8 %v353
        %v906 = vunpack.c.1.s8 %v354
        %v907 = vunpack.c.1.s8 %v355
        %v908 = vunpack.c.1.s8 %v356
        %v909 = vunpack.c.1.s8 %v357
        %v910 = vunpack.c.1.s8 %v358
        %v911 = vunpack.c.2.s8 %v353
        %v912 = vunpack.c.2.s8 %v354
        %v913 = vunpack.c.2.s8 %v355
        %v914 = vunpack.c.2.s8 %v356
        %v915 = vunpack.c.2.s8 %v357
        %v916 = vunpack.c.2.s8 %v358
        %v917 = vunpack.c.3.s8 %v353
        %v918 = vunpack.c.3.s8 %v354
        %v919 = vunpack.c.3.s8 %v355
        %v920 = vunpack.c.3.s8 %v356
        %v921 = vunpack.c.3.s8 %v357
        %v922 = vunpack.c.3.s8 %v358
        %v923 = vunpack.c.0.s8 %v359
        %v924 = vunpack.c.0.s8 %v360
        %v925 = vunpack.c.0.s8 %v361
        %v926 = vunpack.c.0.s8 %v362
        %v927 = vunpack.c.0.s8 %v363
        %v928 = vunpack.c.0.s8 %v364
        %v929 = vunpack.c.1.s8 %v359
        %v930 = vunpack.c.1.s8 %v360
        %v931 = vunpack.c.1.s8 %v361
        %v932 = vunpack.c.1.s8 %v362
        %v933 = vunpack.c.1.s8 %v363
        %v934 = vunpack.c.1.s8 %v364
        %v935 = vunpack.c.2.s8 %v359
        %v936 = vunpack.c.2.s8 %v360
        %v937 = vunpack.c.2.s8 %v361
        %v938 = vunpack.c.2.s8 %v362
        %v939 = vunpack.c.2.s8 %v363
        %v940 = vunpack.c.2.s8 %v364
        %v941 = vunpack.c.3.s8 %v359
        %v942 = vunpack.c.3.s8 %v360
        %v943 = vunpack.c.3.s8 %v361
        %v944 = vunpack.c.3.s8 %v362
        %v945 = vunpack.c.3.s8 %v363
        %v946 = vunpack.c.3.s8 %v364
        %v947 = vunpack.c.0.s8 %v365
        %v948 = vunpack.c.0.s8 %v366
        %v949 = vunpack.c.0.s8 %v367
        %v950 = vunpack.c.0.s8 %v368
        %v951 = vunpack.c.0.s8 %v369
        %v952 = vunpack.c.0.s8 %v370
        %v953 = vunpack.c.1.s8 %v365
        %v954 = vunpack.c.1.s8 %v366
        %v955 = vunpack.c.1.s8 %v367
        %v956 = vunpack.c.1.s8 %v368
        %v957 = vunpack.c.1.s8 %v369
        %v958 = vunpack.c.1.s8 %v370
        %v959 = vunpack.c.2.s8 %v365
        %v960 = vunpack.c.2.s8 %v366
        %v961 = vunpack.c.2.s8 %v367
        %v962 = vunpack.c.2.s8 %v368
        %v963 = vunpack.c.2.s8 %v369
        %v964 = vunpack.c.2.s8 %v370
        %v965 = vunpack.c.3.s8 %v365
        %v966 = vunpack.c.3.s8 %v366
        %v967 = vunpack.c.3.s8 %v367
        %v968 = vunpack.c.3.s8 %v368
        %v969 = vunpack.c.3.s8 %v369
        %v970 = vunpack.c.3.s8 %v370
        %v971 = vunpack.c.0.s8 %v371
        %v972 = vunpack.c.0.s8 %v372
        %v973 = vunpack.c.0.s8 %v373
        %v974 = vunpack.c.0.s8 %v374
        %v975 = vunpack.c.0.s8 %v375
        %v976 = vunpack.c.0.s8 %v376
        %v977 = vunpack.c.1.s8 %v371
        %v978 = vunpack.c.1.s8 %v372
        %v979 = vunpack.c.1.s8 %v373
        %v980 = vunpack.c.1.s8 %v374
        %v981 = vunpack.c.1.s8 %v375
        %v982 = vunpack.c.1.s8 %v376
        %v983 = vunpack.c.2.s8 %v371
        %v984 = vunpack.c.2.s8 %v372
        %v985 = vunpack.c.2.s8 %v373
        %v986 = vunpack.c.2.s8 %v374
        %v987 = vunpack.c.2.s8 %v375
        %v988 = vunpack.c.2.s8 %v376
        %v989 = vunpack.c.3.s8 %v371
        %v990 = vunpack.c.3.s8 %v372
        %v991 = vunpack.c.3.s8 %v373
        %v992 = vunpack.c.3.s8 %v374
        %v993 = vunpack.c.3.s8 %v375
        %v994 = vunpack.c.3.s8 %v376
        %v995 = vunpack.c.0.s8 %v377
        %v996 = vunpack.c.0.s8 %v378
        %v997 = vunpack.c.0.s8 %v379
        %v998 = vunpack.c.0.s8 %v380
        %v999 = vunpack.c.0.s8 %v381
        %v1000 = vunpack.c.0.s8 %v382
        %v1001 = vunpack.c.1.s8 %v377
        %v1002 = vunpack.c.1.s8 %v378
        %v1003 = vunpack.c.1.s8 %v379
        %v1004 = vunpack.c.1.s8 %v380
        %v1005 = vunpack.c.1.s8 %v381
        %v1006 = vunpack.c.1.s8 %v382
        %v1007 = vunpack.c.2.s8 %v377
        %v1008 = vunpack.c.2.s8 %v378
        %v1009 = vunpack.c.2.s8 %v379
        %v1010 = vunpack.c.2.s8 %v380
        %v1011 = vunpack.c.2.s8 %v381
        %v1012 = vunpack.c.2.s8 %v382
        %v1013 = vunpack.c.3.s8 %v377
        %v1014 = vunpack.c.3.s8 %v378
        %v1015 = vunpack.c.3.s8 %v379
        %v1016 = vunpack.c.3.s8 %v380
        %v1017 = vunpack.c.3.s8 %v381
        %v1018 = vunpack.c.3.s8 %v382
        %v1019 = vunpack.c.0.s8 %v383
        %v1020 = vunpack.c.0.s8 %v384
        %v1021 = vunpack.c.0.s8 %v385
        %v1022 = vunpack.c.0.s8 %v386
        %v1023 = vunpack.c.0.s8 %v387
        %v1024 = vunpack.c.0.s8 %v388
        %v1025 = vunpack.c.1.s8 %v383
        %v1026 = vunpack.c.1.s8 %v384
        %v1027 = vunpack.c.1.s8 %v385
        %v1028 = vunpack.c.1.s8 %v386
        %v1029 = vunpack.c.1.s8 %v387
        %v1030 = vunpack.c.1.s8 %v388
        %v1031 = vunpack.c.2.s8 %v383
        %v1032 = vunpack.c.2.s8 %v384
        %v1033 = vunpack.c.2.s8 %v385
        %v1034 = vunpack.c.2.s8 %v386
        %v1035 = vunpack.c.2.s8 %v387
        %v1036 = vunpack.c.2.s8 %v388
        %v1037 = vunpack.c.3.s8 %v383
        %v1038 = vunpack.c.3.s8 %v384
        %v1039 = vunpack.c.3.s8 %v385
        %v1040 = vunpack.c.3.s8 %v386
        %v1041 = vunpack.c.3.s8 %v387
        %v1042 = vunpack.c.3.s8 %v388
        %v1043 = vunpack.c.0.s8 %v389
        %v1044 = vunpack.c.0.s8 %v390
        %v1045 = vunpack.c.0.s8 %v391
        %v1046 = vunpack.c.0.s8 %v392
        %v1047 = vunpack.c.0.s8 %v393
        %v1048 = vunpack.c.0.s8 %v394
        %v1049 = vunpack.c.1.s8 %v389
        %v1050 = vunpack.c.1.s8 %v390
        %v1051 = vunpack.c.1.s8 %v391
        %v1052 = vunpack.c.1.s8 %v392
        %v1053 = vunpack.c.1.s8 %v393
        %v1054 = vunpack.c.1.s8 %v394
        %v1055 = vunpack.c.2.s8 %v389
        %v1056 = vunpack.c.2.s8 %v390
        %v1057 = vunpack.c.2.s8 %v391
        %v1058 = vunpack.c.2.s8 %v392
        %v1059 = vunpack.c.2.s8 %v393
        %v1060 = vunpack.c.2.s8 %v394
        %v1061 = vunpack.c.3.s8 %v389
        %v1062 = vunpack.c.3.s8 %v390
        %v1063 = vunpack.c.3.s8 %v391
        %v1064 = vunpack.c.3.s8 %v392
        %v1065 = vunpack.c.3.s8 %v393
        %v1066 = vunpack.c.3.s8 %v394
        %v1067 = vunpack.c.0.s8 %v395
        %v1068 = vunpack.c.0.s8 %v396
        %v1069 = vunpack.c.0.s8 %v397
        %v1070 = vunpack.c.0.s8 %v398
        %v1071 = vunpack.c.0.s8 %v399
        %v1072 = vunpack.c.0.s8 %v400
        %v1073 = vunpack.c.1.s8 %v395
        %v1074 = vunpack.c.1.s8 %v396
        %v1075 = vunpack.c.1.s8 %v397
        %v1076 = vunpack.c.1.s8 %v398
        %v1077 = vunpack.c.1.s8 %v399
        %v1078 = vunpack.c.1.s8 %v400
        %v1079 = vunpack.c.2.s8 %v395
        %v1080 = vunpack.c.2.s8 %v396
        %v1081 = vunpack.c.2.s8 %v397
        %v1082 = vunpack.c.2.s8 %v398
        %v1083 = vunpack.c.2.s8 %v399
        %v1084 = vunpack.c.2.s8 %v400
        %v1085 = vunpack.c.3.s8 %v395
        %v1086 = vunpack.c.3.s8 %v396
        %v1087 = vunpack.c.3.s8 %v397
        %v1088 = vunpack.c.3.s8 %v398
        %v1089 = vunpack.c.3.s8 %v399
        %v1090 = vunpack.c.3.s8 %v400
        %v1091 = vunpack.c.0.s8 %v401
        %v1092 = vunpack.c.0.s8 %v402
        %v1093 = vunpack.c.0.s8 %v403
        %v1094 = vunpack.c.0.s8 %v404
        %v1095 = vunpack.c.0.s8 %v405
        %v1096 = vunpack.c.0.s8 %v406
        %v1097 = vunpack.c.1.s8 %v401
        %v1098 = vunpack.c.1.s8 %v402
        %v1099 = vunpack.c.1.s8 %v403
        %v1100 = vunpack.c.1.s8 %v404
        %v1101 = vunpack.c.1.s8 %v405
        %v1102 = vunpack.c.1.s8 %v406
        %v1103 = vunpack.c.2.s8 %v401
        %v1104 = vunpack.c.2.s8 %v402
        %v1105 = vunpack.c.2.s8 %v403
        %v1106 = vunpack.c.2.s8 %v404
        %v1107 = vunpack.c.2.s8 %v405
        %v1108 = vunpack.c.2.s8 %v406
        %v1109 = vunpack.c.3.s8 %v401
        %v1110 = vunpack.c.3.s8 %v402
        %v1111 = vunpack.c.3.s8 %v403
        %v1112 = vunpack.c.3.s8 %v404
        %v1113 = vunpack.c.3.s8 %v405
        %v1114 = vunpack.c.3.s8 %v406
        %v1115 = vunpack.c.0.s8 %v407
        %v1116 = vunpack.c.0.s8 %v408
        %v1117 = vunpack.c.0.s8 %v409
        %v1118 = vunpack.c.0.s8 %v410
        %v1119 = vunpack.c.0.s8 %v411
        %v1120 = vunpack.c.0.s8 %v412
        %v1121 = vunpack.c.1.s8 %v407
        %v1122 = vunpack.c.1.s8 %v408
        %v1123 = vunpack.c.1.s8 %v409
        %v1124 = vunpack.c.1.s8 %v410
        %v1125 = vunpack.c.1.s8 %v411
        %v1126 = vunpack.c.1.s8 %v412
        %v1127 = vunpack.c.2.s8 %v407
        %v1128 = vunpack.c.2.s8 %v408
        %v1129 = vunpack.c.2.s8 %v409
        %v1130 = vunpack.c.2.s8 %v410
        %v1131 = vunpack.c.2.s8 %v411
        %v1132 = vunpack.c.2.s8 %v412
        %v1133 = vunpack.c.3.s8 %v407
        %v1134 = vunpack.c.3.s8 %v408
        %v1135 = vunpack.c.3.s8 %v409
        %v1136 = vunpack.c.3.s8 %v410
        %v1137 = vunpack.c.3.s8 %v411
        %v1138 = vunpack.c.3.s8 %v412
        %v1139 = vunpack.c.0.s8 %v413
        %v1140 = vunpack.c.0.s8 %v414
        %v1141 = vunpack.c.0.s8 %v415
        %v1142 = vunpack.c.0.s8 %v416
        %v1143 = vunpack.c.0.s8 %v417
        %v1144 = vunpack.c.0.s8 %v418
        %v1145 = vunpack.c.1.s8 %v413
        %v1146 = vunpack.c.1.s8 %v414
        %v1147 = vunpack.c.1.s8 %v415
        %v1148 = vunpack.c.1.s8 %v416
        %v1149 = vunpack.c.1.s8 %v417
        %v1150 = vunpack.c.1.s8 %v418
        %v1151 = vunpack.c.2.s8 %v413
        %v1152 = vunpack.c.2.s8 %v414
        %v1153 = vunpack.c.2.s8 %v415
        %v1154 = vunpack.c.2.s8 %v416
        %v1155 = vunpack.c.2.s8 %v417
        %v1156 = vunpack.c.2.s8 %v418
        %v1157 = vunpack.c.3.s8 %v413
        %v1158 = vunpack.c.3.s8 %v414
        %v1159 = vunpack.c.3.s8 %v415
        %v1160 = vunpack.c.3.s8 %v416
        %v1161 = vunpack.c.3.s8 %v417
        %v1162 = vunpack.c.3.s8 %v418
        %v1163 = vunpack.c.0.s8 %v419
        %v1164 = vunpack.c.0.s8 %v420
        %v1165 = vunpack.c.0.s8 %v421
        %v1166 = vunpack.c.0.s8 %v422
        %v1167 = vunpack.c.0.s8 %v423
        %v1168 = vunpack.c.0.s8 %v424
        %v1169 = vunpack.c.1.s8 %v419
        %v1170 = vunpack.c.1.s8 %v420
        %v1171 = vunpack.c.1.s8 %v421
        %v1172 = vunpack.c.1.s8 %v422
        %v1173 = vunpack.c.1.s8 %v423
        %v1174 = vunpack.c.1.s8 %v424
        %v1175 = vunpack.c.2.s8 %v419
        %v1176 = vunpack.c.2.s8 %v420
        %v1177 = vunpack.c.2.s8 %v421
        %v1178 = vunpack.c.2.s8 %v422
        %v1179 = vunpack.c.2.s8 %v423
        %v1180 = vunpack.c.2.s8 %v424
        %v1181 = vunpack.c.3.s8 %v419
        %v1182 = vunpack.c.3.s8 %v420
        %v1183 = vunpack.c.3.s8 %v421
        %v1184 = vunpack.c.3.s8 %v422
        %v1185 = vunpack.c.3.s8 %v423
        %v1186 = vunpack.c.3.s8 %v424
        %v1187 = vunpack.c.0.s8 %v425
        %v1188 = vunpack.c.0.s8 %v426
        %v1189 = vunpack.c.0.s8 %v427
        %v1190 = vunpack.c.0.s8 %v428
        %v1191 = vunpack.c.0.s8 %v429
        %v1192 = vunpack.c.0.s8 %v430
        %v1193 = vunpack.c.1.s8 %v425
        %v1194 = vunpack.c.1.s8 %v426
        %v1195 = vunpack.c.1.s8 %v427
        %v1196 = vunpack.c.1.s8 %v428
        %v1197 = vunpack.c.1.s8 %v429
        %v1198 = vunpack.c.1.s8 %v430
        %v1199 = vunpack.c.2.s8 %v425
        %v1200 = vunpack.c.2.s8 %v426
        %v1201 = vunpack.c.2.s8 %v427
        %v1202 = vunpack.c.2.s8 %v428
        %v1203 = vunpack.c.2.s8 %v429
        %v1204 = vunpack.c.2.s8 %v430
        %v1205 = vunpack.c.3.s8 %v425
        %v1206 = vunpack.c.3.s8 %v426
        %v1207 = vunpack.c.3.s8 %v427
        %v1208 = vunpack.c.3.s8 %v428
        %v1209 = vunpack.c.3.s8 %v429
        %v1210 = vunpack.c.3.s8 %v430
        %v1211 = vunpack.c.0.s8 %v431
        %v1212 = vunpack.c.0.s8 %v432
        %v1213 = vunpack.c.0.s8 %v433
        %v1214 = vunpack.c.0.s8 %v434
        %v1215 = vunpack.c.0.s8 %v435
        %v1216 = vunpack.c.0.s8 %v436
        %v1217 = vunpack.c.1.s8 %v431
        %v1218 = vunpack.c.1.s8 %v432
        %v1219 = vunpack.c.1.s8 %v433
        %v1220 = vunpack.c.1.s8 %v434
        %v1221 = vunpack.c.1.s8 %v435
        %v1222 = vunpack.c.1.s8 %v436
        %v1223 = vunpack.c.2.s8 %v431
        %v1224 = vunpack.c.2.s8 %v432
        %v1225 = vunpack.c.2.s8 %v433
        %v1226 = vunpack.c.2.s8 %v434
        %v1227 = vunpack.c.2.s8 %v435
        %v1228 = vunpack.c.2.s8 %v436
        %v1229 = vunpack.c.3.s8 %v431
        %v1230 = vunpack.c.3.s8 %v432
        %v1231 = vunpack.c.3.s8 %v433
        %v1232 = vunpack.c.3.s8 %v434
        %v1233 = vunpack.c.3.s8 %v435
        %v1234 = vunpack.c.3.s8 %v436
        %v1235 = vunpack.c.0.s8 %v437
        %v1236 = vunpack.c.0.s8 %v438
        %v1237 = vunpack.c.0.s8 %v439
        %v1238 = vunpack.c.0.s8 %v440
        %v1239 = vunpack.c.0.s8 %v441
        %v1240 = vunpack.c.0.s8 %v442
        %v1241 = vunpack.c.1.s8 %v437
        %v1242 = vunpack.c.1.s8 %v438
        %v1243 = vunpack.c.1.s8 %v439
        %v1244 = vunpack.c.1.s8 %v440
        %v1245 = vunpack.c.1.s8 %v441
        %v1246 = vunpack.c.1.s8 %v442
        %v1247 = vunpack.c.2.s8 %v437
        %v1248 = vunpack.c.2.s8 %v438
        %v1249 = vunpack.c.2.s8 %v439
        %v1250 = vunpack.c.2.s8 %v440
        %v1251 = vunpack.c.2.s8 %v441
        %v1252 = vunpack.c.2.s8 %v442
        %v1253 = vunpack.c.3.s8 %v437
        %v1254 = vunpack.c.3.s8 %v438
        %v1255 = vunpack.c.3.s8 %v439
        %v1256 = vunpack.c.3.s8 %v440
        %v1257 = vunpack.c.3.s8 %v441
        %v1258 = vunpack.c.3.s8 %v442
        %v1259 = vunpack.c.0.s8 %v443
        %v1260 = vunpack.c.0.s8 %v444
        %v1261 = vunpack.c.0.s8 %v445
        %v1262 = vunpack.c.0.s8 %v446
        %v1263 = vunpack.c.0.s8 %v447
        %v1264 = vunpack.c.0.s8 %v448
        %v1265 = vunpack.c.1.s8 %v443
        %v1266 = vunpack.c.1.s8 %v444
        %v1267 = vunpack.c.1.s8 %v445
        %v1268 = vunpack.c.1.s8 %v446
        %v1269 = vunpack.c.1.s8 %v447
        %v1270 = vunpack.c.1.s8 %v448
        %v1271 = vunpack.c.2.s8 %v443
        %v1272 = vunpack.c.2.s8 %v444
        %v1273 = vunpack.c.2.s8 %v445
        %v1274 = vunpack.c.2.s8 %v446
        %v1275 = vunpack.c.2.s8 %v447
        %v1276 = vunpack.c.2.s8 %v448
        %v1277 = vunpack.c.3.s8 %v443
        %v1278 = vunpack.c.3.s8 %v444
        %v1279 = vunpack.c.3.s8 %v445
        %v1280 = vunpack.c.3.s8 %v446
        %v1281 = vunpack.c.3.s8 %v447
        %v1282 = vunpack.c.3.s8 %v448
        %v1283 = vunpack.c.0.s8 %v449
        %v1284 = vunpack.c.0.s8 %v450
        %v1285 = vunpack.c.0.s8 %v451
        %v1286 = vunpack.c.0.s8 %v452
        %v1287 = vunpack.c.0.s8 %v453
        %v1288 = vunpack.c.0.s8 %v454
        %v1289 = vunpack.c.1.s8 %v449
        %v1290 = vunpack.c.1.s8 %v450
        %v1291 = vunpack.c.1.s8 %v451
        %v1292 = vunpack.c.1.s8 %v452
        %v1293 = vunpack.c.1.s8 %v453
        %v1294 = vunpack.c.1.s8 %v454
        %v1295 = vunpack.c.2.s8 %v449
        %v1296 = vunpack.c.2.s8 %v450
        %v1297 = vunpack.c.2.s8 %v451
        %v1298 = vunpack.c.2.s8 %v452
        %v1299 = vunpack.c.2.s8 %v453
        %v1300 = vunpack.c.2.s8 %v454
        %v1301 = vunpack.c.3.s8 %v449
        %v1302 = vunpack.c.3.s8 %v450
        %v1303 = vunpack.c.3.s8 %v451
        %v1304 = vunpack.c.3.s8 %v452
        %v1305 = vunpack.c.3.s8 %v453
        %v1306 = vunpack.c.3.s8 %v454
        %v1307 = vunpack.c.0.s8 %v455
        %v1308 = vunpack.c.0.s8 %v456
        %v1309 = vunpack.c.0.s8 %v457
        %v1310 = vunpack.c.0.s8 %v458
        %v1311 = vunpack.c.0.s8 %v459
        %v1312 = vunpack.c.0.s8 %v460
        %v1313 = vunpack.c.1.s8 %v455
        %v1314 = vunpack.c.1.s8 %v456
        %v1315 = vunpack.c.1.s8 %v457
        %v1316 = vunpack.c.1.s8 %v458
        %v1317 = vunpack.c.1.s8 %v459
        %v1318 = vunpack.c.1.s8 %v460
        %v1319 = vunpack.c.2.s8 %v455
        %v1320 = vunpack.c.2.s8 %v456
        %v1321 = vunpack.c.2.s8 %v457
        %v1322 = vunpack.c.2.s8 %v458
        %v1323 = vunpack.c.2.s8 %v459
        %v1324 = vunpack.c.2.s8 %v460
        %v1325 = vunpack.c.3.s8 %v455
        %v1326 = vunpack.c.3.s8 %v456
        %v1327 = vunpack.c.3.s8 %v457
        %v1328 = vunpack.c.3.s8 %v458
        %v1329 = vunpack.c.3.s8 %v459
        %v1330 = vunpack.c.3.s8 %v460
        %v1331 = vunpack.c.0.s8 %v461
        %v1332 = vunpack.c.0.s8 %v462
        %v1333 = vunpack.c.0.s8 %v463
        %v1334 = vunpack.c.0.s8 %v464
        %v1335 = vunpack.c.0.s8 %v465
        %v1336 = vunpack.c.0.s8 %v466
        %v1337 = vunpack.c.1.s8 %v461
        %v1338 = vunpack.c.1.s8 %v462
        %v1339 = vunpack.c.1.s8 %v463
        %v1340 = vunpack.c.1.s8 %v464
        %v1341 = vunpack.c.1.s8 %v465
        %v1342 = vunpack.c.1.s8 %v466
        %v1343 = vunpack.c.2.s8 %v461
        %v1344 = vunpack.c.2.s8 %v462
        %v1345 = vunpack.c.2.s8 %v463
        %v1346 = vunpack.c.2.s8 %v464
        %v1347 = vunpack.c.2.s8 %v465
        %v1348 = vunpack.c.2.s8 %v466
        %v1349 = vunpack.c.3.s8 %v461
        %v1350 = vunpack.c.3.s8 %v462
        %v1351 = vunpack.c.3.s8 %v463
        %v1352 = vunpack.c.3.s8 %v464
        %v1353 = vunpack.c.3.s8 %v465
        %v1354 = vunpack.c.3.s8 %v466
        %v1355 = vunpack.c.0.s8 %v467
        %v1356 = vunpack.c.0.s8 %v468
        %v1357 = vunpack.c.0.s8 %v469
        %v1358 = vunpack.c.0.s8 %v470
        %v1359 = vunpack.c.0.s8 %v471
        %v1360 = vunpack.c.0.s8 %v472
        %v1361 = vunpack.c.1.s8 %v467
        %v1362 = vunpack.c.1.s8 %v468
        %v1363 = vunpack.c.1.s8 %v469
        %v1364 = vunpack.c.1.s8 %v470
        %v1365 = vunpack.c.1.s8 %v471
        %v1366 = vunpack.c.1.s8 %v472
        %v1367 = vunpack.c.2.s8 %v467
        %v1368 = vunpack.c.2.s8 %v468
        %v1369 = vunpack.c.2.s8 %v469
        %v1370 = vunpack.c.2.s8 %v470
        %v1371 = vunpack.c.2.s8 %v471
        %v1372 = vunpack.c.2.s8 %v472
        %v1373 = vunpack.c.3.s8 %v467
        %v1374 = vunpack.c.3.s8 %v468
        %v1375 = vunpack.c.3.s8 %v469
        %v1376 = vunpack.c.3.s8 %v470
        %v1377 = vunpack.c.3.s8 %v471
        %v1378 = vunpack.c.3.s8 %v472
        %v1379 = vunpack.c.0.s8 %v473
        %v1380 = vunpack.c.0.s8 %v474
        %v1381 = vunpack.c.0.s8 %v475
        %v1382 = vunpack.c.0.s8 %v476
        %v1383 = vunpack.c.0.s8 %v477
        %v1384 = vunpack.c.0.s8 %v478
        %v1385 = vunpack.c.1.s8 %v473
        %v1386 = vunpack.c.1.s8 %v474
        %v1387 = vunpack.c.1.s8 %v475
        %v1388 = vunpack.c.1.s8 %v476
        %v1389 = vunpack.c.1.s8 %v477
        %v1390 = vunpack.c.1.s8 %v478
        %v1391 = vunpack.c.2.s8 %v473
        %v1392 = vunpack.c.2.s8 %v474
        %v1393 = vunpack.c.2.s8 %v475
        %v1394 = vunpack.c.2.s8 %v476
        %v1395 = vunpack.c.2.s8 %v477
        %v1396 = vunpack.c.2.s8 %v478
        %v1397 = vunpack.c.3.s8 %v473
        %v1398 = vunpack.c.3.s8 %v474
        %v1399 = vunpack.c.3.s8 %v475
        %v1400 = vunpack.c.3.s8 %v476
        %v1401 = vunpack.c.3.s8 %v477
        %v1402 = vunpack.c.3.s8 %v478
        %v1403 = vunpack.c.0.s8 %v479
        %v1404 = vunpack.c.0.s8 %v480
        %v1405 = vunpack.c.0.s8 %v481
        %v1406 = vunpack.c.0.s8 %v482
        %v1407 = vunpack.c.0.s8 %v483
        %v1408 = vunpack.c.0.s8 %v484
        %v1409 = vunpack.c.1.s8 %v479
        %v1410 = vunpack.c.1.s8 %v480
        %v1411 = vunpack.c.1.s8 %v481
        %v1412 = vunpack.c.1.s8 %v482
        %v1413 = vunpack.c.1.s8 %v483
        %v1414 = vunpack.c.1.s8 %v484
        %v1415 = vunpack.c.2.s8 %v479
        %v1416 = vunpack.c.2.s8 %v480
        %v1417 = vunpack.c.2.s8 %v481
        %v1418 = vunpack.c.2.s8 %v482
        %v1419 = vunpack.c.2.s8 %v483
        %v1420 = vunpack.c.2.s8 %v484
        %v1421 = vunpack.c.3.s8 %v479
        %v1422 = vunpack.c.3.s8 %v480
        %v1423 = vunpack.c.3.s8 %v481
        %v1424 = vunpack.c.3.s8 %v482
        %v1425 = vunpack.c.3.s8 %v483
        %v1426 = vunpack.c.3.s8 %v484
        %v1427 = vunpack.c.0.s8 %v485
        %v1428 = vunpack.c.0.s8 %v486
        %v1429 = vunpack.c.0.s8 %v487
        %v1430 = vunpack.c.0.s8 %v488
        %v1431 = vunpack.c.0.s8 %v489
        %v1432 = vunpack.c.0.s8 %v490
        %v1433 = vunpack.c.1.s8 %v485
        %v1434 = vunpack.c.1.s8 %v486
        %v1435 = vunpack.c.1.s8 %v487
        %v1436 = vunpack.c.1.s8 %v488
        %v1437 = vunpack.c.1.s8 %v489
        %v1438 = vunpack.c.1.s8 %v490
        %v1439 = vunpack.c.2.s8 %v485
        %v1440 = vunpack.c.2.s8 %v486
        %v1441 = vunpack.c.2.s8 %v487
        %v1442 = vunpack.c.2.s8 %v488
        %v1443 = vunpack.c.2.s8 %v489
        %v1444 = vunpack.c.2.s8 %v490
        %v1445 = vunpack.c.3.s8 %v485
        %v1446 = vunpack.c.3.s8 %v486
        %v1447 = vunpack.c.3.s8 %v487
        %v1448 = vunpack.c.3.s8 %v488
        %v1449 = vunpack.c.3.s8 %v489
        %v1450 = vunpack.c.3.s8 %v490
        %v1451 = vunpack.c.0.s8 %v491
        %v1452 = vunpack.c.0.s8 %v492
        %v1453 = vunpack.c.0.s8 %v493
        %v1454 = vunpack.c.0.s8 %v494
        %v1455 = vunpack.c.0.s8 %v495
        %v1456 = vunpack.c.0.s8 %v496
        %v1457 = vunpack.c.1.s8 %v491
        %v1458 = vunpack.c.1.s8 %v492
        %v1459 = vunpack.c.1.s8 %v493
        %v1460 = vunpack.c.1.s8 %v494
        %v1461 = vunpack.c.1.s8 %v495
        %v1462 = vunpack.c.1.s8 %v496
        %v1463 = vunpack.c.2.s8 %v491
        %v1464 = vunpack.c.2.s8 %v492
        %v1465 = vunpack.c.2.s8 %v493
        %v1466 = vunpack.c.2.s8 %v494
        %v1467 = vunpack.c.2.s8 %v495
        %v1468 = vunpack.c.2.s8 %v496
        %v1469 = vunpack.c.3.s8 %v491
        %v1470 = vunpack.c.3.s8 %v492
        %v1471 = vunpack.c.3.s8 %v493
        %v1472 = vunpack.c.3.s8 %v494
        %v1473 = vunpack.c.3.s8 %v495
        %v1474 = vunpack.c.3.s8 %v496
        %v1475 = vunpack.c.0.s8 %v497
        %v1476 = vunpack.c.0.s8 %v498
        %v1477 = vunpack.c.0.s8 %v499
        %v1478 = vunpack.c.0.s8 %v500
        %v1479 = vunpack.c.0.s8 %v501
        %v1480 = vunpack.c.0.s8 %v502
        %v1481 = vunpack.c.1.s8 %v497
        %v1482 = vunpack.c.1.s8 %v498
        %v1483 = vunpack.c.1.s8 %v499
        %v1484 = vunpack.c.1.s8 %v500
        %v1485 = vunpack.c.1.s8 %v501
        %v1486 = vunpack.c.1.s8 %v502
        %v1487 = vunpack.c.2.s8 %v497
        %v1488 = vunpack.c.2.s8 %v498
        %v1489 = vunpack.c.2.s8 %v499
        %v1490 = vunpack.c.2.s8 %v500
        %v1491 = vunpack.c.2.s8 %v501
        %v1492 = vunpack.c.2.s8 %v502
        %v1493 = vunpack.c.3.s8 %v497
        %v1494 = vunpack.c.3.s8 %v498
        %v1495 = vunpack.c.3.s8 %v499
        %v1496 = vunpack.c.3.s8 %v500
        %v1497 = vunpack.c.3.s8 %v501
        %v1498 = vunpack.c.3.s8 %v502
        %v1499 = vunpack.c.0.s8 %v503
        %v1500 = vunpack.c.0.s8 %v504
        %v1501 = vunpack.c.0.s8 %v505
        %v1502 = vunpack.c.0.s8 %v506
        %v1503 = vunpack.c.0.s8 %v507
        %v1504 = vunpack.c.0.s8 %v508
        %v1505 = vunpack.c.1.s8 %v503
        %v1506 = vunpack.c.1.s8 %v504
        %v1507 = vunpack.c.1.s8 %v505
        %v1508 = vunpack.c.1.s8 %v506
        %v1509 = vunpack.c.1.s8 %v507
        %v1510 = vunpack.c.1.s8 %v508
        %v1511 = vunpack.c.2.s8 %v503
        %v1512 = vunpack.c.2.s8 %v504
        %v1513 = vunpack.c.2.s8 %v505
        %v1514 = vunpack.c.2.s8 %v506
        %v1515 = vunpack.c.2.s8 %v507
        %v1516 = vunpack.c.2.s8 %v508
        %v1517 = vunpack.c.3.s8 %v503
        %v1518 = vunpack.c.3.s8 %v504
        %v1519 = vunpack.c.3.s8 %v505
        %v1520 = vunpack.c.3.s8 %v506
        %v1521 = vunpack.c.3.s8 %v507
        %v1522 = vunpack.c.3.s8 %v508
        %v1523 = vunpack.c.0.s8 %v509
        %v1524 = vunpack.c.0.s8 %v510
        %v1525 = vunpack.c.0.s8 %v511
        %v1526 = vunpack.c.0.s8 %v512
        %v1527 = vunpack.c.0.s8 %v513
        %v1528 = vunpack.c.0.s8 %v514
        %v1529 = vunpack.c.1.s8 %v509
        %v1530 = vunpack.c.1.s8 %v510
        %v1531 = vunpack.c.1.s8 %v511
        %v1532 = vunpack.c.1.s8 %v512
        %v1533 = vunpack.c.1.s8 %v513
        %v1534 = vunpack.c.1.s8 %v514
        %v1535 = vunpack.c.2.s8 %v509
        %v1536 = vunpack.c.2.s8 %v510
        %v1537 = vunpack.c.2.s8 %v511
        %v1538 = vunpack.c.2.s8 %v512
        %v1539 = vunpack.c.2.s8 %v513
        %v1540 = vunpack.c.2.s8 %v514
        %v1541 = vunpack.c.3.s8 %v509
        %v1542 = vunpack.c.3.s8 %v510
        %v1543 = vunpack.c.3.s8 %v511
        %v1544 = vunpack.c.3.s8 %v512
        %v1545 = vunpack.c.3.s8 %v513
        %v1546 = vunpack.c.3.s8 %v514
        %v1547 = vunpack.c.0.s8 %v515
        %v1548 = vunpack.c.0.s8 %v516
        %v1549 = vunpack.c.0.s8 %v517
        %v1550 = vunpack.c.0.s8 %v518
        %v1551 = vunpack.c.0.s8 %v519
        %v1552 = vunpack.c.0.s8 %v520
        %v1553 = vunpack.c.1.s8 %v515
        %v1554 = vunpack.c.1.s8 %v516
        %v1555 = vunpack.c.1.s8 %v517
        %v1556 = vunpack.c.1.s8 %v518
        %v1557 = vunpack.c.1.s8 %v519
        %v1558 = vunpack.c.1.s8 %v520
        %v1559 = vunpack.c.2.s8 %v515
        %v1560 = vunpack.c.2.s8 %v516
        %v1561 = vunpack.c.2.s8 %v517
        %v1562 = vunpack.c.2.s8 %v518
        %v1563 = vunpack.c.2.s8 %v519
        %v1564 = vunpack.c.2.s8 %v520
        %v1565 = vunpack.c.3.s8 %v515
        %v1566 = vunpack.c.3.s8 %v516
        %v1567 = vunpack.c.3.s8 %v517
        %v1568 = vunpack.c.3.s8 %v518
        %v1569 = vunpack.c.3.s8 %v519
        %v1570 = vunpack.c.3.s8 %v520
        %v1571 = vunpack.c.0.s8 %v521
        %v1572 = vunpack.c.0.s8 %v522
        %v1573 = vunpack.c.0.s8 %v523
        %v1574 = vunpack.c.0.s8 %v524
        %v1575 = vunpack.c.0.s8 %v525
        %v1576 = vunpack.c.0.s8 %v526
        %v1577 = vunpack.c.1.s8 %v521
        %v1578 = vunpack.c.1.s8 %v522
        %v1579 = vunpack.c.1.s8 %v523
        %v1580 = vunpack.c.1.s8 %v524
        %v1581 = vunpack.c.1.s8 %v525
        %v1582 = vunpack.c.1.s8 %v526
        %v1583 = vunpack.c.2.s8 %v521
        %v1584 = vunpack.c.2.s8 %v522
        %v1585 = vunpack.c.2.s8 %v523
        %v1586 = vunpack.c.2.s8 %v524
        %v1587 = vunpack.c.2.s8 %v525
        %v1588 = vunpack.c.2.s8 %v526
        %v1589 = vunpack.c.3.s8 %v521
        %v1590 = vunpack.c.3.s8 %v522
        %v1591 = vunpack.c.3.s8 %v523
        %v1592 = vunpack.c.3.s8 %v524
        %v1593 = vunpack.c.3.s8 %v525
        %v1594 = vunpack.c.3.s8 %v526
        %v1595 = vunpack.c.0.s8 %v527
        %v1596 = vunpack.c.0.s8 %v528
        %v1597 = vunpack.c.0.s8 %v529
        %v1598 = vunpack.c.0.s8 %v530
        %v1599 = vunpack.c.0.s8 %v531
        %v1600 = vunpack.c.0.s8 %v532
        %v1601 = vunpack.c.1.s8 %v527
        %v1602 = vunpack.c.1.s8 %v528
        %v1603 = vunpack.c.1.s8 %v529
        %v1604 = vunpack.c.1.s8 %v530
        %v1605 = vunpack.c.1.s8 %v531
        %v1606 = vunpack.c.1.s8 %v532
        %v1607 = vunpack.c.2.s8 %v527
        %v1608 = vunpack.c.2.s8 %v528
        %v1609 = vunpack.c.2.s8 %v529
        %v1610 = vunpack.c.2.s8 %v530
        %v1611 = vunpack.c.2.s8 %v531
        %v1612 = vunpack.c.2.s8 %v532
        %v1613 = vunpack.c.3.s8 %v527
        %v1614 = vunpack.c.3.s8 %v528
        %v1615 = vunpack.c.3.s8 %v529
        %v1616 = vunpack.c.3.s8 %v530
        %v1617 = vunpack.c.3.s8 %v531
        %v1618 = vunpack.c.3.s8 %v532
        %v1619 = vunpack.c.0.s8 %v533
        %v1620 = vunpack.c.0.s8 %v534
        %v1621 = vunpack.c.0.s8 %v535
        %v1622 = vunpack.c.0.s8 %v536
        %v1623 = vunpack.c.0.s8 %v537
        %v1624 = vunpack.c.0.s8 %v538
        %v1625 = vunpack.c.1.s8 %v533
        %v1626 = vunpack.c.1.s8 %v534
        %v1627 = vunpack.c.1.s8 %v535
        %v1628 = vunpack.c.1.s8 %v536
        %v1629 = vunpack.c.1.s8 %v537
        %v1630 = vunpack.c.1.s8 %v538
        %v1631 = vunpack.c.2.s8 %v533
        %v1632 = vunpack.c.2.s8 %v534
        %v1633 = vunpack.c.2.s8 %v535
        %v1634 = vunpack.c.2.s8 %v536
        %v1635 = vunpack.c.2.s8 %v537
        %v1636 = vunpack.c.2.s8 %v538
        %v1637 = vunpack.c.3.s8 %v533
        %v1638 = vunpack.c.3.s8 %v534
        %v1639 = vunpack.c.3.s8 %v535
        %v1640 = vunpack.c.3.s8 %v536
        %v1641 = vunpack.c.3.s8 %v537
        %v1642 = vunpack.c.3.s8 %v538
        %v1643 = vunpack.c.0.s8 %v539
        %v1644 = vunpack.c.0.s8 %v540
        %v1645 = vunpack.c.0.s8 %v541
        %v1646 = vunpack.c.0.s8 %v542
        %v1647 = vunpack.c.0.s8 %v543
        %v1648 = vunpack.c.0.s8 %v544
        %v1649 = vunpack.c.1.s8 %v539
        %v1650 = vunpack.c.1.s8 %v540
        %v1651 = vunpack.c.1.s8 %v541
        %v1652 = vunpack.c.1.s8 %v542
        %v1653 = vunpack.c.1.s8 %v543
        %v1654 = vunpack.c.1.s8 %v544
        %v1655 = vunpack.c.2.s8 %v539
        %v1656 = vunpack.c.2.s8 %v540
        %v1657 = vunpack.c.2.s8 %v541
        %v1658 = vunpack.c.2.s8 %v542
        %v1659 = vunpack.c.2.s8 %v543
        %v1660 = vunpack.c.2.s8 %v544
        %v1661 = vunpack.c.3.s8 %v539
        %v1662 = vunpack.c.3.s8 %v540
        %v1663 = vunpack.c.3.s8 %v541
        %v1664 = vunpack.c.3.s8 %v542
        %v1665 = vunpack.c.3.s8 %v543
        %v1666 = vunpack.c.3.s8 %v544
        %v1667 = vunpack.c.0.s8 %v545
        %v1668 = vunpack.c.0.s8 %v546
        %v1669 = vunpack.c.0.s8 %v547
        %v1670 = vunpack.c.0.s8 %v548
        %v1671 = vunpack.c.0.s8 %v549
        %v1672 = vunpack.c.0.s8 %v550
        %v1673 = vunpack.c.1.s8 %v545
        %v1674 = vunpack.c.1.s8 %v546
        %v1675 = vunpack.c.1.s8 %v547
        %v1676 = vunpack.c.1.s8 %v548
        %v1677 = vunpack.c.1.s8 %v549
        %v1678 = vunpack.c.1.s8 %v550
        %v1679 = vunpack.c.2.s8 %v545
        %v1680 = vunpack.c.2.s8 %v546
        %v1681 = vunpack.c.2.s8 %v547
        %v1682 = vunpack.c.2.s8 %v548
        %v1683 = vunpack.c.2.s8 %v549
        %v1684 = vunpack.c.2.s8 %v550
        %v1685 = vunpack.c.3.s8 %v545
        %v1686 = vunpack.c.3.s8 %v546
        %v1687 = vunpack.c.3.s8 %v547
        %v1688 = vunpack.c.3.s8 %v548
        %v1689 = vunpack.c.3.s8 %v549
        %v1690 = vunpack.c.3.s8 %v550
        %v1691 = vunpack.c.0.s8 %v551
        %v1692 = vunpack.c.0.s8 %v552
        %v1693 = vunpack.c.0.s8 %v553
        %v1694 = vunpack.c.0.s8 %v554
        %v1695 = vunpack.c.0.s8 %v555
        %v1696 = vunpack.c.0.s8 %v556
        %v1697 = vunpack.c.1.s8 %v551
        %v1698 = vunpack.c.1.s8 %v552
        %v1699 = vunpack.c.1.s8 %v553
        %v1700 = vunpack.c.1.s8 %v554
        %v1701 = vunpack.c.1.s8 %v555
        %v1702 = vunpack.c.1.s8 %v556
        %v1703 = vunpack.c.2.s8 %v551
        %v1704 = vunpack.c.2.s8 %v552
        %v1705 = vunpack.c.2.s8 %v553
        %v1706 = vunpack.c.2.s8 %v554
        %v1707 = vunpack.c.2.s8 %v555
        %v1708 = vunpack.c.2.s8 %v556
        %v1709 = vunpack.c.3.s8 %v551
        %v1710 = vunpack.c.3.s8 %v552
        %v1711 = vunpack.c.3.s8 %v553
        %v1712 = vunpack.c.3.s8 %v554
        %v1713 = vunpack.c.3.s8 %v555
        %v1714 = vunpack.c.3.s8 %v556
        %v1715 = vunpack.c.0.s8 %v557
        %v1716 = vunpack.c.0.s8 %v558
        %v1717 = vunpack.c.0.s8 %v559
        %v1718 = vunpack.c.0.s8 %v560
        %v1719 = vunpack.c.0.s8 %v561
        %v1720 = vunpack.c.0.s8 %v562
        %v1721 = vunpack.c.1.s8 %v557
        %v1722 = vunpack.c.1.s8 %v558
        %v1723 = vunpack.c.1.s8 %v559
        %v1724 = vunpack.c.1.s8 %v560
        %v1725 = vunpack.c.1.s8 %v561
        %v1726 = vunpack.c.1.s8 %v562
        %v1727 = vunpack.c.2.s8 %v557
        %v1728 = vunpack.c.2.s8 %v558
        %v1729 = vunpack.c.2.s8 %v559
        %v1730 = vunpack.c.2.s8 %v560
        %v1731 = vunpack.c.2.s8 %v561
        %v1732 = vunpack.c.2.s8 %v562
        %v1733 = vunpack.c.3.s8 %v557
        %v1734 = vunpack.c.3.s8 %v558
        %v1735 = vunpack.c.3.s8 %v559
        %v1736 = vunpack.c.3.s8 %v560
        %v1737 = vunpack.c.3.s8 %v561
        %v1738 = vunpack.c.3.s8 %v562
        %v1739 = vunpack.c.0.s8 %v563
        %v1740 = vunpack.c.0.s8 %v564
        %v1741 = vunpack.c.0.s8 %v565
        %v1742 = vunpack.c.0.s8 %v566
        %v1743 = vunpack.c.0.s8 %v567
        %v1744 = vunpack.c.0.s8 %v568
        %v1745 = vunpack.c.1.s8 %v563
        %v1746 = vunpack.c.1.s8 %v564
        %v1747 = vunpack.c.1.s8 %v565
        %v1748 = vunpack.c.1.s8 %v566
        %v1749 = vunpack.c.1.s8 %v567
        %v1750 = vunpack.c.1.s8 %v568
        %v1751 = vunpack.c.2.s8 %v563
        %v1752 = vunpack.c.2.s8 %v564
        %v1753 = vunpack.c.2.s8 %v565
        %v1754 = vunpack.c.2.s8 %v566
        %v1755 = vunpack.c.2.s8 %v567
        %v1756 = vunpack.c.2.s8 %v568
        %v1757 = vunpack.c.3.s8 %v563
        %v1758 = vunpack.c.3.s8 %v564
        %v1759 = vunpack.c.3.s8 %v565
        %v1760 = vunpack.c.3.s8 %v566
        %v1761 = vunpack.c.3.s8 %v567
        %v1762 = vunpack.c.3.s8 %v568
        %v1763 = vunpack.c.0.s8 %v569
        %v1764 = vunpack.c.0.s8 %v570
        %v1765 = vunpack.c.0.s8 %v571
        %v1766 = vunpack.c.0.s8 %v572
        %v1767 = vunpack.c.0.s8 %v573
        %v1768 = vunpack.c.0.s8 %v574
        %v1769 = vunpack.c.1.s8 %v569
        %v1770 = vunpack.c.1.s8 %v570
        %v1771 = vunpack.c.1.s8 %v571
        %v1772 = vunpack.c.1.s8 %v572
        %v1773 = vunpack.c.1.s8 %v573
        %v1774 = vunpack.c.1.s8 %v574
        %v1775 = vunpack.c.2.s8 %v569
        %v1776 = vunpack.c.2.s8 %v570
        %v1777 = vunpack.c.2.s8 %v571
        %v1778 = vunpack.c.2.s8 %v572
        %v1779 = vunpack.c.2.s8 %v573
        %v1780 = vunpack.c.2.s8 %v574
        %v1781 = vunpack.c.3.s8 %v569
        %v1782 = vunpack.c.3.s8 %v570
        %v1783 = vunpack.c.3.s8 %v571
        %v1784 = vunpack.c.3.s8 %v572
        %v1785 = vunpack.c.3.s8 %v573
        %v1786 = vunpack.c.3.s8 %v574
        %v1787 = vunpack.c.0.s8 %v575
        %v1788 = vunpack.c.0.s8 %v576
        %v1789 = vunpack.c.0.s8 %v577
        %v1790 = vunpack.c.0.s8 %v578
        %v1791 = vunpack.c.0.s8 %v579
        %v1792 = vunpack.c.0.s8 %v580
        %v1793 = vunpack.c.1.s8 %v575
        %v1794 = vunpack.c.1.s8 %v576
        %v1795 = vunpack.c.1.s8 %v577
        %v1796 = vunpack.c.1.s8 %v578
        %v1797 = vunpack.c.1.s8 %v579
        %v1798 = vunpack.c.1.s8 %v580
        %v1799 = vunpack.c.2.s8 %v575
        %v1800 = vunpack.c.2.s8 %v576
        %v1801 = vunpack.c.2.s8 %v577
        %v1802 = vunpack.c.2.s8 %v578
        %v1803 = vunpack.c.2.s8 %v579
        %v1804 = vunpack.c.2.s8 %v580
        %v1805 = vunpack.c.3.s8 %v575
        %v1806 = vunpack.c.3.s8 %v576
        %v1807 = vunpack.c.3.s8 %v577
        %v1808 = vunpack.c.3.s8 %v578
        %v1809 = vunpack.c.3.s8 %v579
        %v1810 = vunpack.c.3.s8 %v580
        %v1811 = vunpack.c.0.s8 %v581
        %v1812 = vunpack.c.0.s8 %v582
        %v1813 = vunpack.c.0.s8 %v583
        %v1814 = vunpack.c.0.s8 %v584
        %v1815 = vunpack.c.0.s8 %v585
        %v1816 = vunpack.c.0.s8 %v586
        %v1817 = vunpack.c.1.s8 %v581
        %v1818 = vunpack.c.1.s8 %v582
        %v1819 = vunpack.c.1.s8 %v583
        %v1820 = vunpack.c.1.s8 %v584
        %v1821 = vunpack.c.1.s8 %v585
        %v1822 = vunpack.c.1.s8 %v586
        %v1823 = vunpack.c.2.s8 %v581
        %v1824 = vunpack.c.2.s8 %v582
        %v1825 = vunpack.c.2.s8 %v583
        %v1826 = vunpack.c.2.s8 %v584
        %v1827 = vunpack.c.2.s8 %v585
        %v1828 = vunpack.c.2.s8 %v586
        %v1829 = vunpack.c.3.s8 %v581
        %v1830 = vunpack.c.3.s8 %v582
        %v1831 = vunpack.c.3.s8 %v583
        %v1832 = vunpack.c.3.s8 %v584
        %v1833 = vunpack.c.3.s8 %v585
        %v1834 = vunpack.c.3.s8 %v586
        %v1835 = vunpack.c.0.s8 %v587
        %v1836 = vunpack.c.0.s8 %v588
        %v1837 = vunpack.c.0.s8 %v589
        %v1838 = vunpack.c.0.s8 %v590
        %v1839 = vunpack.c.0.s8 %v591
        %v1840 = vunpack.c.0.s8 %v592
        %v1841 = vunpack.c.1.s8 %v587
        %v1842 = vunpack.c.1.s8 %v588
        %v1843 = vunpack.c.1.s8 %v589
        %v1844 = vunpack.c.1.s8 %v590
        %v1845 = vunpack.c.1.s8 %v591
        %v1846 = vunpack.c.1.s8 %v592
        %v1847 = vunpack.c.2.s8 %v587
        %v1848 = vunpack.c.2.s8 %v588
        %v1849 = vunpack.c.2.s8 %v589
        %v1850 = vunpack.c.2.s8 %v590
        %v1851 = vunpack.c.2.s8 %v591
        %v1852 = vunpack.c.2.s8 %v592
        %v1853 = vunpack.c.3.s8 %v587
        %v1854 = vunpack.c.3.s8 %v588
        %v1855 = vunpack.c.3.s8 %v589
        %v1856 = vunpack.c.3.s8 %v590
        %v1857 = vunpack.c.3.s8 %v591
        %v1858 = vunpack.c.3.s8 %v592
        %v1859 = vunpack.c.0.s8 %v593
        %v1860 = vunpack.c.0.s8 %v594
        %v1861 = vunpack.c.0.s8 %v595
        %v1862 = vunpack.c.0.s8 %v596
        %v1863 = vunpack.c.0.s8 %v597
        %v1864 = vunpack.c.0.s8 %v598
        %v1865 = vunpack.c.1.s8 %v593
        %v1866 = vunpack.c.1.s8 %v594
        %v1867 = vunpack.c.1.s8 %v595
        %v1868 = vunpack.c.1.s8 %v596
        %v1869 = vunpack.c.1.s8 %v597
        %v1870 = vunpack.c.1.s8 %v598
        %v1871 = vunpack.c.2.s8 %v593
        %v1872 = vunpack.c.2.s8 %v594
        %v1873 = vunpack.c.2.s8 %v595
        %v1874 = vunpack.c.2.s8 %v596
        %v1875 = vunpack.c.2.s8 %v597
        %v1876 = vunpack.c.2.s8 %v598
        %v1877 = vunpack.c.3.s8 %v593
        %v1878 = vunpack.c.3.s8 %v594
        %v1879 = vunpack.c.3.s8 %v595
        %v1880 = vunpack.c.3.s8 %v596
        %v1881 = vunpack.c.3.s8 %v597
        %v1882 = vunpack.c.3.s8 %v598
        %v1883 = vunpack.c.0.s8 %v599
        %v1884 = vunpack.c.0.s8 %v600
        %v1885 = vunpack.c.0.s8 %v601
        %v1886 = vunpack.c.0.s8 %v602
        %v1887 = vunpack.c.0.s8 %v603
        %v1888 = vunpack.c.0.s8 %v604
        %v1889 = vunpack.c.1.s8 %v599
        %v1890 = vunpack.c.1.s8 %v600
        %v1891 = vunpack.c.1.s8 %v601
        %v1892 = vunpack.c.1.s8 %v602
        %v1893 = vunpack.c.1.s8 %v603
        %v1894 = vunpack.c.1.s8 %v604
        %v1895 = vunpack.c.2.s8 %v599
        %v1896 = vunpack.c.2.s8 %v600
        %v1897 = vunpack.c.2.s8 %v601
        %v1898 = vunpack.c.2.s8 %v602
        %v1899 = vunpack.c.2.s8 %v603
        %v1900 = vunpack.c.2.s8 %v604
        %v1901 = vunpack.c.3.s8 %v599
        %v1902 = vunpack.c.3.s8 %v600
        %v1903 = vunpack.c.3.s8 %v601
        %v1904 = vunpack.c.3.s8 %v602
        %v1905 = vunpack.c.3.s8 %v603
        %v1906 = vunpack.c.3.s8 %v604
        %v1907 = vunpack.c.0.s8 %v605
        %v1908 = vunpack.c.0.s8 %v606
        %v1909 = vunpack.c.0.s8 %v607
        %v1910 = vunpack.c.0.s8 %v608
        %v1911 = vunpack.c.0.s8 %v609
        %v1912 = vunpack.c.0.s8 %v610
        %v1913 = vunpack.c.1.s8 %v605
        %v1914 = vunpack.c.1.s8 %v606
        %v1915 = vunpack.c.1.s8 %v607
        %v1916 = vunpack.c.1.s8 %v608
        %v1917 = vunpack.c.1.s8 %v609
        %v1918 = vunpack.c.1.s8 %v610
        %v1919 = vunpack.c.2.s8 %v605
        %v1920 = vunpack.c.2.s8 %v606
        %v1921 = vunpack.c.2.s8 %v607
        %v1922 = vunpack.c.2.s8 %v608
        %v1923 = vunpack.c.2.s8 %v609
        %v1924 = vunpack.c.2.s8 %v610
        %v1925 = vunpack.c.3.s8 %v605
        %v1926 = vunpack.c.3.s8 %v606
        %v1927 = vunpack.c.3.s8 %v607
        %v1928 = vunpack.c.3.s8 %v608
        %v1929 = vunpack.c.3.s8 %v609
        %v1930 = vunpack.c.3.s8 %v610
        %v1931 = vunpack.c.0.s8 %v611
        %v1932 = vunpack.c.0.s8 %v612
        %v1933 = vunpack.c.0.s8 %v613
        %v1934 = vunpack.c.0.s8 %v614
        %v1935 = vunpack.c.0.s8 %v615
        %v1936 = vunpack.c.0.s8 %v616
        %v1937 = vunpack.c.1.s8 %v611
        %v1938 = vunpack.c.1.s8 %v612
        %v1939 = vunpack.c.1.s8 %v613
        %v1940 = vunpack.c.1.s8 %v614
        %v1941 = vunpack.c.1.s8 %v615
        %v1942 = vunpack.c.1.s8 %v616
        %v1943 = vunpack.c.2.s8 %v611
        %v1944 = vunpack.c.2.s8 %v612
        %v1945 = vunpack.c.2.s8 %v613
        %v1946 = vunpack.c.2.s8 %v614
        %v1947 = vunpack.c.2.s8 %v615
        %v1948 = vunpack.c.2.s8 %v616
        %v1949 = vunpack.c.3.s8 %v611
        %v1950 = vunpack.c.3.s8 %v612
        %v1951 = vunpack.c.3.s8 %v613
        %v1952 = vunpack.c.3.s8 %v614
        %v1953 = vunpack.c.3.s8 %v615
        %v1954 = vunpack.c.3.s8 %v616
        %v1955 = vunpack.c.0.s8 %v617
        %v1956 = vunpack.c.0.s8 %v618
        %v1957 = vunpack.c.0.s8 %v619
        %v1958 = vunpack.c.0.s8 %v620
        %v1959 = vunpack.c.0.s8 %v621
        %v1960 = vunpack.c.0.s8 %v622
        %v1961 = vunpack.c.1.s8 %v617
        %v1962 = vunpack.c.1.s8 %v618
        %v1963 = vunpack.c.1.s8 %v619
        %v1964 = vunpack.c.1.s8 %v620
        %v1965 = vunpack.c.1.s8 %v621
        %v1966 = vunpack.c.1.s8 %v622
        %v1967 = vunpack.c.2.s8 %v617
        %v1968 = vunpack.c.2.s8 %v618
        %v1969 = vunpack.c.2.s8 %v619
        %v1970 = vunpack.c.2.s8 %v620
        %v1971 = vunpack.c.2.s8 %v621
        %v1972 = vunpack.c.2.s8 %v622
        %v1973 = vunpack.c.3.s8 %v617
        %v1974 = vunpack.c.3.s8 %v618
        %v1975 = vunpack.c.3.s8 %v619
        %v1976 = vunpack.c.3.s8 %v620
        %v1977 = vunpack.c.3.s8 %v621
        %v1978 = vunpack.c.3.s8 %v622
        %v1979 = vunpack.c.0.s8 %v623
        %v1980 = vunpack.c.0.s8 %v624
        %v1981 = vunpack.c.0.s8 %v625
        %v1982 = vunpack.c.0.s8 %v626
        %v1983 = vunpack.c.0.s8 %v627
        %v1984 = vunpack.c.0.s8 %v628
        %v1985 = vunpack.c.1.s8 %v623
        %v1986 = vunpack.c.1.s8 %v624
        %v1987 = vunpack.c.1.s8 %v625
        %v1988 = vunpack.c.1.s8 %v626
        %v1989 = vunpack.c.1.s8 %v627
        %v1990 = vunpack.c.1.s8 %v628
        %v1991 = vunpack.c.2.s8 %v623
        %v1992 = vunpack.c.2.s8 %v624
        %v1993 = vunpack.c.2.s8 %v625
        %v1994 = vunpack.c.2.s8 %v626
        %v1995 = vunpack.c.2.s8 %v627
        %v1996 = vunpack.c.2.s8 %v628
        %v1997 = vunpack.c.3.s8 %v623
        %v1998 = vunpack.c.3.s8 %v624
        %v1999 = vunpack.c.3.s8 %v625
        %v2000 = vunpack.c.3.s8 %v626
        %v2001 = vunpack.c.3.s8 %v627
        %v2002 = vunpack.c.3.s8 %v628
        %v2003 = vunpack.c.0.s8 %v629
        %v2004 = vunpack.c.0.s8 %v630
        %v2005 = vunpack.c.0.s8 %v631
        %v2006 = vunpack.c.0.s8 %v632
        %v2007 = vunpack.c.0.s8 %v633
        %v2008 = vunpack.c.0.s8 %v634
        %v2009 = vunpack.c.1.s8 %v629
        %v2010 = vunpack.c.1.s8 %v630
        %v2011 = vunpack.c.1.s8 %v631
        %v2012 = vunpack.c.1.s8 %v632
        %v2013 = vunpack.c.1.s8 %v633
        %v2014 = vunpack.c.1.s8 %v634
        %v2015 = vunpack.c.2.s8 %v629
        %v2016 = vunpack.c.2.s8 %v630
        %v2017 = vunpack.c.2.s8 %v631
        %v2018 = vunpack.c.2.s8 %v632
        %v2019 = vunpack.c.2.s8 %v633
        %v2020 = vunpack.c.2.s8 %v634
        %v2021 = vunpack.c.3.s8 %v629
        %v2022 = vunpack.c.3.s8 %v630
        %v2023 = vunpack.c.3.s8 %v631
        %v2024 = vunpack.c.3.s8 %v632
        %v2025 = vunpack.c.3.s8 %v633
        %v2026 = vunpack.c.3.s8 %v634
        %v2027 = vunpack.c.0.s8 %v635
        %v2028 = vunpack.c.0.s8 %v636
        %v2029 = vunpack.c.0.s8 %v637
        %v2030 = vunpack.c.0.s8 %v638
        %v2031 = vunpack.c.0.s8 %v639
        %v2032 = vunpack.c.0.s8 %v640
        %v2033 = vunpack.c.1.s8 %v635
        %v2034 = vunpack.c.1.s8 %v636
        %v2035 = vunpack.c.1.s8 %v637
        %v2036 = vunpack.c.1.s8 %v638
        %v2037 = vunpack.c.1.s8 %v639
        %v2038 = vunpack.c.1.s8 %v640
        %v2039 = vunpack.c.2.s8 %v635
        %v2040 = vunpack.c.2.s8 %v636
        %v2041 = vunpack.c.2.s8 %v637
        %v2042 = vunpack.c.2.s8 %v638
        %v2043 = vunpack.c.2.s8 %v639
        %v2044 = vunpack.c.2.s8 %v640
        %v2045 = vunpack.c.3.s8 %v635
        %v2046 = vunpack.c.3.s8 %v636
        %v2047 = vunpack.c.3.s8 %v637
        %v2048 = vunpack.c.3.s8 %v638
        %v2049 = vunpack.c.3.s8 %v639
        %v2050 = vunpack.c.3.s8 %v640
        %v2051 = vunpack.c.0.s8 %v641
        %v2052 = vunpack.c.0.s8 %v642
        %v2053 = vunpack.c.0.s8 %v643
        %v2054 = vunpack.c.0.s8 %v644
        %v2055 = vunpack.c.0.s8 %v645
        %v2056 = vunpack.c.0.s8 %v646
        %v2057 = vunpack.c.1.s8 %v641
        %v2058 = vunpack.c.1.s8 %v642
        %v2059 = vunpack.c.1.s8 %v643
        %v2060 = vunpack.c.1.s8 %v644
        %v2061 = vunpack.c.1.s8 %v645
        %v2062 = vunpack.c.1.s8 %v646
        %v2063 = vunpack.c.2.s8 %v641
        %v2064 = vunpack.c.2.s8 %v642
        %v2065 = vunpack.c.2.s8 %v643
        %v2066 = vunpack.c.2.s8 %v644
        %v2067 = vunpack.c.2.s8 %v645
        %v2068 = vunpack.c.2.s8 %v646
        %v2069 = vunpack.c.3.s8 %v641
        %v2070 = vunpack.c.3.s8 %v642
        %v2071 = vunpack.c.3.s8 %v643
        %v2072 = vunpack.c.3.s8 %v644
        %v2073 = vunpack.c.3.s8 %v645
        %v2074 = vunpack.c.3.s8 %v646
        %v2075 = vunpack.c.0.s8 %v647
        %v2076 = vunpack.c.0.s8 %v648
        %v2077 = vunpack.c.0.s8 %v649
        %v2078 = vunpack.c.0.s8 %v650
        %v2079 = vunpack.c.0.s8 %v651
        %v2080 = vunpack.c.0.s8 %v652
        %v2081 = vunpack.c.1.s8 %v647
        %v2082 = vunpack.c.1.s8 %v648
        %v2083 = vunpack.c.1.s8 %v649
        %v2084 = vunpack.c.1.s8 %v650
        %v2085 = vunpack.c.1.s8 %v651
        %v2086 = vunpack.c.1.s8 %v652
        %v2087 = vunpack.c.2.s8 %v647
        %v2088 = vunpack.c.2.s8 %v648
        %v2089 = vunpack.c.2.s8 %v649
        %v2090 = vunpack.c.2.s8 %v650
        %v2091 = vunpack.c.2.s8 %v651
        %v2092 = vunpack.c.2.s8 %v652
        %v2093 = vunpack.c.3.s8 %v647
        %v2094 = vunpack.c.3.s8 %v648
        %v2095 = vunpack.c.3.s8 %v649
        %v2096 = vunpack.c.3.s8 %v650
        %v2097 = vunpack.c.3.s8 %v651
        %v2098 = vunpack.c.3.s8 %v652
        %v2099 = vunpack.c.0.s8 %v653
        %v2100 = vunpack.c.0.s8 %v654
        %v2101 = vunpack.c.0.s8 %v655
        %v2102 = vunpack.c.0.s8 %v656
        %v2103 = vunpack.c.0.s8 %v657
        %v2104 = vunpack.c.0.s8 %v658
        %v2105 = vunpack.c.1.s8 %v653
        %v2106 = vunpack.c.1.s8 %v654
        %v2107 = vunpack.c.1.s8 %v655
        %v2108 = vunpack.c.1.s8 %v656
        %v2109 = vunpack.c.1.s8 %v657
        %v2110 = vunpack.c.1.s8 %v658
        %v2111 = vunpack.c.2.s8 %v653
        %v2112 = vunpack.c.2.s8 %v654
        %v2113 = vunpack.c.2.s8 %v655
        %v2114 = vunpack.c.2.s8 %v656
        %v2115 = vunpack.c.2.s8 %v657
        %v2116 = vunpack.c.2.s8 %v658
        %v2117 = vunpack.c.3.s8 %v653
        %v2118 = vunpack.c.3.s8 %v654
        %v2119 = vunpack.c.3.s8 %v655
        %v2120 = vunpack.c.3.s8 %v656
        %v2121 = vunpack.c.3.s8 %v657
        %v2122 = vunpack.c.3.s8 %v658
        %v2123 = vunpack.c.0.s8 %v659
        %v2124 = vunpack.c.0.s8 %v660
        %v2125 = vunpack.c.0.s8 %v661
        %v2126 = vunpack.c.0.s8 %v662
        %v2127 = vunpack.c.0.s8 %v663
        %v2128 = vunpack.c.0.s8 %v664
        %v2129 = vunpack.c.1.s8 %v659
        %v2130 = vunpack.c.1.s8 %v660
        %v2131 = vunpack.c.1.s8 %v661
        %v2132 = vunpack.c.1.s8 %v662
        %v2133 = vunpack.c.1.s8 %v663
        %v2134 = vunpack.c.1.s8 %v664
        %v2135 = vunpack.c.2.s8 %v659
        %v2136 = vunpack.c.2.s8 %v660
        %v2137 = vunpack.c.2.s8 %v661
        %v2138 = vunpack.c.2.s8 %v662
        %v2139 = vunpack.c.2.s8 %v663
        %v2140 = vunpack.c.2.s8 %v664
        %v2141 = vunpack.c.3.s8 %v659
        %v2142 = vunpack.c.3.s8 %v660
        %v2143 = vunpack.c.3.s8 %v661
        %v2144 = vunpack.c.3.s8 %v662
        %v2145 = vunpack.c.3.s8 %v663
        %v2146 = vunpack.c.3.s8 %v664
        %v2147 = vunpack.c.0.s8 %v665
        %v2148 = vunpack.c.0.s8 %v666
        %v2149 = vunpack.c.0.s8 %v667
        %v2150 = vunpack.c.0.s8 %v668
        %v2151 = vunpack.c.0.s8 %v669
        %v2152 = vunpack.c.0.s8 %v670
        %v2153 = vunpack.c.1.s8 %v665
        %v2154 = vunpack.c.1.s8 %v666
        %v2155 = vunpack.c.1.s8 %v667
        %v2156 = vunpack.c.1.s8 %v668
        %v2157 = vunpack.c.1.s8 %v669
        %v2158 = vunpack.c.1.s8 %v670
        %v2159 = vunpack.c.2.s8 %v665
        %v2160 = vunpack.c.2.s8 %v666
        %v2161 = vunpack.c.2.s8 %v667
        %v2162 = vunpack.c.2.s8 %v668
        %v2163 = vunpack.c.2.s8 %v669
        %v2164 = vunpack.c.2.s8 %v670
        %v2165 = vunpack.c.3.s8 %v665
        %v2166 = vunpack.c.3.s8 %v666
        %v2167 = vunpack.c.3.s8 %v667
        %v2168 = vunpack.c.3.s8 %v668
        %v2169 = vunpack.c.3.s8 %v669
        %v2170 = vunpack.c.3.s8 %v670
        %v2171 = vunpack.c.0.s8 %v671
        %v2172 = vunpack.c.0.s8 %v672
        %v2173 = vunpack.c.0.s8 %v673
        %v2174 = vunpack.c.0.s8 %v674
        %v2175 = vunpack.c.0.s8 %v675
        %v2176 = vunpack.c.0.s8 %v676
        %v2177 = vunpack.c.1.s8 %v671
        %v2178 = vunpack.c.1.s8 %v672
        %v2179 = vunpack.c.1.s8 %v673
        %v2180 = vunpack.c.1.s8 %v674
        %v2181 = vunpack.c.1.s8 %v675
        %v2182 = vunpack.c.1.s8 %v676
        %v2183 = vunpack.c.2.s8 %v671
        %v2184 = vunpack.c.2.s8 %v672
        %v2185 = vunpack.c.2.s8 %v673
        %v2186 = vunpack.c.2.s8 %v674
        %v2187 = vunpack.c.2.s8 %v675
        %v2188 = vunpack.c.2.s8 %v676
        %v2189 = vunpack.c.3.s8 %v671
        %v2190 = vunpack.c.3.s8 %v672
        %v2191 = vunpack.c.3.s8 %v673
        %v2192 = vunpack.c.3.s8 %v674
        %v2193 = vunpack.c.3.s8 %v675
        %v2194 = vunpack.c.3.s8 %v676
        %v2195 = vunpack.c.0.s8 %v677
        %v2196 = vunpack.c.0.s8 %v678
        %v2197 = vunpack.c.0.s8 %v679
        %v2198 = vunpack.c.0.s8 %v680
        %v2199 = vunpack.c.0.s8 %v681
        %v2200 = vunpack.c.0.s8 %v682
        %v2201 = vunpack.c.1.s8 %v677
        %v2202 = vunpack.c.1.s8 %v678
        %v2203 = vunpack.c.1.s8 %v679
        %v2204 = vunpack.c.1.s8 %v680
        %v2205 = vunpack.c.1.s8 %v681
        %v2206 = vunpack.c.1.s8 %v682
        %v2207 = vunpack.c.2.s8 %v677
        %v2208 = vunpack.c.2.s8 %v678
        %v2209 = vunpack.c.2.s8 %v679
        %v2210 = vunpack.c.2.s8 %v680
        %v2211 = vunpack.c.2.s8 %v681
        %v2212 = vunpack.c.2.s8 %v682
        %v2213 = vunpack.c.3.s8 %v677
        %v2214 = vunpack.c.3.s8 %v678
        %v2215 = vunpack.c.3.s8 %v679
        %v2216 = vunpack.c.3.s8 %v680
        %v2217 = vunpack.c.3.s8 %v681
        %v2218 = vunpack.c.3.s8 %v682
        %v2219 = vcvt.s32.f32 %v683
        %v2220 = vcvt.s32.f32 %v684
        %v2221 = vcvt.s32.f32 %v685
        %v2222 = vcvt.s32.f32 %v686
        %v2223 = vcvt.s32.f32 %v687
        %v2224 = vcvt.s32.f32 %v688
        %v2225 = vcvt.s32.f32 %v689
        %v2226 = vcvt.s32.f32 %v690
        %v2227 = vcvt.s32.f32 %v691
        %v2228 = vcvt.s32.f32 %v692
        %v2229 = vcvt.s32.f32 %v693
        %v2230 = vcvt.s32.f32 %v694
        %v2231 = vcvt.s32.f32 %v695
        %v2232 = vcvt.s32.f32 %v696
        %v2233 = vcvt.s32.f32 %v697
        %v2234 = vcvt.s32.f32 %v698
        %v2235 = vcvt.s32.f32 %v699
        %v2236 = vcvt.s32.f32 %v700
        %v2237 = vcvt.s32.f32 %v701
        %v2238 = vcvt.s32.f32 %v702
        %v2239 = vcvt.s32.f32 %v703
        %v2240 = vcvt.s32.f32 %v704
        %v2241 = vcvt.s32.f32 %v705
        %v2242 = vcvt.s32.f32 %v706
        %v2243 = vcvt.s32.f32 %v707
        %v2244 = vcvt.s32.f32 %v708
        %v2245 = vcvt.s32.f32 %v709
        %v2246 = vcvt.s32.f32 %v710
        %v2247 = vcvt.s32.f32 %v711
        %v2248 = vcvt.s32.f32 %v712
        %v2249 = vcvt.s32.f32 %v713
        %v2250 = vcvt.s32.f32 %v714
        %v2251 = vcvt.s32.f32 %v715
        %v2252 = vcvt.s32.f32 %v716
        %v2253 = vcvt.s32.f32 %v717
        %v2254 = vcvt.s32.f32 %v718
        %v2255 = vcvt.s32.f32 %v719
        %v2256 = vcvt.s32.f32 %v720
        %v2257 = vcvt.s32.f32 %v721
        %v2258 = vcvt.s32.f32 %v722
        %v2259 = vcvt.s32.f32 %v723
        %v2260 = vcvt.s32.f32 %v724
        %v2261 = vcvt.s32.f32 %v725
        %v2262 = vcvt.s32.f32 %v726
        %v2263 = vcvt.s32.f32 %v727
        %v2264 = vcvt.s32.f32 %v728
        %v2265 = vcvt.s32.f32 %v729
        %v2266 = vcvt.s32.f32 %v730
        %v2267 = vcvt.s32.f32 %v731
        %v2268 = vcvt.s32.f32 %v732
        %v2269 = vcvt.s32.f32 %v733
        %v2270 = vcvt.s32.f32 %v734
        %v2271 = vcvt.s32.f32 %v735
        %v2272 = vcvt.s32.f32 %v736
        %v2273 = vcvt.s32.f32 %v737
        %v2274 = vcvt.s32.f32 %v738
        %v2275 = vcvt.s32.f32 %v739
        %v2276 = vcvt.s32.f32 %v740
        %v2277 = vcvt.s32.f32 %v741
        %v2278 = vcvt.s32.f32 %v742
        %v2279 = vcvt.s32.f32 %v743
        %v2280 = vcvt.s32.f32 %v744
        %v2281 = vcvt.s32.f32 %v745
        %v2282 = vcvt.s32.f32 %v746
        %v2283 = vcvt.s32.f32 %v747
        %v2284 = vcvt.s32.f32 %v748
        %v2285 = vcvt.s32.f32 %v749
        %v2286 = vcvt.s32.f32 %v750
        %v2287 = vcvt.s32.f32 %v751
        %v2288 = vcvt.s32.f32 %v752
        %v2289 = vcvt.s32.f32 %v753
        %v2290 = vcvt.s32.f32 %v754
        %v2291 = vcvt.s32.f32 %v755
        %v2292 = vcvt.s32.f32 %v756
        %v2293 = vcvt.s32.f32 %v757
        %v2294 = vcvt.s32.f32 %v758
        %v2295 = vcvt.s32.f32 %v759
        %v2296 = vcvt.s32.f32 %v760
        %v2297 = vcvt.s32.f32 %v761
        %v2298 = vcvt.s32.f32 %v762
        %v2299 = vcvt.s32.f32 %v763
        %v2300 = vcvt.s32.f32 %v764
        %v2301 = vcvt.s32.f32 %v765
        %v2302 = vcvt.s32.f32 %v766
        %v2303 = vcvt.s32.f32 %v767
        %v2304 = vcvt.s32.f32 %v768
        %v2305 = vcvt.s32.f32 %v769
        %v2306 = vcvt.s32.f32 %v770
        %v2307 = vcvt.s32.f32 %v771
        %v2308 = vcvt.s32.f32 %v772
        %v2309 = vcvt.s32.f32 %v773
        %v2310 = vcvt.s32.f32 %v774
        %v2311 = vcvt.s32.f32 %v775
        %v2312 = vcvt.s32.f32 %v776
        %v2313 = vcvt.s32.f32 %v777
        %v2314 = vcvt.s32.f32 %v778
        %v2315 = vcvt.s32.f32 %v779
        %v2316 = vcvt.s32.f32 %v780
        %v2317 = vcvt.s32.f32 %v781
        %v2318 = vcvt.s32.f32 %v782
        %v2319 = vcvt.s32.f32 %v783
        %v2320 = vcvt.s32.f32 %v784
        %v2321 = vcvt.s32.f32 %v785
        %v2322 = vcvt.s32.f32 %v786
        %v2323 = vcvt.s32.f32 %v787
        %v2324 = vcvt.s32.f32 %v788
        %v2325 = vcvt.s32.f32 %v789
        %v2326 = vcvt.s32.f32 %v790
        %v2327 = vcvt.s32.f32 %v791
        %v2328 = vcvt.s32.f32 %v792
        %v2329 = vcvt.s32.f32 %v793
        %v2330 = vcvt.s32.f32 %v794
        %v2331 = vcvt.s32.f32 %v795
        %v2332 = vcvt.s32.f32 %v796
        %v2333 = vcvt.s32.f32 %v797
        %v2334 = vcvt.s32.f32 %v798
        %v2335 = vcvt.s32.f32 %v799
        %v2336 = vcvt.s32.f32 %v800
        %v2337 = vcvt.s32.f32 %v801
        %v2338 = vcvt.s32.f32 %v802
        %v2339 = vcvt.s32.f32 %v803
        %v2340 = vcvt.s32.f32 %v804
        %v2341 = vcvt.s32.f32 %v805
        %v2342 = vcvt.s32.f32 %v806
        %v2343 = vcvt.s32.f32 %v807
        %v2344 = vcvt.s32.f32 %v808
        %v2345 = vcvt.s32.f32 %v809
        %v2346 = vcvt.s32.f32 %v810
        %v2347 = vcvt.s32.f32 %v811
        %v2348 = vcvt.s32.f32 %v812
        %v2349 = vcvt.s32.f32 %v813
        %v2350 = vcvt.s32.f32 %v814
        %v2351 = vcvt.s32.f32 %v815
        %v2352 = vcvt.s32.f32 %v816
        %v2353 = vcvt.s32.f32 %v817
        %v2354 = vcvt.s32.f32 %v818
        %v2355 = vcvt.s32.f32 %v819
        %v2356 = vcvt.s32.f32 %v820
        %v2357 = vcvt.s32.f32 %v821
        %v2358 = vcvt.s32.f32 %v822
        %v2359 = vcvt.s32.f32 %v823
        %v2360 = vcvt.s32.f32 %v824
        %v2361 = vcvt.s32.f32 %v825
        %v2362 = vcvt.s32.f32 %v826
        %v2363 = vcvt.s32.f32 %v827
        %v2364 = vcvt.s32.f32 %v828
        %v2365 = vcvt.s32.f32 %v829
        %v2366 = vcvt.s32.f32 %v830
        %v2367 = vcvt.s32.f32 %v831
        %v2368 = vcvt.s32.f32 %v832
        %v2369 = vcvt.s32.f32 %v833
        %v2370 = vcvt.s32.f32 %v834
        %v2371 = vcvt.s32.f32 %v835
        %v2372 = vcvt.s32.f32 %v836
        %v2373 = vcvt.s32.f32 %v837
        %v2374 = vcvt.s32.f32 %v838
        %v2375 = vcvt.s32.f32 %v839
        %v2376 = vcvt.s32.f32 %v840
        %v2377 = vcvt.s32.f32 %v841
        %v2378 = vcvt.s32.f32 %v842
        %v2379 = vcvt.s32.f32 %v843
        %v2380 = vcvt.s32.f32 %v844
        %v2381 = vcvt.s32.f32 %v845
        %v2382 = vcvt.s32.f32 %v846
        %v2383 = vcvt.s32.f32 %v847
        %v2384 = vcvt.s32.f32 %v848
        %v2385 = vcvt.s32.f32 %v849
        %v2386 = vcvt.s32.f32 %v850
        %v2387 = vcvt.s32.f32 %v851
        %v2388 = vcvt.s32.f32 %v852
        %v2389 = vcvt.s32.f32 %v853
        %v2390 = vcvt.s32.f32 %v854
        %v2391 = vcvt.s32.f32 %v855
        %v2392 = vcvt.s32.f32 %v856
        %v2393 = vcvt.s32.f32 %v857
        %v2394 = vcvt.s32.f32 %v858
        %v2395 = vcvt.s32.f32 %v859
        %v2396 = vcvt.s32.f32 %v860
        %v2397 = vcvt.s32.f32 %v861
        %v2398 = vcvt.s32.f32 %v862
        %v2399 = vcvt.s32.f32 %v863
        %v2400 = vcvt.s32.f32 %v864
        %v2401 = vcvt.s32.f32 %v865
        %v2402 = vcvt.s32.f32 %v866
        %v2403 = vcvt.s32.f32 %v867
        %v2404 = vcvt.s32.f32 %v868
        %v2405 = vcvt.s32.f32 %v869
        %v2406 = vcvt.s32.f32 %v870
        %v2407 = vcvt.s32.f32 %v871
        %v2408 = vcvt.s32.f32 %v872
        %v2409 = vcvt.s32.f32 %v873
        %v2410 = vcvt.s32.f32 %v874
        %v2411 = vcvt.s32.f32 %v875
        %v2412 = vcvt.s32.f32 %v876
        %v2413 = vcvt.s32.f32 %v877
        %v2414 = vcvt.s32.f32 %v878
        %v2415 = vcvt.s32.f32 %v879
        %v2416 = vcvt.s32.f32 %v880
        %v2417 = vcvt.s32.f32 %v881
        %v2418 = vcvt.s32.f32 %v882
        %v2419 = vcvt.s32.f32 %v883
        %v2420 = vcvt.s32.f32 %v884
        %v2421 = vcvt.s32.f32 %v885
        %v2422 = vcvt.s32.f32 %v886
        %v2423 = vcvt.s32.f32 %v887
        %v2424 = vcvt.s32.f32 %v888
        %v2425 = vcvt.s32.f32 %v889
        %v2426 = vcvt.s32.f32 %v890
        %v2427 = vcvt.s32.f32 %v891
        %v2428 = vcvt.s32.f32 %v892
        %v2429 = vcvt.s32.f32 %v893
        %v2430 = vcvt.s32.f32 %v894
        %v2431 = vcvt.s32.f32 %v895
        %v2432 = vcvt.s32.f32 %v896
        %v2433 = vcvt.s32.f32 %v897
        %v2434 = vcvt.s32.f32 %v898
        %v2435 = vcvt.s32.f32 %v899
        %v2436 = vcvt.s32.f32 %v900
        %v2437 = vcvt.s32.f32 %v901
        %v2438 = vcvt.s32.f32 %v902
        %v2439 = vcvt.s32.f32 %v903
        %v2440 = vcvt.s32.f32 %v904
        %v2441 = vcvt.s32.f32 %v905
        %v2442 = vcvt.s32.f32 %v906
        %v2443 = vcvt.s32.f32 %v907
        %v2444 = vcvt.s32.f32 %v908
        %v2445 = vcvt.s32.f32 %v909
        %v2446 = vcvt.s32.f32 %v910
        %v2447 = vcvt.s32.f32 %v911
        %v2448 = vcvt.s32.f32 %v912
        %v2449 = vcvt.s32.f32 %v913
        %v2450 = vcvt.s32.f32 %v914
        %v2451 = vcvt.s32.f32 %v915
        %v2452 = vcvt.s32.f32 %v916
        %v2453 = vcvt.s32.f32 %v917
        %v2454 = vcvt.s32.f32 %v918
        %v2455 = vcvt.s32.f32 %v919
        %v2456 = vcvt.s32.f32 %v920
        %v2457 = vcvt.s32.f32 %v921
        %v2458 = vcvt.s32.f32 %v922
        %v2459 = vcvt.s32.f32 %v923
        %v2460 = vcvt.s32.f32 %v924
        %v2461 = vcvt.s32.f32 %v925
        %v2462 = vcvt.s32.f32 %v926
        %v2463 = vcvt.s32.f32 %v927
        %v2464 = vcvt.s32.f32 %v928
        %v2465 = vcvt.s32.f32 %v929
        %v2466 = vcvt.s32.f32 %v930
        %v2467 = vcvt.s32.f32 %v931
        %v2468 = vcvt.s32.f32 %v932
        %v2469 = vcvt.s32.f32 %v933
        %v2470 = vcvt.s32.f32 %v934
        %v2471 = vcvt.s32.f32 %v935
        %v2472 = vcvt.s32.f32 %v936
        %v2473 = vcvt.s32.f32 %v937
        %v2474 = vcvt.s32.f32 %v938
        %v2475 = vcvt.s32.f32 %v939
        %v2476 = vcvt.s32.f32 %v940
        %v2477 = vcvt.s32.f32 %v941
        %v2478 = vcvt.s32.f32 %v942
        %v2479 = vcvt.s32.f32 %v943
        %v2480 = vcvt.s32.f32 %v944
        %v2481 = vcvt.s32.f32 %v945
        %v2482 = vcvt.s32.f32 %v946
        %v2483 = vcvt.s32.f32 %v947
        %v2484 = vcvt.s32.f32 %v948
        %v2485 = vcvt.s32.f32 %v949
        %v2486 = vcvt.s32.f32 %v950
        %v2487 = vcvt.s32.f32 %v951
        %v2488 = vcvt.s32.f32 %v952
        %v2489 = vcvt.s32.f32 %v953
        %v2490 = vcvt.s32.f32 %v954
        %v2491 = vcvt.s32.f32 %v955
        %v2492 = vcvt.s32.f32 %v956
        %v2493 = vcvt.s32.f32 %v957
        %v2494 = vcvt.s32.f32 %v958
        %v2495 = vcvt.s32.f32 %v959
        %v2496 = vcvt.s32.f32 %v960
        %v2497 = vcvt.s32.f32 %v961
        %v2498 = vcvt.s32.f32 %v962
        %v2499 = vcvt.s32.f32 %v963
        %v2500 = vcvt.s32.f32 %v964
        %v2501 = vcvt.s32.f32 %v965
        %v2502 = vcvt.s32.f32 %v966
        %v2503 = vcvt.s32.f32 %v967
        %v2504 = vcvt.s32.f32 %v968
        %v2505 = vcvt.s32.f32 %v969
        %v2506 = vcvt.s32.f32 %v970
        %v2507 = vcvt.s32.f32 %v971
        %v2508 = vcvt.s32.f32 %v972
        %v2509 = vcvt.s32.f32 %v973
        %v2510 = vcvt.s32.f32 %v974
        %v2511 = vcvt.s32.f32 %v975
        %v2512 = vcvt.s32.f32 %v976
        %v2513 = vcvt.s32.f32 %v977
        %v2514 = vcvt.s32.f32 %v978
        %v2515 = vcvt.s32.f32 %v979
        %v2516 = vcvt.s32.f32 %v980
        %v2517 = vcvt.s32.f32 %v981
        %v2518 = vcvt.s32.f32 %v982
        %v2519 = vcvt.s32.f32 %v983
        %v2520 = vcvt.s32.f32 %v984
        %v2521 = vcvt.s32.f32 %v985
        %v2522 = vcvt.s32.f32 %v986
        %v2523 = vcvt.s32.f32 %v987
        %v2524 = vcvt.s32.f32 %v988
        %v2525 = vcvt.s32.f32 %v989
        %v2526 = vcvt.s32.f32 %v990
        %v2527 = vcvt.s32.f32 %v991
        %v2528 = vcvt.s32.f32 %v992
        %v2529 = vcvt.s32.f32 %v993
        %v2530 = vcvt.s32.f32 %v994
        %v2531 = vcvt.s32.f32 %v995
        %v2532 = vcvt.s32.f32 %v996
        %v2533 = vcvt.s32.f32 %v997
        %v2534 = vcvt.s32.f32 %v998
        %v2535 = vcvt.s32.f32 %v999
        %v2536 = vcvt.s32.f32 %v1000
        %v2537 = vcvt.s32.f32 %v1001
        %v2538 = vcvt.s32.f32 %v1002
        %v2539 = vcvt.s32.f32 %v1003
        %v2540 = vcvt.s32.f32 %v1004
        %v2541 = vcvt.s32.f32 %v1005
        %v2542 = vcvt.s32.f32 %v1006
        %v2543 = vcvt.s32.f32 %v1007
        %v2544 = vcvt.s32.f32 %v1008
        %v2545 = vcvt.s32.f32 %v1009
        %v2546 = vcvt.s32.f32 %v1010
        %v2547 = vcvt.s32.f32 %v1011
        %v2548 = vcvt.s32.f32 %v1012
        %v2549 = vcvt.s32.f32 %v1013
        %v2550 = vcvt.s32.f32 %v1014
        %v2551 = vcvt.s32.f32 %v1015
        %v2552 = vcvt.s32.f32 %v1016
        %v2553 = vcvt.s32.f32 %v1017
        %v2554 = vcvt.s32.f32 %v1018
        %v2555 = vcvt.s32.f32 %v1019
        %v2556 = vcvt.s32.f32 %v1020
        %v2557 = vcvt.s32.f32 %v1021
        %v2558 = vcvt.s32.f32 %v1022
        %v2559 = vcvt.s32.f32 %v1023
        %v2560 = vcvt.s32.f32 %v1024
        %v2561 = vcvt.s32.f32 %v1025
        %v2562 = vcvt.s32.f32 %v1026
        %v2563 = vcvt.s32.f32 %v1027
        %v2564 = vcvt.s32.f32 %v1028
        %v2565 = vcvt.s32.f32 %v1029
        %v2566 = vcvt.s32.f32 %v1030
        %v2567 = vcvt.s32.f32 %v1031
        %v2568 = vcvt.s32.f32 %v1032
        %v2569 = vcvt.s32.f32 %v1033
        %v2570 = vcvt.s32.f32 %v1034
        %v2571 = vcvt.s32.f32 %v1035
        %v2572 = vcvt.s32.f32 %v1036
        %v2573 = vcvt.s32.f32 %v1037
        %v2574 = vcvt.s32.f32 %v1038
        %v2575 = vcvt.s32.f32 %v1039
        %v2576 = vcvt.s32.f32 %v1040
        %v2577 = vcvt.s32.f32 %v1041
        %v2578 = vcvt.s32.f32 %v1042
        %v2579 = vcvt.s32.f32 %v1043
        %v2580 = vcvt.s32.f32 %v1044
        %v2581 = vcvt.s32.f32 %v1045
        %v2582 = vcvt.s32.f32 %v1046
        %v2583 = vcvt.s32.f32 %v1047
        %v2584 = vcvt.s32.f32 %v1048
        %v2585 = vcvt.s32.f32 %v1049
        %v2586 = vcvt.s32.f32 %v1050
        %v2587 = vcvt.s32.f32 %v1051
        %v2588 = vcvt.s32.f32 %v1052
        %v2589 = vcvt.s32.f32 %v1053
        %v2590 = vcvt.s32.f32 %v1054
        %v2591 = vcvt.s32.f32 %v1055
        %v2592 = vcvt.s32.f32 %v1056
        %v2593 = vcvt.s32.f32 %v1057
        %v2594 = vcvt.s32.f32 %v1058
        %v2595 = vcvt.s32.f32 %v1059
        %v2596 = vcvt.s32.f32 %v1060
        %v2597 = vcvt.s32.f32 %v1061
        %v2598 = vcvt.s32.f32 %v1062
        %v2599 = vcvt.s32.f32 %v1063
        %v2600 = vcvt.s32.f32 %v1064
        %v2601 = vcvt.s32.f32 %v1065
        %v2602 = vcvt.s32.f32 %v1066
        %v2603 = vcvt.s32.f32 %v1067
        %v2604 = vcvt.s32.f32 %v1068
        %v2605 = vcvt.s32.f32 %v1069
        %v2606 = vcvt.s32.f32 %v1070
        %v2607 = vcvt.s32.f32 %v1071
        %v2608 = vcvt.s32.f32 %v1072
        %v2609 = vcvt.s32.f32 %v1073
        %v2610 = vcvt.s32.f32 %v1074
        %v2611 = vcvt.s32.f32 %v1075
        %v2612 = vcvt.s32.f32 %v1076
        %v2613 = vcvt.s32.f32 %v1077
        %v2614 = vcvt.s32.f32 %v1078
        %v2615 = vcvt.s32.f32 %v1079
        %v2616 = vcvt.s32.f32 %v1080
        %v2617 = vcvt.s32.f32 %v1081
        %v2618 = vcvt.s32.f32 %v1082
        %v2619 = vcvt.s32.f32 %v1083
        %v2620 = vcvt.s32.f32 %v1084
        %v2621 = vcvt.s32.f32 %v1085
        %v2622 = vcvt.s32.f32 %v1086
        %v2623 = vcvt.s32.f32 %v1087
        %v2624 = vcvt.s32.f32 %v1088
        %v2625 = vcvt.s32.f32 %v1089
        %v2626 = vcvt.s32.f32 %v1090
        %v2627 = vcvt.s32.f32 %v1091
        %v2628 = vcvt.s32.f32 %v1092
        %v2629 = vcvt.s32.f32 %v1093
        %v2630 = vcvt.s32.f32 %v1094
        %v2631 = vcvt.s32.f32 %v1095
        %v2632 = vcvt.s32.f32 %v1096
        %v2633 = vcvt.s32.f32 %v1097
        %v2634 = vcvt.s32.f32 %v1098
        %v2635 = vcvt.s32.f32 %v1099
        %v2636 = vcvt.s32.f32 %v1100
        %v2637 = vcvt.s32.f32 %v1101
        %v2638 = vcvt.s32.f32 %v1102
        %v2639 = vcvt.s32.f32 %v1103
        %v2640 = vcvt.s32.f32 %v1104
        %v2641 = vcvt.s32.f32 %v1105
        %v2642 = vcvt.s32.f32 %v1106
        %v2643 = vcvt.s32.f32 %v1107
        %v2644 = vcvt.s32.f32 %v1108
        %v2645 = vcvt.s32.f32 %v1109
        %v2646 = vcvt.s32.f32 %v1110
        %v2647 = vcvt.s32.f32 %v1111
        %v2648 = vcvt.s32.f32 %v1112
        %v2649 = vcvt.s32.f32 %v1113
        %v2650 = vcvt.s32.f32 %v1114
        %v2651 = vcvt.s32.f32 %v1115
        %v2652 = vcvt.s32.f32 %v1116
        %v2653 = vcvt.s32.f32 %v1117
        %v2654 = vcvt.s32.f32 %v1118
        %v2655 = vcvt.s32.f32 %v1119
        %v2656 = vcvt.s32.f32 %v1120
        %v2657 = vcvt.s32.f32 %v1121
        %v2658 = vcvt.s32.f32 %v1122
        %v2659 = vcvt.s32.f32 %v1123
        %v2660 = vcvt.s32.f32 %v1124
        %v2661 = vcvt.s32.f32 %v1125
        %v2662 = vcvt.s32.f32 %v1126
        %v2663 = vcvt.s32.f32 %v1127
        %v2664 = vcvt.s32.f32 %v1128
        %v2665 = vcvt.s32.f32 %v1129
        %v2666 = vcvt.s32.f32 %v1130
        %v2667 = vcvt.s32.f32 %v1131
        %v2668 = vcvt.s32.f32 %v1132
        %v2669 = vcvt.s32.f32 %v1133
        %v2670 = vcvt.s32.f32 %v1134
        %v2671 = vcvt.s32.f32 %v1135
        %v2672 = vcvt.s32.f32 %v1136
        %v2673 = vcvt.s32.f32 %v1137
        %v2674 = vcvt.s32.f32 %v1138
        %v2675 = vcvt.s32.f32 %v1139
        %v2676 = vcvt.s32.f32 %v1140
        %v2677 = vcvt.s32.f32 %v1141
        %v2678 = vcvt.s32.f32 %v1142
        %v2679 = vcvt.s32.f32 %v1143
        %v2680 = vcvt.s32.f32 %v1144
        %v2681 = vcvt.s32.f32 %v1145
        %v2682 = vcvt.s32.f32 %v1146
        %v2683 = vcvt.s32.f32 %v1147
        %v2684 = vcvt.s32.f32 %v1148
        %v2685 = vcvt.s32.f32 %v1149
        %v2686 = vcvt.s32.f32 %v1150
        %v2687 = vcvt.s32.f32 %v1151
        %v2688 = vcvt.s32.f32 %v1152
        %v2689 = vcvt.s32.f32 %v1153
        %v2690 = vcvt.s32.f32 %v1154
        %v2691 = vcvt.s32.f32 %v1155
        %v2692 = vcvt.s32.f32 %v1156
        %v2693 = vcvt.s32.f32 %v1157
        %v2694 = vcvt.s32.f32 %v1158
        %v2695 = vcvt.s32.f32 %v1159
        %v2696 = vcvt.s32.f32 %v1160
        %v2697 = vcvt.s32.f32 %v1161
        %v2698 = vcvt.s32.f32 %v1162
        %v2699 = vcvt.s32.f32 %v1163
        %v2700 = vcvt.s32.f32 %v1164
        %v2701 = vcvt.s32.f32 %v1165
        %v2702 = vcvt.s32.f32 %v1166
        %v2703 = vcvt.s32.f32 %v1167
        %v2704 = vcvt.s32.f32 %v1168
        %v2705 = vcvt.s32.f32 %v1169
        %v2706 = vcvt.s32.f32 %v1170
        %v2707 = vcvt.s32.f32 %v1171
        %v2708 = vcvt.s32.f32 %v1172
        %v2709 = vcvt.s32.f32 %v1173
        %v2710 = vcvt.s32.f32 %v1174
        %v2711 = vcvt.s32.f32 %v1175
        %v2712 = vcvt.s32.f32 %v1176
        %v2713 = vcvt.s32.f32 %v1177
        %v2714 = vcvt.s32.f32 %v1178
        %v2715 = vcvt.s32.f32 %v1179
        %v2716 = vcvt.s32.f32 %v1180
        %v2717 = vcvt.s32.f32 %v1181
        %v2718 = vcvt.s32.f32 %v1182
        %v2719 = vcvt.s32.f32 %v1183
        %v2720 = vcvt.s32.f32 %v1184
        %v2721 = vcvt.s32.f32 %v1185
        %v2722 = vcvt.s32.f32 %v1186
        %v2723 = vcvt.s32.f32 %v1187
        %v2724 = vcvt.s32.f32 %v1188
        %v2725 = vcvt.s32.f32 %v1189
        %v2726 = vcvt.s32.f32 %v1190
        %v2727 = vcvt.s32.f32 %v1191
        %v2728 = vcvt.s32.f32 %v1192
        %v2729 = vcvt.s32.f32 %v1193
        %v2730 = vcvt.s32.f32 %v1194
        %v2731 = vcvt.s32.f32 %v1195
        %v2732 = vcvt.s32.f32 %v1196
        %v2733 = vcvt.s32.f32 %v1197
        %v2734 = vcvt.s32.f32 %v1198
        %v2735 = vcvt.s32.f32 %v1199
        %v2736 = vcvt.s32.f32 %v1200
        %v2737 = vcvt.s32.f32 %v1201
        %v2738 = vcvt.s32.f32 %v1202
        %v2739 = vcvt.s32.f32 %v1203
        %v2740 = vcvt.s32.f32 %v1204
        %v2741 = vcvt.s32.f32 %v1205
        %v2742 = vcvt.s32.f32 %v1206
        %v2743 = vcvt.s32.f32 %v1207
        %v2744 = vcvt.s32.f32 %v1208
        %v2745 = vcvt.s32.f32 %v1209
        %v2746 = vcvt.s32.f32 %v1210
        %v2747 = vcvt.s32.f32 %v1211
        %v2748 = vcvt.s32.f32 %v1212
        %v2749 = vcvt.s32.f32 %v1213
        %v2750 = vcvt.s32.f32 %v1214
        %v2751 = vcvt.s32.f32 %v1215
        %v2752 = vcvt.s32.f32 %v1216
        %v2753 = vcvt.s32.f32 %v1217
        %v2754 = vcvt.s32.f32 %v1218
        %v2755 = vcvt.s32.f32 %v1219
        %v2756 = vcvt.s32.f32 %v1220
        %v2757 = vcvt.s32.f32 %v1221
        %v2758 = vcvt.s32.f32 %v1222
        %v2759 = vcvt.s32.f32 %v1223
        %v2760 = vcvt.s32.f32 %v1224
        %v2761 = vcvt.s32.f32 %v1225
        %v2762 = vcvt.s32.f32 %v1226
        %v2763 = vcvt.s32.f32 %v1227
        %v2764 = vcvt.s32.f32 %v1228
        %v2765 = vcvt.s32.f32 %v1229
        %v2766 = vcvt.s32.f32 %v1230
        %v2767 = vcvt.s32.f32 %v1231
        %v2768 = vcvt.s32.f32 %v1232
        %v2769 = vcvt.s32.f32 %v1233
        %v2770 = vcvt.s32.f32 %v1234
        %v2771 = vcvt.s32.f32 %v1235
        %v2772 = vcvt.s32.f32 %v1236
        %v2773 = vcvt.s32.f32 %v1237
        %v2774 = vcvt.s32.f32 %v1238
        %v2775 = vcvt.s32.f32 %v1239
        %v2776 = vcvt.s32.f32 %v1240
        %v2777 = vcvt.s32.f32 %v1241
        %v2778 = vcvt.s32.f32 %v1242
        %v2779 = vcvt.s32.f32 %v1243
        %v2780 = vcvt.s32.f32 %v1244
        %v2781 = vcvt.s32.f32 %v1245
        %v2782 = vcvt.s32.f32 %v1246
        %v2783 = vcvt.s32.f32 %v1247
        %v2784 = vcvt.s32.f32 %v1248
        %v2785 = vcvt.s32.f32 %v1249
        %v2786 = vcvt.s32.f32 %v1250
        %v2787 = vcvt.s32.f32 %v1251
        %v2788 = vcvt.s32.f32 %v1252
        %v2789 = vcvt.s32.f32 %v1253
        %v2790 = vcvt.s32.f32 %v1254
        %v2791 = vcvt.s32.f32 %v1255
        %v2792 = vcvt.s32.f32 %v1256
        %v2793 = vcvt.s32.f32 %v1257
        %v2794 = vcvt.s32.f32 %v1258
        %v2795 = vcvt.s32.f32 %v1259
        %v2796 = vcvt.s32.f32 %v1260
        %v2797 = vcvt.s32.f32 %v1261
        %v2798 = vcvt.s32.f32 %v1262
        %v2799 = vcvt.s32.f32 %v1263
        %v2800 = vcvt.s32.f32 %v1264
        %v2801 = vcvt.s32.f32 %v1265
        %v2802 = vcvt.s32.f32 %v1266
        %v2803 = vcvt.s32.f32 %v1267
        %v2804 = vcvt.s32.f32 %v1268
        %v2805 = vcvt.s32.f32 %v1269
        %v2806 = vcvt.s32.f32 %v1270
        %v2807 = vcvt.s32.f32 %v1271
        %v2808 = vcvt.s32.f32 %v1272
        %v2809 = vcvt.s32.f32 %v1273
        %v2810 = vcvt.s32.f32 %v1274
        %v2811 = vcvt.s32.f32 %v1275
        %v2812 = vcvt.s32.f32 %v1276
        %v2813 = vcvt.s32.f32 %v1277
        %v2814 = vcvt.s32.f32 %v1278
        %v2815 = vcvt.s32.f32 %v1279
        %v2816 = vcvt.s32.f32 %v1280
        %v2817 = vcvt.s32.f32 %v1281
        %v2818 = vcvt.s32.f32 %v1282
        %v2819 = vcvt.s32.f32 %v1283
        %v2820 = vcvt.s32.f32 %v1284
        %v2821 = vcvt.s32.f32 %v1285
        %v2822 = vcvt.s32.f32 %v1286
        %v2823 = vcvt.s32.f32 %v1287
        %v2824 = vcvt.s32.f32 %v1288
        %v2825 = vcvt.s32.f32 %v1289
        %v2826 = vcvt.s32.f32 %v1290
        %v2827 = vcvt.s32.f32 %v1291
        %v2828 = vcvt.s32.f32 %v1292
        %v2829 = vcvt.s32.f32 %v1293
        %v2830 = vcvt.s32.f32 %v1294
        %v2831 = vcvt.s32.f32 %v1295
        %v2832 = vcvt.s32.f32 %v1296
        %v2833 = vcvt.s32.f32 %v1297
        %v2834 = vcvt.s32.f32 %v1298
        %v2835 = vcvt.s32.f32 %v1299
        %v2836 = vcvt.s32.f32 %v1300
        %v2837 = vcvt.s32.f32 %v1301
        %v2838 = vcvt.s32.f32 %v1302
        %v2839 = vcvt.s32.f32 %v1303
        %v2840 = vcvt.s32.f32 %v1304
        %v2841 = vcvt.s32.f32 %v1305
        %v2842 = vcvt.s32.f32 %v1306
        %v2843 = vcvt.s32.f32 %v1307
        %v2844 = vcvt.s32.f32 %v1308
        %v2845 = vcvt.s32.f32 %v1309
        %v2846 = vcvt.s32.f32 %v1310
        %v2847 = vcvt.s32.f32 %v1311
        %v2848 = vcvt.s32.f32 %v1312
        %v2849 = vcvt.s32.f32 %v1313
        %v2850 = vcvt.s32.f32 %v1314
        %v2851 = vcvt.s32.f32 %v1315
        %v2852 = vcvt.s32.f32 %v1316
        %v2853 = vcvt.s32.f32 %v1317
        %v2854 = vcvt.s32.f32 %v1318
        %v2855 = vcvt.s32.f32 %v1319
        %v2856 = vcvt.s32.f32 %v1320
        %v2857 = vcvt.s32.f32 %v1321
        %v2858 = vcvt.s32.f32 %v1322
        %v2859 = vcvt.s32.f32 %v1323
        %v2860 = vcvt.s32.f32 %v1324
        %v2861 = vcvt.s32.f32 %v1325
        %v2862 = vcvt.s32.f32 %v1326
        %v2863 = vcvt.s32.f32 %v1327
        %v2864 = vcvt.s32.f32 %v1328
        %v2865 = vcvt.s32.f32 %v1329
        %v2866 = vcvt.s32.f32 %v1330
        %v2867 = vcvt.s32.f32 %v1331
        %v2868 = vcvt.s32.f32 %v1332
        %v2869 = vcvt.s32.f32 %v1333
        %v2870 = vcvt.s32.f32 %v1334
        %v2871 = vcvt.s32.f32 %v1335
        %v2872 = vcvt.s32.f32 %v1336
        %v2873 = vcvt.s32.f32 %v1337
        %v2874 = vcvt.s32.f32 %v1338
        %v2875 = vcvt.s32.f32 %v1339
        %v2876 = vcvt.s32.f32 %v1340
        %v2877 = vcvt.s32.f32 %v1341
        %v2878 = vcvt.s32.f32 %v1342
        %v2879 = vcvt.s32.f32 %v1343
        %v2880 = vcvt.s32.f32 %v1344
        %v2881 = vcvt.s32.f32 %v1345
        %v2882 = vcvt.s32.f32 %v1346
        %v2883 = vcvt.s32.f32 %v1347
        %v2884 = vcvt.s32.f32 %v1348
        %v2885 = vcvt.s32.f32 %v1349
        %v2886 = vcvt.s32.f32 %v1350
        %v2887 = vcvt.s32.f32 %v1351
        %v2888 = vcvt.s32.f32 %v1352
        %v2889 = vcvt.s32.f32 %v1353
        %v2890 = vcvt.s32.f32 %v1354
        %v2891 = vcvt.s32.f32 %v1355
        %v2892 = vcvt.s32.f32 %v1356
        %v2893 = vcvt.s32.f32 %v1357
        %v2894 = vcvt.s32.f32 %v1358
        %v2895 = vcvt.s32.f32 %v1359
        %v2896 = vcvt.s32.f32 %v1360
        %v2897 = vcvt.s32.f32 %v1361
        %v2898 = vcvt.s32.f32 %v1362
        %v2899 = vcvt.s32.f32 %v1363
        %v2900 = vcvt.s32.f32 %v1364
        %v2901 = vcvt.s32.f32 %v1365
        %v2902 = vcvt.s32.f32 %v1366
        %v2903 = vcvt.s32.f32 %v1367
        %v2904 = vcvt.s32.f32 %v1368
        %v2905 = vcvt.s32.f32 %v1369
        %v2906 = vcvt.s32.f32 %v1370
        %v2907 = vcvt.s32.f32 %v1371
        %v2908 = vcvt.s32.f32 %v1372
        %v2909 = vcvt.s32.f32 %v1373
        %v2910 = vcvt.s32.f32 %v1374
        %v2911 = vcvt.s32.f32 %v1375
        %v2912 = vcvt.s32.f32 %v1376
        %v2913 = vcvt.s32.f32 %v1377
        %v2914 = vcvt.s32.f32 %v1378
        %v2915 = vcvt.s32.f32 %v1379
        %v2916 = vcvt.s32.f32 %v1380
        %v2917 = vcvt.s32.f32 %v1381
        %v2918 = vcvt.s32.f32 %v1382
        %v2919 = vcvt.s32.f32 %v1383
        %v2920 = vcvt.s32.f32 %v1384
        %v2921 = vcvt.s32.f32 %v1385
        %v2922 = vcvt.s32.f32 %v1386
        %v2923 = vcvt.s32.f32 %v1387
        %v2924 = vcvt.s32.f32 %v1388
        %v2925 = vcvt.s32.f32 %v1389
        %v2926 = vcvt.s32.f32 %v1390
        %v2927 = vcvt.s32.f32 %v1391
        %v2928 = vcvt.s32.f32 %v1392
        %v2929 = vcvt.s32.f32 %v1393
        %v2930 = vcvt.s32.f32 %v1394
        %v2931 = vcvt.s32.f32 %v1395
        %v2932 = vcvt.s32.f32 %v1396
        %v2933 = vcvt.s32.f32 %v1397
        %v2934 = vcvt.s32.f32 %v1398
        %v2935 = vcvt.s32.f32 %v1399
        %v2936 = vcvt.s32.f32 %v1400
        %v2937 = vcvt.s32.f32 %v1401
        %v2938 = vcvt.s32.f32 %v1402
        %v2939 = vcvt.s32.f32 %v1403
        %v2940 = vcvt.s32.f32 %v1404
        %v2941 = vcvt.s32.f32 %v1405
        %v2942 = vcvt.s32.f32 %v1406
        %v2943 = vcvt.s32.f32 %v1407
        %v2944 = vcvt.s32.f32 %v1408
        %v2945 = vcvt.s32.f32 %v1409
        %v2946 = vcvt.s32.f32 %v1410
        %v2947 = vcvt.s32.f32 %v1411
        %v2948 = vcvt.s32.f32 %v1412
        %v2949 = vcvt.s32.f32 %v1413
        %v2950 = vcvt.s32.f32 %v1414
        %v2951 = vcvt.s32.f32 %v1415
        %v2952 = vcvt.s32.f32 %v1416
        %v2953 = vcvt.s32.f32 %v1417
        %v2954 = vcvt.s32.f32 %v1418
        %v2955 = vcvt.s32.f32 %v1419
        %v2956 = vcvt.s32.f32 %v1420
        %v2957 = vcvt.s32.f32 %v1421
        %v2958 = vcvt.s32.f32 %v1422
        %v2959 = vcvt.s32.f32 %v1423
        %v2960 = vcvt.s32.f32 %v1424
        %v2961 = vcvt.s32.f32 %v1425
        %v2962 = vcvt.s32.f32 %v1426
        %v2963 = vcvt.s32.f32 %v1427
        %v2964 = vcvt.s32.f32 %v1428
        %v2965 = vcvt.s32.f32 %v1429
        %v2966 = vcvt.s32.f32 %v1430
        %v2967 = vcvt.s32.f32 %v1431
        %v2968 = vcvt.s32.f32 %v1432
        %v2969 = vcvt.s32.f32 %v1433
        %v2970 = vcvt.s32.f32 %v1434
        %v2971 = vcvt.s32.f32 %v1435
        %v2972 = vcvt.s32.f32 %v1436
        %v2973 = vcvt.s32.f32 %v1437
        %v2974 = vcvt.s32.f32 %v1438
        %v2975 = vcvt.s32.f32 %v1439
        %v2976 = vcvt.s32.f32 %v1440
        %v2977 = vcvt.s32.f32 %v1441
        %v2978 = vcvt.s32.f32 %v1442
        %v2979 = vcvt.s32.f32 %v1443
        %v2980 = vcvt.s32.f32 %v1444
        %v2981 = vcvt.s32.f32 %v1445
        %v2982 = vcvt.s32.f32 %v1446
        %v2983 = vcvt.s32.f32 %v1447
        %v2984 = vcvt.s32.f32 %v1448
        %v2985 = vcvt.s32.f32 %v1449
        %v2986 = vcvt.s32.f32 %v1450
        %v2987 = vcvt.s32.f32 %v1451
        %v2988 = vcvt.s32.f32 %v1452
        %v2989 = vcvt.s32.f32 %v1453
        %v2990 = vcvt.s32.f32 %v1454
        %v2991 = vcvt.s32.f32 %v1455
        %v2992 = vcvt.s32.f32 %v1456
        %v2993 = vcvt.s32.f32 %v1457
        %v2994 = vcvt.s32.f32 %v1458
        %v2995 = vcvt.s32.f32 %v1459
        %v2996 = vcvt.s32.f32 %v1460
        %v2997 = vcvt.s32.f32 %v1461
        %v2998 = vcvt.s32.f32 %v1462
        %v2999 = vcvt.s32.f32 %v1463
        %v3000 = vcvt.s32.f32 %v1464
        %v3001 = vcvt.s32.f32 %v1465
        %v3002 = vcvt.s32.f32 %v1466
        %v3003 = vcvt.s32.f32 %v1467
        %v3004 = vcvt.s32.f32 %v1468
        %v3005 = vcvt.s32.f32 %v1469
        %v3006 = vcvt.s32.f32 %v1470
        %v3007 = vcvt.s32.f32 %v1471
        %v3008 = vcvt.s32.f32 %v1472
        %v3009 = vcvt.s32.f32 %v1473
        %v3010 = vcvt.s32.f32 %v1474
        %v3011 = vcvt.s32.f32 %v1475
        %v3012 = vcvt.s32.f32 %v1476
        %v3013 = vcvt.s32.f32 %v1477
        %v3014 = vcvt.s32.f32 %v1478
        %v3015 = vcvt.s32.f32 %v1479
        %v3016 = vcvt.s32.f32 %v1480
        %v3017 = vcvt.s32.f32 %v1481
        %v3018 = vcvt.s32.f32 %v1482
        %v3019 = vcvt.s32.f32 %v1483
        %v3020 = vcvt.s32.f32 %v1484
        %v3021 = vcvt.s32.f32 %v1485
        %v3022 = vcvt.s32.f32 %v1486
        %v3023 = vcvt.s32.f32 %v1487
        %v3024 = vcvt.s32.f32 %v1488
        %v3025 = vcvt.s32.f32 %v1489
        %v3026 = vcvt.s32.f32 %v1490
        %v3027 = vcvt.s32.f32 %v1491
        %v3028 = vcvt.s32.f32 %v1492
        %v3029 = vcvt.s32.f32 %v1493
        %v3030 = vcvt.s32.f32 %v1494
        %v3031 = vcvt.s32.f32 %v1495
        %v3032 = vcvt.s32.f32 %v1496
        %v3033 = vcvt.s32.f32 %v1497
        %v3034 = vcvt.s32.f32 %v1498
        %v3035 = vcvt.s32.f32 %v1499
        %v3036 = vcvt.s32.f32 %v1500
        %v3037 = vcvt.s32.f32 %v1501
        %v3038 = vcvt.s32.f32 %v1502
        %v3039 = vcvt.s32.f32 %v1503
        %v3040 = vcvt.s32.f32 %v1504
        %v3041 = vcvt.s32.f32 %v1505
        %v3042 = vcvt.s32.f32 %v1506
        %v3043 = vcvt.s32.f32 %v1507
        %v3044 = vcvt.s32.f32 %v1508
        %v3045 = vcvt.s32.f32 %v1509
        %v3046 = vcvt.s32.f32 %v1510
        %v3047 = vcvt.s32.f32 %v1511
        %v3048 = vcvt.s32.f32 %v1512
        %v3049 = vcvt.s32.f32 %v1513
        %v3050 = vcvt.s32.f32 %v1514
        %v3051 = vcvt.s32.f32 %v1515
        %v3052 = vcvt.s32.f32 %v1516
        %v3053 = vcvt.s32.f32 %v1517
        %v3054 = vcvt.s32.f32 %v1518
        %v3055 = vcvt.s32.f32 %v1519
        %v3056 = vcvt.s32.f32 %v1520
        %v3057 = vcvt.s32.f32 %v1521
        %v3058 = vcvt.s32.f32 %v1522
        %v3059 = vcvt.s32.f32 %v1523
        %v3060 = vcvt.s32.f32 %v1524
        %v3061 = vcvt.s32.f32 %v1525
        %v3062 = vcvt.s32.f32 %v1526
        %v3063 = vcvt.s32.f32 %v1527
        %v3064 = vcvt.s32.f32 %v1528
        %v3065 = vcvt.s32.f32 %v1529
        %v3066 = vcvt.s32.f32 %v1530
        %v3067 = vcvt.s32.f32 %v1531
        %v3068 = vcvt.s32.f32 %v1532
        %v3069 = vcvt.s32.f32 %v1533
        %v3070 = vcvt.s32.f32 %v1534
        %v3071 = vcvt.s32.f32 %v1535
        %v3072 = vcvt.s32.f32 %v1536
        %v3073 = vcvt.s32.f32 %v1537
        %v3074 = vcvt.s32.f32 %v1538
        %v3075 = vcvt.s32.f32 %v1539
        %v3076 = vcvt.s32.f32 %v1540
        %v3077 = vcvt.s32.f32 %v1541
        %v3078 = vcvt.s32.f32 %v1542
        %v3079 = vcvt.s32.f32 %v1543
        %v3080 = vcvt.s32.f32 %v1544
        %v3081 = vcvt.s32.f32 %v1545
        %v3082 = vcvt.s32.f32 %v1546
        %v3083 = vcvt.s32.f32 %v1547
        %v3084 = vcvt.s32.f32 %v1548
        %v3085 = vcvt.s32.f32 %v1549
        %v3086 = vcvt.s32.f32 %v1550
        %v3087 = vcvt.s32.f32 %v1551
        %v3088 = vcvt.s32.f32 %v1552
        %v3089 = vcvt.s32.f32 %v1553
        %v3090 = vcvt.s32.f32 %v1554
        %v3091 = vcvt.s32.f32 %v1555
        %v3092 = vcvt.s32.f32 %v1556
        %v3093 = vcvt.s32.f32 %v1557
        %v3094 = vcvt.s32.f32 %v1558
        %v3095 = vcvt.s32.f32 %v1559
        %v3096 = vcvt.s32.f32 %v1560
        %v3097 = vcvt.s32.f32 %v1561
        %v3098 = vcvt.s32.f32 %v1562
        %v3099 = vcvt.s32.f32 %v1563
        %v3100 = vcvt.s32.f32 %v1564
        %v3101 = vcvt.s32.f32 %v1565
        %v3102 = vcvt.s32.f32 %v1566
        %v3103 = vcvt.s32.f32 %v1567
        %v3104 = vcvt.s32.f32 %v1568
        %v3105 = vcvt.s32.f32 %v1569
        %v3106 = vcvt.s32.f32 %v1570
        %v3107 = vcvt.s32.f32 %v1571
        %v3108 = vcvt.s32.f32 %v1572
        %v3109 = vcvt.s32.f32 %v1573
        %v3110 = vcvt.s32.f32 %v1574
        %v3111 = vcvt.s32.f32 %v1575
        %v3112 = vcvt.s32.f32 %v1576
        %v3113 = vcvt.s32.f32 %v1577
        %v3114 = vcvt.s32.f32 %v1578
        %v3115 = vcvt.s32.f32 %v1579
        %v3116 = vcvt.s32.f32 %v1580
        %v3117 = vcvt.s32.f32 %v1581
        %v3118 = vcvt.s32.f32 %v1582
        %v3119 = vcvt.s32.f32 %v1583
        %v3120 = vcvt.s32.f32 %v1584
        %v3121 = vcvt.s32.f32 %v1585
        %v3122 = vcvt.s32.f32 %v1586
        %v3123 = vcvt.s32.f32 %v1587
        %v3124 = vcvt.s32.f32 %v1588
        %v3125 = vcvt.s32.f32 %v1589
        %v3126 = vcvt.s32.f32 %v1590
        %v3127 = vcvt.s32.f32 %v1591
        %v3128 = vcvt.s32.f32 %v1592
        %v3129 = vcvt.s32.f32 %v1593
        %v3130 = vcvt.s32.f32 %v1594
        %v3131 = vcvt.s32.f32 %v1595
        %v3132 = vcvt.s32.f32 %v1596
        %v3133 = vcvt.s32.f32 %v1597
        %v3134 = vcvt.s32.f32 %v1598
        %v3135 = vcvt.s32.f32 %v1599
        %v3136 = vcvt.s32.f32 %v1600
        %v3137 = vcvt.s32.f32 %v1601
        %v3138 = vcvt.s32.f32 %v1602
        %v3139 = vcvt.s32.f32 %v1603
        %v3140 = vcvt.s32.f32 %v1604
        %v3141 = vcvt.s32.f32 %v1605
        %v3142 = vcvt.s32.f32 %v1606
        %v3143 = vcvt.s32.f32 %v1607
        %v3144 = vcvt.s32.f32 %v1608
        %v3145 = vcvt.s32.f32 %v1609
        %v3146 = vcvt.s32.f32 %v1610
        %v3147 = vcvt.s32.f32 %v1611
        %v3148 = vcvt.s32.f32 %v1612
        %v3149 = vcvt.s32.f32 %v1613
        %v3150 = vcvt.s32.f32 %v1614
        %v3151 = vcvt.s32.f32 %v1615
        %v3152 = vcvt.s32.f32 %v1616
        %v3153 = vcvt.s32.f32 %v1617
        %v3154 = vcvt.s32.f32 %v1618
        %v3155 = vcvt.s32.f32 %v1619
        %v3156 = vcvt.s32.f32 %v1620
        %v3157 = vcvt.s32.f32 %v1621
        %v3158 = vcvt.s32.f32 %v1622
        %v3159 = vcvt.s32.f32 %v1623
        %v3160 = vcvt.s32.f32 %v1624
        %v3161 = vcvt.s32.f32 %v1625
        %v3162 = vcvt.s32.f32 %v1626
        %v3163 = vcvt.s32.f32 %v1627
        %v3164 = vcvt.s32.f32 %v1628
        %v3165 = vcvt.s32.f32 %v1629
        %v3166 = vcvt.s32.f32 %v1630
        %v3167 = vcvt.s32.f32 %v1631
        %v3168 = vcvt.s32.f32 %v1632
        %v3169 = vcvt.s32.f32 %v1633
        %v3170 = vcvt.s32.f32 %v1634
        %v3171 = vcvt.s32.f32 %v1635
        %v3172 = vcvt.s32.f32 %v1636
        %v3173 = vcvt.s32.f32 %v1637
        %v3174 = vcvt.s32.f32 %v1638
        %v3175 = vcvt.s32.f32 %v1639
        %v3176 = vcvt.s32.f32 %v1640
        %v3177 = vcvt.s32.f32 %v1641
        %v3178 = vcvt.s32.f32 %v1642
        %v3179 = vcvt.s32.f32 %v1643
        %v3180 = vcvt.s32.f32 %v1644
        %v3181 = vcvt.s32.f32 %v1645
        %v3182 = vcvt.s32.f32 %v1646
        %v3183 = vcvt.s32.f32 %v1647
        %v3184 = vcvt.s32.f32 %v1648
        %v3185 = vcvt.s32.f32 %v1649
        %v3186 = vcvt.s32.f32 %v1650
        %v3187 = vcvt.s32.f32 %v1651
        %v3188 = vcvt.s32.f32 %v1652
        %v3189 = vcvt.s32.f32 %v1653
        %v3190 = vcvt.s32.f32 %v1654
        %v3191 = vcvt.s32.f32 %v1655
        %v3192 = vcvt.s32.f32 %v1656
        %v3193 = vcvt.s32.f32 %v1657
        %v3194 = vcvt.s32.f32 %v1658
        %v3195 = vcvt.s32.f32 %v1659
        %v3196 = vcvt.s32.f32 %v1660
        %v3197 = vcvt.s32.f32 %v1661
        %v3198 = vcvt.s32.f32 %v1662
        %v3199 = vcvt.s32.f32 %v1663
        %v3200 = vcvt.s32.f32 %v1664
        %v3201 = vcvt.s32.f32 %v1665
        %v3202 = vcvt.s32.f32 %v1666
        %v3203 = vcvt.s32.f32 %v1667
        %v3204 = vcvt.s32.f32 %v1668
        %v3205 = vcvt.s32.f32 %v1669
        %v3206 = vcvt.s32.f32 %v1670
        %v3207 = vcvt.s32.f32 %v1671
        %v3208 = vcvt.s32.f32 %v1672
        %v3209 = vcvt.s32.f32 %v1673
        %v3210 = vcvt.s32.f32 %v1674
        %v3211 = vcvt.s32.f32 %v1675
        %v3212 = vcvt.s32.f32 %v1676
        %v3213 = vcvt.s32.f32 %v1677
        %v3214 = vcvt.s32.f32 %v1678
        %v3215 = vcvt.s32.f32 %v1679
        %v3216 = vcvt.s32.f32 %v1680
        %v3217 = vcvt.s32.f32 %v1681
        %v3218 = vcvt.s32.f32 %v1682
        %v3219 = vcvt.s32.f32 %v1683
        %v3220 = vcvt.s32.f32 %v1684
        %v3221 = vcvt.s32.f32 %v1685
        %v3222 = vcvt.s32.f32 %v1686
        %v3223 = vcvt.s32.f32 %v1687
        %v3224 = vcvt.s32.f32 %v1688
        %v3225 = vcvt.s32.f32 %v1689
        %v3226 = vcvt.s32.f32 %v1690
        %v3227 = vcvt.s32.f32 %v1691
        %v3228 = vcvt.s32.f32 %v1692
        %v3229 = vcvt.s32.f32 %v1693
        %v3230 = vcvt.s32.f32 %v1694
        %v3231 = vcvt.s32.f32 %v1695
        %v3232 = vcvt.s32.f32 %v1696
        %v3233 = vcvt.s32.f32 %v1697
        %v3234 = vcvt.s32.f32 %v1698
        %v3235 = vcvt.s32.f32 %v1699
        %v3236 = vcvt.s32.f32 %v1700
        %v3237 = vcvt.s32.f32 %v1701
        %v3238 = vcvt.s32.f32 %v1702
        %v3239 = vcvt.s32.f32 %v1703
        %v3240 = vcvt.s32.f32 %v1704
        %v3241 = vcvt.s32.f32 %v1705
        %v3242 = vcvt.s32.f32 %v1706
        %v3243 = vcvt.s32.f32 %v1707
        %v3244 = vcvt.s32.f32 %v1708
        %v3245 = vcvt.s32.f32 %v1709
        %v3246 = vcvt.s32.f32 %v1710
        %v3247 = vcvt.s32.f32 %v1711
        %v3248 = vcvt.s32.f32 %v1712
        %v3249 = vcvt.s32.f32 %v1713
        %v3250 = vcvt.s32.f32 %v1714
        %v3251 = vcvt.s32.f32 %v1715
        %v3252 = vcvt.s32.f32 %v1716
        %v3253 = vcvt.s32.f32 %v1717
        %v3254 = vcvt.s32.f32 %v1718
        %v3255 = vcvt.s32.f32 %v1719
        %v3256 = vcvt.s32.f32 %v1720
        %v3257 = vcvt.s32.f32 %v1721
        %v3258 = vcvt.s32.f32 %v1722
        %v3259 = vcvt.s32.f32 %v1723
        %v3260 = vcvt.s32.f32 %v1724
        %v3261 = vcvt.s32.f32 %v1725
        %v3262 = vcvt.s32.f32 %v1726
        %v3263 = vcvt.s32.f32 %v1727
        %v3264 = vcvt.s32.f32 %v1728
        %v3265 = vcvt.s32.f32 %v1729
        %v3266 = vcvt.s32.f32 %v1730
        %v3267 = vcvt.s32.f32 %v1731
        %v3268 = vcvt.s32.f32 %v1732
        %v3269 = vcvt.s32.f32 %v1733
        %v3270 = vcvt.s32.f32 %v1734
        %v3271 = vcvt.s32.f32 %v1735
        %v3272 = vcvt.s32.f32 %v1736
        %v3273 = vcvt.s32.f32 %v1737
        %v3274 = vcvt.s32.f32 %v1738
        %v3275 = vcvt.s32.f32 %v1739
        %v3276 = vcvt.s32.f32 %v1740
        %v3277 = vcvt.s32.f32 %v1741
        %v3278 = vcvt.s32.f32 %v1742
        %v3279 = vcvt.s32.f32 %v1743
        %v3280 = vcvt.s32.f32 %v1744
        %v3281 = vcvt.s32.f32 %v1745
        %v3282 = vcvt.s32.f32 %v1746
        %v3283 = vcvt.s32.f32 %v1747
        %v3284 = vcvt.s32.f32 %v1748
        %v3285 = vcvt.s32.f32 %v1749
        %v3286 = vcvt.s32.f32 %v1750
        %v3287 = vcvt.s32.f32 %v1751
        %v3288 = vcvt.s32.f32 %v1752
        %v3289 = vcvt.s32.f32 %v1753
        %v3290 = vcvt.s32.f32 %v1754
        %v3291 = vcvt.s32.f32 %v1755
        %v3292 = vcvt.s32.f32 %v1756
        %v3293 = vcvt.s32.f32 %v1757
        %v3294 = vcvt.s32.f32 %v1758
        %v3295 = vcvt.s32.f32 %v1759
        %v3296 = vcvt.s32.f32 %v1760
        %v3297 = vcvt.s32.f32 %v1761
        %v3298 = vcvt.s32.f32 %v1762
        %v3299 = vcvt.s32.f32 %v1763
        %v3300 = vcvt.s32.f32 %v1764
        %v3301 = vcvt.s32.f32 %v1765
        %v3302 = vcvt.s32.f32 %v1766
        %v3303 = vcvt.s32.f32 %v1767
        %v3304 = vcvt.s32.f32 %v1768
        %v3305 = vcvt.s32.f32 %v1769
        %v3306 = vcvt.s32.f32 %v1770
        %v3307 = vcvt.s32.f32 %v1771
        %v3308 = vcvt.s32.f32 %v1772
        %v3309 = vcvt.s32.f32 %v1773
        %v3310 = vcvt.s32.f32 %v1774
        %v3311 = vcvt.s32.f32 %v1775
        %v3312 = vcvt.s32.f32 %v1776
        %v3313 = vcvt.s32.f32 %v1777
        %v3314 = vcvt.s32.f32 %v1778
        %v3315 = vcvt.s32.f32 %v1779
        %v3316 = vcvt.s32.f32 %v1780
        %v3317 = vcvt.s32.f32 %v1781
        %v3318 = vcvt.s32.f32 %v1782
        %v3319 = vcvt.s32.f32 %v1783
        %v3320 = vcvt.s32.f32 %v1784
        %v3321 = vcvt.s32.f32 %v1785
        %v3322 = vcvt.s32.f32 %v1786
        %v3323 = vcvt.s32.f32 %v1787
        %v3324 = vcvt.s32.f32 %v1788
        %v3325 = vcvt.s32.f32 %v1789
        %v3326 = vcvt.s32.f32 %v1790
        %v3327 = vcvt.s32.f32 %v1791
        %v3328 = vcvt.s32.f32 %v1792
        %v3329 = vcvt.s32.f32 %v1793
        %v3330 = vcvt.s32.f32 %v1794
        %v3331 = vcvt.s32.f32 %v1795
        %v3332 = vcvt.s32.f32 %v1796
        %v3333 = vcvt.s32.f32 %v1797
        %v3334 = vcvt.s32.f32 %v1798
        %v3335 = vcvt.s32.f32 %v1799
        %v3336 = vcvt.s32.f32 %v1800
        %v3337 = vcvt.s32.f32 %v1801
        %v3338 = vcvt.s32.f32 %v1802
        %v3339 = vcvt.s32.f32 %v1803
        %v3340 = vcvt.s32.f32 %v1804
        %v3341 = vcvt.s32.f32 %v1805
        %v3342 = vcvt.s32.f32 %v1806
        %v3343 = vcvt.s32.f32 %v1807
        %v3344 = vcvt.s32.f32 %v1808
        %v3345 = vcvt.s32.f32 %v1809
        %v3346 = vcvt.s32.f32 %v1810
        %v3347 = vcvt.s32.f32 %v1811
        %v3348 = vcvt.s32.f32 %v1812
        %v3349 = vcvt.s32.f32 %v1813
        %v3350 = vcvt.s32.f32 %v1814
        %v3351 = vcvt.s32.f32 %v1815
        %v3352 = vcvt.s32.f32 %v1816
        %v3353 = vcvt.s32.f32 %v1817
        %v3354 = vcvt.s32.f32 %v1818
        %v3355 = vcvt.s32.f32 %v1819
        %v3356 = vcvt.s32.f32 %v1820
        %v3357 = vcvt.s32.f32 %v1821
        %v3358 = vcvt.s32.f32 %v1822
        %v3359 = vcvt.s32.f32 %v1823
        %v3360 = vcvt.s32.f32 %v1824
        %v3361 = vcvt.s32.f32 %v1825
        %v3362 = vcvt.s32.f32 %v1826
        %v3363 = vcvt.s32.f32 %v1827
        %v3364 = vcvt.s32.f32 %v1828
        %v3365 = vcvt.s32.f32 %v1829
        %v3366 = vcvt.s32.f32 %v1830
        %v3367 = vcvt.s32.f32 %v1831
        %v3368 = vcvt.s32.f32 %v1832
        %v3369 = vcvt.s32.f32 %v1833
        %v3370 = vcvt.s32.f32 %v1834
        %v3371 = vcvt.s32.f32 %v1835
        %v3372 = vcvt.s32.f32 %v1836
        %v3373 = vcvt.s32.f32 %v1837
        %v3374 = vcvt.s32.f32 %v1838
        %v3375 = vcvt.s32.f32 %v1839
        %v3376 = vcvt.s32.f32 %v1840
        %v3377 = vcvt.s32.f32 %v1841
        %v3378 = vcvt.s32.f32 %v1842
        %v3379 = vcvt.s32.f32 %v1843
        %v3380 = vcvt.s32.f32 %v1844
        %v3381 = vcvt.s32.f32 %v1845
        %v3382 = vcvt.s32.f32 %v1846
        %v3383 = vcvt.s32.f32 %v1847
        %v3384 = vcvt.s32.f32 %v1848
        %v3385 = vcvt.s32.f32 %v1849
        %v3386 = vcvt.s32.f32 %v1850
        %v3387 = vcvt.s32.f32 %v1851
        %v3388 = vcvt.s32.f32 %v1852
        %v3389 = vcvt.s32.f32 %v1853
        %v3390 = vcvt.s32.f32 %v1854
        %v3391 = vcvt.s32.f32 %v1855
        %v3392 = vcvt.s32.f32 %v1856
        %v3393 = vcvt.s32.f32 %v1857
        %v3394 = vcvt.s32.f32 %v1858
        %v3395 = vcvt.s32.f32 %v1859
        %v3396 = vcvt.s32.f32 %v1860
        %v3397 = vcvt.s32.f32 %v1861
        %v3398 = vcvt.s32.f32 %v1862
        %v3399 = vcvt.s32.f32 %v1863
        %v3400 = vcvt.s32.f32 %v1864
        %v3401 = vcvt.s32.f32 %v1865
        %v3402 = vcvt.s32.f32 %v1866
        %v3403 = vcvt.s32.f32 %v1867
        %v3404 = vcvt.s32.f32 %v1868
        %v3405 = vcvt.s32.f32 %v1869
        %v3406 = vcvt.s32.f32 %v1870
        %v3407 = vcvt.s32.f32 %v1871
        %v3408 = vcvt.s32.f32 %v1872
        %v3409 = vcvt.s32.f32 %v1873
        %v3410 = vcvt.s32.f32 %v1874
        %v3411 = vcvt.s32.f32 %v1875
        %v3412 = vcvt.s32.f32 %v1876
        %v3413 = vcvt.s32.f32 %v1877
        %v3414 = vcvt.s32.f32 %v1878
        %v3415 = vcvt.s32.f32 %v1879
        %v3416 = vcvt.s32.f32 %v1880
        %v3417 = vcvt.s32.f32 %v1881
        %v3418 = vcvt.s32.f32 %v1882
        %v3419 = vcvt.s32.f32 %v1883
        %v3420 = vcvt.s32.f32 %v1884
        %v3421 = vcvt.s32.f32 %v1885
        %v3422 = vcvt.s32.f32 %v1886
        %v3423 = vcvt.s32.f32 %v1887
        %v3424 = vcvt.s32.f32 %v1888
        %v3425 = vcvt.s32.f32 %v1889
        %v3426 = vcvt.s32.f32 %v1890
        %v3427 = vcvt.s32.f32 %v1891
        %v3428 = vcvt.s32.f32 %v1892
        %v3429 = vcvt.s32.f32 %v1893
        %v3430 = vcvt.s32.f32 %v1894
        %v3431 = vcvt.s32.f32 %v1895
        %v3432 = vcvt.s32.f32 %v1896
        %v3433 = vcvt.s32.f32 %v1897
        %v3434 = vcvt.s32.f32 %v1898
        %v3435 = vcvt.s32.f32 %v1899
        %v3436 = vcvt.s32.f32 %v1900
        %v3437 = vcvt.s32.f32 %v1901
        %v3438 = vcvt.s32.f32 %v1902
        %v3439 = vcvt.s32.f32 %v1903
        %v3440 = vcvt.s32.f32 %v1904
        %v3441 = vcvt.s32.f32 %v1905
        %v3442 = vcvt.s32.f32 %v1906
        %v3443 = vcvt.s32.f32 %v1907
        %v3444 = vcvt.s32.f32 %v1908
        %v3445 = vcvt.s32.f32 %v1909
        %v3446 = vcvt.s32.f32 %v1910
        %v3447 = vcvt.s32.f32 %v1911
        %v3448 = vcvt.s32.f32 %v1912
        %v3449 = vcvt.s32.f32 %v1913
        %v3450 = vcvt.s32.f32 %v1914
        %v3451 = vcvt.s32.f32 %v1915
        %v3452 = vcvt.s32.f32 %v1916
        %v3453 = vcvt.s32.f32 %v1917
        %v3454 = vcvt.s32.f32 %v1918
        %v3455 = vcvt.s32.f32 %v1919
        %v3456 = vcvt.s32.f32 %v1920
        %v3457 = vcvt.s32.f32 %v1921
        %v3458 = vcvt.s32.f32 %v1922
        %v3459 = vcvt.s32.f32 %v1923
        %v3460 = vcvt.s32.f32 %v1924
        %v3461 = vcvt.s32.f32 %v1925
        %v3462 = vcvt.s32.f32 %v1926
        %v3463 = vcvt.s32.f32 %v1927
        %v3464 = vcvt.s32.f32 %v1928
        %v3465 = vcvt.s32.f32 %v1929
        %v3466 = vcvt.s32.f32 %v1930
        %v3467 = vcvt.s32.f32 %v1931
        %v3468 = vcvt.s32.f32 %v1932
        %v3469 = vcvt.s32.f32 %v1933
        %v3470 = vcvt.s32.f32 %v1934
        %v3471 = vcvt.s32.f32 %v1935
        %v3472 = vcvt.s32.f32 %v1936
        %v3473 = vcvt.s32.f32 %v1937
        %v3474 = vcvt.s32.f32 %v1938
        %v3475 = vcvt.s32.f32 %v1939
        %v3476 = vcvt.s32.f32 %v1940
        %v3477 = vcvt.s32.f32 %v1941
        %v3478 = vcvt.s32.f32 %v1942
        %v3479 = vcvt.s32.f32 %v1943
        %v3480 = vcvt.s32.f32 %v1944
        %v3481 = vcvt.s32.f32 %v1945
        %v3482 = vcvt.s32.f32 %v1946
        %v3483 = vcvt.s32.f32 %v1947
        %v3484 = vcvt.s32.f32 %v1948
        %v3485 = vcvt.s32.f32 %v1949
        %v3486 = vcvt.s32.f32 %v1950
        %v3487 = vcvt.s32.f32 %v1951
        %v3488 = vcvt.s32.f32 %v1952
        %v3489 = vcvt.s32.f32 %v1953
        %v3490 = vcvt.s32.f32 %v1954
        %v3491 = vcvt.s32.f32 %v1955
        %v3492 = vcvt.s32.f32 %v1956
        %v3493 = vcvt.s32.f32 %v1957
        %v3494 = vcvt.s32.f32 %v1958
        %v3495 = vcvt.s32.f32 %v1959
        %v3496 = vcvt.s32.f32 %v1960
        %v3497 = vcvt.s32.f32 %v1961
        %v3498 = vcvt.s32.f32 %v1962
        %v3499 = vcvt.s32.f32 %v1963
        %v3500 = vcvt.s32.f32 %v1964
        %v3501 = vcvt.s32.f32 %v1965
        %v3502 = vcvt.s32.f32 %v1966
        %v3503 = vcvt.s32.f32 %v1967
        %v3504 = vcvt.s32.f32 %v1968
        %v3505 = vcvt.s32.f32 %v1969
        %v3506 = vcvt.s32.f32 %v1970
        %v3507 = vcvt.s32.f32 %v1971
        %v3508 = vcvt.s32.f32 %v1972
        %v3509 = vcvt.s32.f32 %v1973
        %v3510 = vcvt.s32.f32 %v1974
        %v3511 = vcvt.s32.f32 %v1975
        %v3512 = vcvt.s32.f32 %v1976
        %v3513 = vcvt.s32.f32 %v1977
        %v3514 = vcvt.s32.f32 %v1978
        %v3515 = vcvt.s32.f32 %v1979
        %v3516 = vcvt.s32.f32 %v1980
        %v3517 = vcvt.s32.f32 %v1981
        %v3518 = vcvt.s32.f32 %v1982
        %v3519 = vcvt.s32.f32 %v1983
        %v3520 = vcvt.s32.f32 %v1984
        %v3521 = vcvt.s32.f32 %v1985
        %v3522 = vcvt.s32.f32 %v1986
        %v3523 = vcvt.s32.f32 %v1987
        %v3524 = vcvt.s32.f32 %v1988
        %v3525 = vcvt.s32.f32 %v1989
        %v3526 = vcvt.s32.f32 %v1990
        %v3527 = vcvt.s32.f32 %v1991
        %v3528 = vcvt.s32.f32 %v1992
        %v3529 = vcvt.s32.f32 %v1993
        %v3530 = vcvt.s32.f32 %v1994
        %v3531 = vcvt.s32.f32 %v1995
        %v3532 = vcvt.s32.f32 %v1996
        %v3533 = vcvt.s32.f32 %v1997
        %v3534 = vcvt.s32.f32 %v1998
        %v3535 = vcvt.s32.f32 %v1999
        %v3536 = vcvt.s32.f32 %v2000
        %v3537 = vcvt.s32.f32 %v2001
        %v3538 = vcvt.s32.f32 %v2002
        %v3539 = vcvt.s32.f32 %v2003
        %v3540 = vcvt.s32.f32 %v2004
        %v3541 = vcvt.s32.f32 %v2005
        %v3542 = vcvt.s32.f32 %v2006
        %v3543 = vcvt.s32.f32 %v2007
        %v3544 = vcvt.s32.f32 %v2008
        %v3545 = vcvt.s32.f32 %v2009
        %v3546 = vcvt.s32.f32 %v2010
        %v3547 = vcvt.s32.f32 %v2011
        %v3548 = vcvt.s32.f32 %v2012
        %v3549 = vcvt.s32.f32 %v2013
        %v3550 = vcvt.s32.f32 %v2014
        %v3551 = vcvt.s32.f32 %v2015
        %v3552 = vcvt.s32.f32 %v2016
        %v3553 = vcvt.s32.f32 %v2017
        %v3554 = vcvt.s32.f32 %v2018
        %v3555 = vcvt.s32.f32 %v2019
        %v3556 = vcvt.s32.f32 %v2020
        %v3557 = vcvt.s32.f32 %v2021
        %v3558 = vcvt.s32.f32 %v2022
        %v3559 = vcvt.s32.f32 %v2023
        %v3560 = vcvt.s32.f32 %v2024
        %v3561 = vcvt.s32.f32 %v2025
        %v3562 = vcvt.s32.f32 %v2026
        %v3563 = vcvt.s32.f32 %v2027
        %v3564 = vcvt.s32.f32 %v2028
        %v3565 = vcvt.s32.f32 %v2029
        %v3566 = vcvt.s32.f32 %v2030
        %v3567 = vcvt.s32.f32 %v2031
        %v3568 = vcvt.s32.f32 %v2032
        %v3569 = vcvt.s32.f32 %v2033
        %v3570 = vcvt.s32.f32 %v2034
        %v3571 = vcvt.s32.f32 %v2035
        %v3572 = vcvt.s32.f32 %v2036
        %v3573 = vcvt.s32.f32 %v2037
        %v3574 = vcvt.s32.f32 %v2038
        %v3575 = vcvt.s32.f32 %v2039
        %v3576 = vcvt.s32.f32 %v2040
        %v3577 = vcvt.s32.f32 %v2041
        %v3578 = vcvt.s32.f32 %v2042
        %v3579 = vcvt.s32.f32 %v2043
        %v3580 = vcvt.s32.f32 %v2044
        %v3581 = vcvt.s32.f32 %v2045
        %v3582 = vcvt.s32.f32 %v2046
        %v3583 = vcvt.s32.f32 %v2047
        %v3584 = vcvt.s32.f32 %v2048
        %v3585 = vcvt.s32.f32 %v2049
        %v3586 = vcvt.s32.f32 %v2050
        %v3587 = vcvt.s32.f32 %v2051
        %v3588 = vcvt.s32.f32 %v2052
        %v3589 = vcvt.s32.f32 %v2053
        %v3590 = vcvt.s32.f32 %v2054
        %v3591 = vcvt.s32.f32 %v2055
        %v3592 = vcvt.s32.f32 %v2056
        %v3593 = vcvt.s32.f32 %v2057
        %v3594 = vcvt.s32.f32 %v2058
        %v3595 = vcvt.s32.f32 %v2059
        %v3596 = vcvt.s32.f32 %v2060
        %v3597 = vcvt.s32.f32 %v2061
        %v3598 = vcvt.s32.f32 %v2062
        %v3599 = vcvt.s32.f32 %v2063
        %v3600 = vcvt.s32.f32 %v2064
        %v3601 = vcvt.s32.f32 %v2065
        %v3602 = vcvt.s32.f32 %v2066
        %v3603 = vcvt.s32.f32 %v2067
        %v3604 = vcvt.s32.f32 %v2068
        %v3605 = vcvt.s32.f32 %v2069
        %v3606 = vcvt.s32.f32 %v2070
        %v3607 = vcvt.s32.f32 %v2071
        %v3608 = vcvt.s32.f32 %v2072
        %v3609 = vcvt.s32.f32 %v2073
        %v3610 = vcvt.s32.f32 %v2074
        %v3611 = vcvt.s32.f32 %v2075
        %v3612 = vcvt.s32.f32 %v2076
        %v3613 = vcvt.s32.f32 %v2077
        %v3614 = vcvt.s32.f32 %v2078
        %v3615 = vcvt.s32.f32 %v2079
        %v3616 = vcvt.s32.f32 %v2080
        %v3617 = vcvt.s32.f32 %v2081
        %v3618 = vcvt.s32.f32 %v2082
        %v3619 = vcvt.s32.f32 %v2083
        %v3620 = vcvt.s32.f32 %v2084
        %v3621 = vcvt.s32.f32 %v2085
        %v3622 = vcvt.s32.f32 %v2086
        %v3623 = vcvt.s32.f32 %v2087
        %v3624 = vcvt.s32.f32 %v2088
        %v3625 = vcvt.s32.f32 %v2089
        %v3626 = vcvt.s32.f32 %v2090
        %v3627 = vcvt.s32.f32 %v2091
        %v3628 = vcvt.s32.f32 %v2092
        %v3629 = vcvt.s32.f32 %v2093
        %v3630 = vcvt.s32.f32 %v2094
        %v3631 = vcvt.s32.f32 %v2095
        %v3632 = vcvt.s32.f32 %v2096
        %v3633 = vcvt.s32.f32 %v2097
        %v3634 = vcvt.s32.f32 %v2098
        %v3635 = vcvt.s32.f32 %v2099
        %v3636 = vcvt.s32.f32 %v2100
        %v3637 = vcvt.s32.f32 %v2101
        %v3638 = vcvt.s32.f32 %v2102
        %v3639 = vcvt.s32.f32 %v2103
        %v3640 = vcvt.s32.f32 %v2104
        %v3641 = vcvt.s32.f32 %v2105
        %v3642 = vcvt.s32.f32 %v2106
        %v3643 = vcvt.s32.f32 %v2107
        %v3644 = vcvt.s32.f32 %v2108
        %v3645 = vcvt.s32.f32 %v2109
        %v3646 = vcvt.s32.f32 %v2110
        %v3647 = vcvt.s32.f32 %v2111
        %v3648 = vcvt.s32.f32 %v2112
        %v3649 = vcvt.s32.f32 %v2113
        %v3650 = vcvt.s32.f32 %v2114
        %v3651 = vcvt.s32.f32 %v2115
        %v3652 = vcvt.s32.f32 %v2116
        %v3653 = vcvt.s32.f32 %v2117
        %v3654 = vcvt.s32.f32 %v2118
        %v3655 = vcvt.s32.f32 %v2119
        %v3656 = vcvt.s32.f32 %v2120
        %v3657 = vcvt.s32.f32 %v2121
        %v3658 = vcvt.s32.f32 %v2122
        %v3659 = vcvt.s32.f32 %v2123
        %v3660 = vcvt.s32.f32 %v2124
        %v3661 = vcvt.s32.f32 %v2125
        %v3662 = vcvt.s32.f32 %v2126
        %v3663 = vcvt.s32.f32 %v2127
        %v3664 = vcvt.s32.f32 %v2128
        %v3665 = vcvt.s32.f32 %v2129
        %v3666 = vcvt.s32.f32 %v2130
        %v3667 = vcvt.s32.f32 %v2131
        %v3668 = vcvt.s32.f32 %v2132
        %v3669 = vcvt.s32.f32 %v2133
        %v3670 = vcvt.s32.f32 %v2134
        %v3671 = vcvt.s32.f32 %v2135
        %v3672 = vcvt.s32.f32 %v2136
        %v3673 = vcvt.s32.f32 %v2137
        %v3674 = vcvt.s32.f32 %v2138
        %v3675 = vcvt.s32.f32 %v2139
        %v3676 = vcvt.s32.f32 %v2140
        %v3677 = vcvt.s32.f32 %v2141
        %v3678 = vcvt.s32.f32 %v2142
        %v3679 = vcvt.s32.f32 %v2143
        %v3680 = vcvt.s32.f32 %v2144
        %v3681 = vcvt.s32.f32 %v2145
        %v3682 = vcvt.s32.f32 %v2146
        %v3683 = vcvt.s32.f32 %v2147
        %v3684 = vcvt.s32.f32 %v2148
        %v3685 = vcvt.s32.f32 %v2149
        %v3686 = vcvt.s32.f32 %v2150
        %v3687 = vcvt.s32.f32 %v2151
        %v3688 = vcvt.s32.f32 %v2152
        %v3689 = vcvt.s32.f32 %v2153
        %v3690 = vcvt.s32.f32 %v2154
        %v3691 = vcvt.s32.f32 %v2155
        %v3692 = vcvt.s32.f32 %v2156
        %v3693 = vcvt.s32.f32 %v2157
        %v3694 = vcvt.s32.f32 %v2158
        %v3695 = vcvt.s32.f32 %v2159
        %v3696 = vcvt.s32.f32 %v2160
        %v3697 = vcvt.s32.f32 %v2161
        %v3698 = vcvt.s32.f32 %v2162
        %v3699 = vcvt.s32.f32 %v2163
        %v3700 = vcvt.s32.f32 %v2164
        %v3701 = vcvt.s32.f32 %v2165
        %v3702 = vcvt.s32.f32 %v2166
        %v3703 = vcvt.s32.f32 %v2167
        %v3704 = vcvt.s32.f32 %v2168
        %v3705 = vcvt.s32.f32 %v2169
        %v3706 = vcvt.s32.f32 %v2170
        %v3707 = vcvt.s32.f32 %v2171
        %v3708 = vcvt.s32.f32 %v2172
        %v3709 = vcvt.s32.f32 %v2173
        %v3710 = vcvt.s32.f32 %v2174
        %v3711 = vcvt.s32.f32 %v2175
        %v3712 = vcvt.s32.f32 %v2176
        %v3713 = vcvt.s32.f32 %v2177
        %v3714 = vcvt.s32.f32 %v2178
        %v3715 = vcvt.s32.f32 %v2179
        %v3716 = vcvt.s32.f32 %v2180
        %v3717 = vcvt.s32.f32 %v2181
        %v3718 = vcvt.s32.f32 %v2182
        %v3719 = vcvt.s32.f32 %v2183
        %v3720 = vcvt.s32.f32 %v2184
        %v3721 = vcvt.s32.f32 %v2185
        %v3722 = vcvt.s32.f32 %v2186
        %v3723 = vcvt.s32.f32 %v2187
        %v3724 = vcvt.s32.f32 %v2188
        %v3725 = vcvt.s32.f32 %v2189
        %v3726 = vcvt.s32.f32 %v2190
        %v3727 = vcvt.s32.f32 %v2191
        %v3728 = vcvt.s32.f32 %v2192
        %v3729 = vcvt.s32.f32 %v2193
        %v3730 = vcvt.s32.f32 %v2194
        %v3731 = vcvt.s32.f32 %v2195
        %v3732 = vcvt.s32.f32 %v2196
        %v3733 = vcvt.s32.f32 %v2197
        %v3734 = vcvt.s32.f32 %v2198
        %v3735 = vcvt.s32.f32 %v2199
        %v3736 = vcvt.s32.f32 %v2200
        %v3737 = vcvt.s32.f32 %v2201
        %v3738 = vcvt.s32.f32 %v2202
        %v3739 = vcvt.s32.f32 %v2203
        %v3740 = vcvt.s32.f32 %v2204
        %v3741 = vcvt.s32.f32 %v2205
        %v3742 = vcvt.s32.f32 %v2206
        %v3743 = vcvt.s32.f32 %v2207
        %v3744 = vcvt.s32.f32 %v2208
        %v3745 = vcvt.s32.f32 %v2209
        %v3746 = vcvt.s32.f32 %v2210
        %v3747 = vcvt.s32.f32 %v2211
        %v3748 = vcvt.s32.f32 %v2212
        %v3749 = vcvt.s32.f32 %v2213
        %v3750 = vcvt.s32.f32 %v2214
        %v3751 = vcvt.s32.f32 %v2215
        %v3752 = vcvt.s32.f32 %v2216
        %v3753 = vcvt.s32.f32 %v2217
        %v3754 = vcvt.s32.f32 %v2218
        %v3755 = vpack.c.bf16 %v2225, %v2219
        %v3756 = vpack.c.bf16 %v2226, %v2220
        %v3757 = vpack.c.bf16 %v2227, %v2221
        %v3758 = vpack.c.bf16 %v2228, %v2222
        %v3759 = vpack.c.bf16 %v2229, %v2223
        %v3760 = vpack.c.bf16 %v2230, %v2224
        %v3761 = vpack.c.bf16 %v2237, %v2231
        %v3762 = vpack.c.bf16 %v2238, %v2232
        %v3763 = vpack.c.bf16 %v2239, %v2233
        %v3764 = vpack.c.bf16 %v2240, %v2234
        %v3765 = vpack.c.bf16 %v2241, %v2235
        %v3766 = vpack.c.bf16 %v2242, %v2236
        %v3767 = vpack.c.bf16 %v2249, %v2243
        %v3768 = vpack.c.bf16 %v2250, %v2244
        %v3769 = vpack.c.bf16 %v2251, %v2245
        %v3770 = vpack.c.bf16 %v2252, %v2246
        %v3771 = vpack.c.bf16 %v2253, %v2247
        %v3772 = vpack.c.bf16 %v2254, %v2248
        %v3773 = vpack.c.bf16 %v2261, %v2255
        %v3774 = vpack.c.bf16 %v2262, %v2256
        %v3775 = vpack.c.bf16 %v2263, %v2257
        %v3776 = vpack.c.bf16 %v2264, %v2258
        %v3777 = vpack.c.bf16 %v2265, %v2259
        %v3778 = vpack.c.bf16 %v2266, %v2260
        %v3779 = vpack.c.bf16 %v2273, %v2267
        %v3780 = vpack.c.bf16 %v2274, %v2268
        %v3781 = vpack.c.bf16 %v2275, %v2269
        %v3782 = vpack.c.bf16 %v2276, %v2270
        %v3783 = vpack.c.bf16 %v2277, %v2271
        %v3784 = vpack.c.bf16 %v2278, %v2272
        %v3785 = vpack.c.bf16 %v2285, %v2279
        %v3786 = vpack.c.bf16 %v2286, %v2280
        %v3787 = vpack.c.bf16 %v2287, %v2281
        %v3788 = vpack.c.bf16 %v2288, %v2282
        %v3789 = vpack.c.bf16 %v2289, %v2283
        %v3790 = vpack.c.bf16 %v2290, %v2284
        %v3791 = vpack.c.bf16 %v2297, %v2291
        %v3792 = vpack.c.bf16 %v2298, %v2292
        %v3793 = vpack.c.bf16 %v2299, %v2293
        %v3794 = vpack.c.bf16 %v2300, %v2294
        %v3795 = vpack.c.bf16 %v2301, %v2295
        %v3796 = vpack.c.bf16 %v2302, %v2296
        %v3797 = vpack.c.bf16 %v2309, %v2303
        %v3798 = vpack.c.bf16 %v2310, %v2304
        %v3799 = vpack.c.bf16 %v2311, %v2305
        %v3800 = vpack.c.bf16 %v2312, %v2306
        %v3801 = vpack.c.bf16 %v2313, %v2307
        %v3802 = vpack.c.bf16 %v2314, %v2308
        %v3803 = vpack.c.bf16 %v2321, %v2315
        %v3804 = vpack.c.bf16 %v2322, %v2316
        %v3805 = vpack.c.bf16 %v2323, %v2317
        %v3806 = vpack.c.bf16 %v2324, %v2318
        %v3807 = vpack.c.bf16 %v2325, %v2319
        %v3808 = vpack.c.bf16 %v2326, %v2320
        %v3809 = vpack.c.bf16 %v2333, %v2327
        %v3810 = vpack.c.bf16 %v2334, %v2328
        %v3811 = vpack.c.bf16 %v2335, %v2329
        %v3812 = vpack.c.bf16 %v2336, %v2330
        %v3813 = vpack.c.bf16 %v2337, %v2331
        %v3814 = vpack.c.bf16 %v2338, %v2332
        %v3815 = vpack.c.bf16 %v2345, %v2339
        %v3816 = vpack.c.bf16 %v2346, %v2340
        %v3817 = vpack.c.bf16 %v2347, %v2341
        %v3818 = vpack.c.bf16 %v2348, %v2342
        %v3819 = vpack.c.bf16 %v2349, %v2343
        %v3820 = vpack.c.bf16 %v2350, %v2344
        %v3821 = vpack.c.bf16 %v2357, %v2351
        %v3822 = vpack.c.bf16 %v2358, %v2352
        %v3823 = vpack.c.bf16 %v2359, %v2353
        %v3824 = vpack.c.bf16 %v2360, %v2354
        %v3825 = vpack.c.bf16 %v2361, %v2355
        %v3826 = vpack.c.bf16 %v2362, %v2356
        %v3827 = vpack.c.bf16 %v2369, %v2363
        %v3828 = vpack.c.bf16 %v2370, %v2364
        %v3829 = vpack.c.bf16 %v2371, %v2365
        %v3830 = vpack.c.bf16 %v2372, %v2366
        %v3831 = vpack.c.bf16 %v2373, %v2367
        %v3832 = vpack.c.bf16 %v2374, %v2368
        %v3833 = vpack.c.bf16 %v2381, %v2375
        %v3834 = vpack.c.bf16 %v2382, %v2376
        %v3835 = vpack.c.bf16 %v2383, %v2377
        %v3836 = vpack.c.bf16 %v2384, %v2378
        %v3837 = vpack.c.bf16 %v2385, %v2379
        %v3838 = vpack.c.bf16 %v2386, %v2380
        %v3839 = vpack.c.bf16 %v2393, %v2387
        %v3840 = vpack.c.bf16 %v2394, %v2388
        %v3841 = vpack.c.bf16 %v2395, %v2389
        %v3842 = vpack.c.bf16 %v2396, %v2390
        %v3843 = vpack.c.bf16 %v2397, %v2391
        %v3844 = vpack.c.bf16 %v2398, %v2392
        %v3845 = vpack.c.bf16 %v2405, %v2399
        %v3846 = vpack.c.bf16 %v2406, %v2400
        %v3847 = vpack.c.bf16 %v2407, %v2401
        %v3848 = vpack.c.bf16 %v2408, %v2402
        %v3849 = vpack.c.bf16 %v2409, %v2403
        %v3850 = vpack.c.bf16 %v2410, %v2404
        %v3851 = vpack.c.bf16 %v2417, %v2411
        %v3852 = vpack.c.bf16 %v2418, %v2412
        %v3853 = vpack.c.bf16 %v2419, %v2413
        %v3854 = vpack.c.bf16 %v2420, %v2414
        %v3855 = vpack.c.bf16 %v2421, %v2415
        %v3856 = vpack.c.bf16 %v2422, %v2416
        %v3857 = vpack.c.bf16 %v2429, %v2423
        %v3858 = vpack.c.bf16 %v2430, %v2424
        %v3859 = vpack.c.bf16 %v2431, %v2425
        %v3860 = vpack.c.bf16 %v2432, %v2426
        %v3861 = vpack.c.bf16 %v2433, %v2427
        %v3862 = vpack.c.bf16 %v2434, %v2428
        %v3863 = vpack.c.bf16 %v2441, %v2435
        %v3864 = vpack.c.bf16 %v2442, %v2436
        %v3865 = vpack.c.bf16 %v2443, %v2437
        %v3866 = vpack.c.bf16 %v2444, %v2438
        %v3867 = vpack.c.bf16 %v2445, %v2439
        %v3868 = vpack.c.bf16 %v2446, %v2440
        %v3869 = vpack.c.bf16 %v2453, %v2447
        %v3870 = vpack.c.bf16 %v2454, %v2448
        %v3871 = vpack.c.bf16 %v2455, %v2449
        %v3872 = vpack.c.bf16 %v2456, %v2450
        %v3873 = vpack.c.bf16 %v2457, %v2451
        %v3874 = vpack.c.bf16 %v2458, %v2452
        %v3875 = vpack.c.bf16 %v2465, %v2459
        %v3876 = vpack.c.bf16 %v2466, %v2460
        %v3877 = vpack.c.bf16 %v2467, %v2461
        %v3878 = vpack.c.bf16 %v2468, %v2462
        %v3879 = vpack.c.bf16 %v2469, %v2463
        %v3880 = vpack.c.bf16 %v2470, %v2464
        %v3881 = vpack.c.bf16 %v2477, %v2471
        %v3882 = vpack.c.bf16 %v2478, %v2472
        %v3883 = vpack.c.bf16 %v2479, %v2473
        %v3884 = vpack.c.bf16 %v2480, %v2474
        %v3885 = vpack.c.bf16 %v2481, %v2475
        %v3886 = vpack.c.bf16 %v2482, %v2476
        %v3887 = vpack.c.bf16 %v2489, %v2483
        %v3888 = vpack.c.bf16 %v2490, %v2484
        %v3889 = vpack.c.bf16 %v2491, %v2485
        %v3890 = vpack.c.bf16 %v2492, %v2486
        %v3891 = vpack.c.bf16 %v2493, %v2487
        %v3892 = vpack.c.bf16 %v2494, %v2488
        %v3893 = vpack.c.bf16 %v2501, %v2495
        %v3894 = vpack.c.bf16 %v2502, %v2496
        %v3895 = vpack.c.bf16 %v2503, %v2497
        %v3896 = vpack.c.bf16 %v2504, %v2498
        %v3897 = vpack.c.bf16 %v2505, %v2499
        %v3898 = vpack.c.bf16 %v2506, %v2500
        %v3899 = vpack.c.bf16 %v2513, %v2507
        %v3900 = vpack.c.bf16 %v2514, %v2508
        %v3901 = vpack.c.bf16 %v2515, %v2509
        %v3902 = vpack.c.bf16 %v2516, %v2510
        %v3903 = vpack.c.bf16 %v2517, %v2511
        %v3904 = vpack.c.bf16 %v2518, %v2512
        %v3905 = vpack.c.bf16 %v2525, %v2519
        %v3906 = vpack.c.bf16 %v2526, %v2520
        %v3907 = vpack.c.bf16 %v2527, %v2521
        %v3908 = vpack.c.bf16 %v2528, %v2522
        %v3909 = vpack.c.bf16 %v2529, %v2523
        %v3910 = vpack.c.bf16 %v2530, %v2524
        %v3911 = vpack.c.bf16 %v2537, %v2531
        %v3912 = vpack.c.bf16 %v2538, %v2532
        %v3913 = vpack.c.bf16 %v2539, %v2533
        %v3914 = vpack.c.bf16 %v2540, %v2534
        %v3915 = vpack.c.bf16 %v2541, %v2535
        %v3916 = vpack.c.bf16 %v2542, %v2536
        %v3917 = vpack.c.bf16 %v2549, %v2543
        %v3918 = vpack.c.bf16 %v2550, %v2544
        %v3919 = vpack.c.bf16 %v2551, %v2545
        %v3920 = vpack.c.bf16 %v2552, %v2546
        %v3921 = vpack.c.bf16 %v2553, %v2547
        %v3922 = vpack.c.bf16 %v2554, %v2548
        %v3923 = vpack.c.bf16 %v2561, %v2555
        %v3924 = vpack.c.bf16 %v2562, %v2556
        %v3925 = vpack.c.bf16 %v2563, %v2557
        %v3926 = vpack.c.bf16 %v2564, %v2558
        %v3927 = vpack.c.bf16 %v2565, %v2559
        %v3928 = vpack.c.bf16 %v2566, %v2560
        %v3929 = vpack.c.bf16 %v2573, %v2567
        %v3930 = vpack.c.bf16 %v2574, %v2568
        %v3931 = vpack.c.bf16 %v2575, %v2569
        %v3932 = vpack.c.bf16 %v2576, %v2570
        %v3933 = vpack.c.bf16 %v2577, %v2571
        %v3934 = vpack.c.bf16 %v2578, %v2572
        %v3935 = vpack.c.bf16 %v2585, %v2579
        %v3936 = vpack.c.bf16 %v2586, %v2580
        %v3937 = vpack.c.bf16 %v2587, %v2581
        %v3938 = vpack.c.bf16 %v2588, %v2582
        %v3939 = vpack.c.bf16 %v2589, %v2583
        %v3940 = vpack.c.bf16 %v2590, %v2584
        %v3941 = vpack.c.bf16 %v2597, %v2591
        %v3942 = vpack.c.bf16 %v2598, %v2592
        %v3943 = vpack.c.bf16 %v2599, %v2593
        %v3944 = vpack.c.bf16 %v2600, %v2594
        %v3945 = vpack.c.bf16 %v2601, %v2595
        %v3946 = vpack.c.bf16 %v2602, %v2596
        %v3947 = vpack.c.bf16 %v2609, %v2603
        %v3948 = vpack.c.bf16 %v2610, %v2604
        %v3949 = vpack.c.bf16 %v2611, %v2605
        %v3950 = vpack.c.bf16 %v2612, %v2606
        %v3951 = vpack.c.bf16 %v2613, %v2607
        %v3952 = vpack.c.bf16 %v2614, %v2608
        %v3953 = vpack.c.bf16 %v2621, %v2615
        %v3954 = vpack.c.bf16 %v2622, %v2616
        %v3955 = vpack.c.bf16 %v2623, %v2617
        %v3956 = vpack.c.bf16 %v2624, %v2618
        %v3957 = vpack.c.bf16 %v2625, %v2619
        %v3958 = vpack.c.bf16 %v2626, %v2620
        %v3959 = vpack.c.bf16 %v2633, %v2627
        %v3960 = vpack.c.bf16 %v2634, %v2628
        %v3961 = vpack.c.bf16 %v2635, %v2629
        %v3962 = vpack.c.bf16 %v2636, %v2630
        %v3963 = vpack.c.bf16 %v2637, %v2631
        %v3964 = vpack.c.bf16 %v2638, %v2632
        %v3965 = vpack.c.bf16 %v2645, %v2639
        %v3966 = vpack.c.bf16 %v2646, %v2640
        %v3967 = vpack.c.bf16 %v2647, %v2641
        %v3968 = vpack.c.bf16 %v2648, %v2642
        %v3969 = vpack.c.bf16 %v2649, %v2643
        %v3970 = vpack.c.bf16 %v2650, %v2644
        %v3971 = vpack.c.bf16 %v2657, %v2651
        %v3972 = vpack.c.bf16 %v2658, %v2652
        %v3973 = vpack.c.bf16 %v2659, %v2653
        %v3974 = vpack.c.bf16 %v2660, %v2654
        %v3975 = vpack.c.bf16 %v2661, %v2655
        %v3976 = vpack.c.bf16 %v2662, %v2656
        %v3977 = vpack.c.bf16 %v2669, %v2663
        %v3978 = vpack.c.bf16 %v2670, %v2664
        %v3979 = vpack.c.bf16 %v2671, %v2665
        %v3980 = vpack.c.bf16 %v2672, %v2666
        %v3981 = vpack.c.bf16 %v2673, %v2667
        %v3982 = vpack.c.bf16 %v2674, %v2668
        %v3983 = vpack.c.bf16 %v2681, %v2675
        %v3984 = vpack.c.bf16 %v2682, %v2676
        %v3985 = vpack.c.bf16 %v2683, %v2677
        %v3986 = vpack.c.bf16 %v2684, %v2678
        %v3987 = vpack.c.bf16 %v2685, %v2679
        %v3988 = vpack.c.bf16 %v2686, %v2680
        %v3989 = vpack.c.bf16 %v2693, %v2687
        %v3990 = vpack.c.bf16 %v2694, %v2688
        %v3991 = vpack.c.bf16 %v2695, %v2689
        %v3992 = vpack.c.bf16 %v2696, %v2690
        %v3993 = vpack.c.bf16 %v2697, %v2691
        %v3994 = vpack.c.bf16 %v2698, %v2692
        %v3995 = vpack.c.bf16 %v2705, %v2699
        %v3996 = vpack.c.bf16 %v2706, %v2700
        %v3997 = vpack.c.bf16 %v2707, %v2701
        %v3998 = vpack.c.bf16 %v2708, %v2702
        %v3999 = vpack.c.bf16 %v2709, %v2703
        %v4000 = vpack.c.bf16 %v2710, %v2704
        %v4001 = vpack.c.bf16 %v2717, %v2711
        %v4002 = vpack.c.bf16 %v2718, %v2712
        %v4003 = vpack.c.bf16 %v2719, %v2713
        %v4004 = vpack.c.bf16 %v2720, %v2714
        %v4005 = vpack.c.bf16 %v2721, %v2715
        %v4006 = vpack.c.bf16 %v2722, %v2716
        %v4007 = vpack.c.bf16 %v2729, %v2723
        %v4008 = vpack.c.bf16 %v2730, %v2724
        %v4009 = vpack.c.bf16 %v2731, %v2725
        %v4010 = vpack.c.bf16 %v2732, %v2726
        %v4011 = vpack.c.bf16 %v2733, %v2727
        %v4012 = vpack.c.bf16 %v2734, %v2728
        %v4013 = vpack.c.bf16 %v2741, %v2735
        %v4014 = vpack.c.bf16 %v2742, %v2736
        %v4015 = vpack.c.bf16 %v2743, %v2737
        %v4016 = vpack.c.bf16 %v2744, %v2738
        %v4017 = vpack.c.bf16 %v2745, %v2739
        %v4018 = vpack.c.bf16 %v2746, %v2740
        %v4019 = vpack.c.bf16 %v2753, %v2747
        %v4020 = vpack.c.bf16 %v2754, %v2748
        %v4021 = vpack.c.bf16 %v2755, %v2749
        %v4022 = vpack.c.bf16 %v2756, %v2750
        %v4023 = vpack.c.bf16 %v2757, %v2751
        %v4024 = vpack.c.bf16 %v2758, %v2752
        %v4025 = vpack.c.bf16 %v2765, %v2759
        %v4026 = vpack.c.bf16 %v2766, %v2760
        %v4027 = vpack.c.bf16 %v2767, %v2761
        %v4028 = vpack.c.bf16 %v2768, %v2762
        %v4029 = vpack.c.bf16 %v2769, %v2763
        %v4030 = vpack.c.bf16 %v2770, %v2764
        %v4031 = vpack.c.bf16 %v2777, %v2771
        %v4032 = vpack.c.bf16 %v2778, %v2772
        %v4033 = vpack.c.bf16 %v2779, %v2773
        %v4034 = vpack.c.bf16 %v2780, %v2774
        %v4035 = vpack.c.bf16 %v2781, %v2775
        %v4036 = vpack.c.bf16 %v2782, %v2776
        %v4037 = vpack.c.bf16 %v2789, %v2783
        %v4038 = vpack.c.bf16 %v2790, %v2784
        %v4039 = vpack.c.bf16 %v2791, %v2785
        %v4040 = vpack.c.bf16 %v2792, %v2786
        %v4041 = vpack.c.bf16 %v2793, %v2787
        %v4042 = vpack.c.bf16 %v2794, %v2788
        %v4043 = vpack.c.bf16 %v2801, %v2795
        %v4044 = vpack.c.bf16 %v2802, %v2796
        %v4045 = vpack.c.bf16 %v2803, %v2797
        %v4046 = vpack.c.bf16 %v2804, %v2798
        %v4047 = vpack.c.bf16 %v2805, %v2799
        %v4048 = vpack.c.bf16 %v2806, %v2800
        %v4049 = vpack.c.bf16 %v2813, %v2807
        %v4050 = vpack.c.bf16 %v2814, %v2808
        %v4051 = vpack.c.bf16 %v2815, %v2809
        %v4052 = vpack.c.bf16 %v2816, %v2810
        %v4053 = vpack.c.bf16 %v2817, %v2811
        %v4054 = vpack.c.bf16 %v2818, %v2812
        %v4055 = vpack.c.bf16 %v2825, %v2819
        %v4056 = vpack.c.bf16 %v2826, %v2820
        %v4057 = vpack.c.bf16 %v2827, %v2821
        %v4058 = vpack.c.bf16 %v2828, %v2822
        %v4059 = vpack.c.bf16 %v2829, %v2823
        %v4060 = vpack.c.bf16 %v2830, %v2824
        %v4061 = vpack.c.bf16 %v2837, %v2831
        %v4062 = vpack.c.bf16 %v2838, %v2832
        %v4063 = vpack.c.bf16 %v2839, %v2833
        %v4064 = vpack.c.bf16 %v2840, %v2834
        %v4065 = vpack.c.bf16 %v2841, %v2835
        %v4066 = vpack.c.bf16 %v2842, %v2836
        %v4067 = vpack.c.bf16 %v2849, %v2843
        %v4068 = vpack.c.bf16 %v2850, %v2844
        %v4069 = vpack.c.bf16 %v2851, %v2845
        %v4070 = vpack.c.bf16 %v2852, %v2846
        %v4071 = vpack.c.bf16 %v2853, %v2847
        %v4072 = vpack.c.bf16 %v2854, %v2848
        %v4073 = vpack.c.bf16 %v2861, %v2855
        %v4074 = vpack.c.bf16 %v2862, %v2856
        %v4075 = vpack.c.bf16 %v2863, %v2857
        %v4076 = vpack.c.bf16 %v2864, %v2858
        %v4077 = vpack.c.bf16 %v2865, %v2859
        %v4078 = vpack.c.bf16 %v2866, %v2860
        %v4079 = vpack.c.bf16 %v2873, %v2867
        %v4080 = vpack.c.bf16 %v2874, %v2868
        %v4081 = vpack.c.bf16 %v2875, %v2869
        %v4082 = vpack.c.bf16 %v2876, %v2870
        %v4083 = vpack.c.bf16 %v2877, %v2871
        %v4084 = vpack.c.bf16 %v2878, %v2872
        %v4085 = vpack.c.bf16 %v2885, %v2879
        %v4086 = vpack.c.bf16 %v2886, %v2880
        %v4087 = vpack.c.bf16 %v2887, %v2881
        %v4088 = vpack.c.bf16 %v2888, %v2882
        %v4089 = vpack.c.bf16 %v2889, %v2883
        %v4090 = vpack.c.bf16 %v2890, %v2884
        %v4091 = vpack.c.bf16 %v2897, %v2891
        %v4092 = vpack.c.bf16 %v2898, %v2892
        %v4093 = vpack.c.bf16 %v2899, %v2893
        %v4094 = vpack.c.bf16 %v2900, %v2894
        %v4095 = vpack.c.bf16 %v2901, %v2895
        %v4096 = vpack.c.bf16 %v2902, %v2896
        %v4097 = vpack.c.bf16 %v2909, %v2903
        %v4098 = vpack.c.bf16 %v2910, %v2904
        %v4099 = vpack.c.bf16 %v2911, %v2905
        %v4100 = vpack.c.bf16 %v2912, %v2906
        %v4101 = vpack.c.bf16 %v2913, %v2907
        %v4102 = vpack.c.bf16 %v2914, %v2908
        %v4103 = vpack.c.bf16 %v2921, %v2915
        %v4104 = vpack.c.bf16 %v2922, %v2916
        %v4105 = vpack.c.bf16 %v2923, %v2917
        %v4106 = vpack.c.bf16 %v2924, %v2918
        %v4107 = vpack.c.bf16 %v2925, %v2919
        %v4108 = vpack.c.bf16 %v2926, %v2920
        %v4109 = vpack.c.bf16 %v2933, %v2927
        %v4110 = vpack.c.bf16 %v2934, %v2928
        %v4111 = vpack.c.bf16 %v2935, %v2929
        %v4112 = vpack.c.bf16 %v2936, %v2930
        %v4113 = vpack.c.bf16 %v2937, %v2931
        %v4114 = vpack.c.bf16 %v2938, %v2932
        %v4115 = vpack.c.bf16 %v2945, %v2939
        %v4116 = vpack.c.bf16 %v2946, %v2940
        %v4117 = vpack.c.bf16 %v2947, %v2941
        %v4118 = vpack.c.bf16 %v2948, %v2942
        %v4119 = vpack.c.bf16 %v2949, %v2943
        %v4120 = vpack.c.bf16 %v2950, %v2944
        %v4121 = vpack.c.bf16 %v2957, %v2951
        %v4122 = vpack.c.bf16 %v2958, %v2952
        %v4123 = vpack.c.bf16 %v2959, %v2953
        %v4124 = vpack.c.bf16 %v2960, %v2954
        %v4125 = vpack.c.bf16 %v2961, %v2955
        %v4126 = vpack.c.bf16 %v2962, %v2956
        %v4127 = vpack.c.bf16 %v2969, %v2963
        %v4128 = vpack.c.bf16 %v2970, %v2964
        %v4129 = vpack.c.bf16 %v2971, %v2965
        %v4130 = vpack.c.bf16 %v2972, %v2966
        %v4131 = vpack.c.bf16 %v2973, %v2967
        %v4132 = vpack.c.bf16 %v2974, %v2968
        %v4133 = vpack.c.bf16 %v2981, %v2975
        %v4134 = vpack.c.bf16 %v2982, %v2976
        %v4135 = vpack.c.bf16 %v2983, %v2977
        %v4136 = vpack.c.bf16 %v2984, %v2978
        %v4137 = vpack.c.bf16 %v2985, %v2979
        %v4138 = vpack.c.bf16 %v2986, %v2980
        %v4139 = vpack.c.bf16 %v2993, %v2987
        %v4140 = vpack.c.bf16 %v2994, %v2988
        %v4141 = vpack.c.bf16 %v2995, %v2989
        %v4142 = vpack.c.bf16 %v2996, %v2990
        %v4143 = vpack.c.bf16 %v2997, %v2991
        %v4144 = vpack.c.bf16 %v2998, %v2992
        %v4145 = vpack.c.bf16 %v3005, %v2999
        %v4146 = vpack.c.bf16 %v3006, %v3000
        %v4147 = vpack.c.bf16 %v3007, %v3001
        %v4148 = vpack.c.bf16 %v3008, %v3002
        %v4149 = vpack.c.bf16 %v3009, %v3003
        %v4150 = vpack.c.bf16 %v3010, %v3004
        %v4151 = vpack.c.bf16 %v3017, %v3011
        %v4152 = vpack.c.bf16 %v3018, %v3012
        %v4153 = vpack.c.bf16 %v3019, %v3013
        %v4154 = vpack.c.bf16 %v3020, %v3014
        %v4155 = vpack.c.bf16 %v3021, %v3015
        %v4156 = vpack.c.bf16 %v3022, %v3016
        %v4157 = vpack.c.bf16 %v3029, %v3023
        %v4158 = vpack.c.bf16 %v3030, %v3024
        %v4159 = vpack.c.bf16 %v3031, %v3025
        %v4160 = vpack.c.bf16 %v3032, %v3026
        %v4161 = vpack.c.bf16 %v3033, %v3027
        %v4162 = vpack.c.bf16 %v3034, %v3028
        %v4163 = vpack.c.bf16 %v3041, %v3035
        %v4164 = vpack.c.bf16 %v3042, %v3036
        %v4165 = vpack.c.bf16 %v3043, %v3037
        %v4166 = vpack.c.bf16 %v3044, %v3038
        %v4167 = vpack.c.bf16 %v3045, %v3039
        %v4168 = vpack.c.bf16 %v3046, %v3040
        %v4169 = vpack.c.bf16 %v3053, %v3047
        %v4170 = vpack.c.bf16 %v3054, %v3048
        %v4171 = vpack.c.bf16 %v3055, %v3049
        %v4172 = vpack.c.bf16 %v3056, %v3050
        %v4173 = vpack.c.bf16 %v3057, %v3051
        %v4174 = vpack.c.bf16 %v3058, %v3052
        %v4175 = vpack.c.bf16 %v3065, %v3059
        %v4176 = vpack.c.bf16 %v3066, %v3060
        %v4177 = vpack.c.bf16 %v3067, %v3061
        %v4178 = vpack.c.bf16 %v3068, %v3062
        %v4179 = vpack.c.bf16 %v3069, %v3063
        %v4180 = vpack.c.bf16 %v3070, %v3064
        %v4181 = vpack.c.bf16 %v3077, %v3071
        %v4182 = vpack.c.bf16 %v3078, %v3072
        %v4183 = vpack.c.bf16 %v3079, %v3073
        %v4184 = vpack.c.bf16 %v3080, %v3074
        %v4185 = vpack.c.bf16 %v3081, %v3075
        %v4186 = vpack.c.bf16 %v3082, %v3076
        %v4187 = vpack.c.bf16 %v3089, %v3083
        %v4188 = vpack.c.bf16 %v3090, %v3084
        %v4189 = vpack.c.bf16 %v3091, %v3085
        %v4190 = vpack.c.bf16 %v3092, %v3086
        %v4191 = vpack.c.bf16 %v3093, %v3087
        %v4192 = vpack.c.bf16 %v3094, %v3088
        %v4193 = vpack.c.bf16 %v3101, %v3095
        %v4194 = vpack.c.bf16 %v3102, %v3096
        %v4195 = vpack.c.bf16 %v3103, %v3097
        %v4196 = vpack.c.bf16 %v3104, %v3098
        %v4197 = vpack.c.bf16 %v3105, %v3099
        %v4198 = vpack.c.bf16 %v3106, %v3100
        %v4199 = vpack.c.bf16 %v3113, %v3107
        %v4200 = vpack.c.bf16 %v3114, %v3108
        %v4201 = vpack.c.bf16 %v3115, %v3109
        %v4202 = vpack.c.bf16 %v3116, %v3110
        %v4203 = vpack.c.bf16 %v3117, %v3111
        %v4204 = vpack.c.bf16 %v3118, %v3112
        %v4205 = vpack.c.bf16 %v3125, %v3119
        %v4206 = vpack.c.bf16 %v3126, %v3120
        %v4207 = vpack.c.bf16 %v3127, %v3121
        %v4208 = vpack.c.bf16 %v3128, %v3122
        %v4209 = vpack.c.bf16 %v3129, %v3123
        %v4210 = vpack.c.bf16 %v3130, %v3124
        %v4211 = vpack.c.bf16 %v3137, %v3131
        %v4212 = vpack.c.bf16 %v3138, %v3132
        %v4213 = vpack.c.bf16 %v3139, %v3133
        %v4214 = vpack.c.bf16 %v3140, %v3134
        %v4215 = vpack.c.bf16 %v3141, %v3135
        %v4216 = vpack.c.bf16 %v3142, %v3136
        %v4217 = vpack.c.bf16 %v3149, %v3143
        %v4218 = vpack.c.bf16 %v3150, %v3144
        %v4219 = vpack.c.bf16 %v3151, %v3145
        %v4220 = vpack.c.bf16 %v3152, %v3146
        %v4221 = vpack.c.bf16 %v3153, %v3147
        %v4222 = vpack.c.bf16 %v3154, %v3148
        %v4223 = vpack.c.bf16 %v3161, %v3155
        %v4224 = vpack.c.bf16 %v3162, %v3156
        %v4225 = vpack.c.bf16 %v3163, %v3157
        %v4226 = vpack.c.bf16 %v3164, %v3158
        %v4227 = vpack.c.bf16 %v3165, %v3159
        %v4228 = vpack.c.bf16 %v3166, %v3160
        %v4229 = vpack.c.bf16 %v3173, %v3167
        %v4230 = vpack.c.bf16 %v3174, %v3168
        %v4231 = vpack.c.bf16 %v3175, %v3169
        %v4232 = vpack.c.bf16 %v3176, %v3170
        %v4233 = vpack.c.bf16 %v3177, %v3171
        %v4234 = vpack.c.bf16 %v3178, %v3172
        %v4235 = vpack.c.bf16 %v3185, %v3179
        %v4236 = vpack.c.bf16 %v3186, %v3180
        %v4237 = vpack.c.bf16 %v3187, %v3181
        %v4238 = vpack.c.bf16 %v3188, %v3182
        %v4239 = vpack.c.bf16 %v3189, %v3183
        %v4240 = vpack.c.bf16 %v3190, %v3184
        %v4241 = vpack.c.bf16 %v3197, %v3191
        %v4242 = vpack.c.bf16 %v3198, %v3192
        %v4243 = vpack.c.bf16 %v3199, %v3193
        %v4244 = vpack.c.bf16 %v3200, %v3194
        %v4245 = vpack.c.bf16 %v3201, %v3195
        %v4246 = vpack.c.bf16 %v3202, %v3196
        %v4247 = vpack.c.bf16 %v3209, %v3203
        %v4248 = vpack.c.bf16 %v3210, %v3204
        %v4249 = vpack.c.bf16 %v3211, %v3205
        %v4250 = vpack.c.bf16 %v3212, %v3206
        %v4251 = vpack.c.bf16 %v3213, %v3207
        %v4252 = vpack.c.bf16 %v3214, %v3208
        %v4253 = vpack.c.bf16 %v3221, %v3215
        %v4254 = vpack.c.bf16 %v3222, %v3216
        %v4255 = vpack.c.bf16 %v3223, %v3217
        %v4256 = vpack.c.bf16 %v3224, %v3218
        %v4257 = vpack.c.bf16 %v3225, %v3219
        %v4258 = vpack.c.bf16 %v3226, %v3220
        %v4259 = vpack.c.bf16 %v3233, %v3227
        %v4260 = vpack.c.bf16 %v3234, %v3228
        %v4261 = vpack.c.bf16 %v3235, %v3229
        %v4262 = vpack.c.bf16 %v3236, %v3230
        %v4263 = vpack.c.bf16 %v3237, %v3231
        %v4264 = vpack.c.bf16 %v3238, %v3232
        %v4265 = vpack.c.bf16 %v3245, %v3239
        %v4266 = vpack.c.bf16 %v3246, %v3240
        %v4267 = vpack.c.bf16 %v3247, %v3241
        %v4268 = vpack.c.bf16 %v3248, %v3242
        %v4269 = vpack.c.bf16 %v3249, %v3243
        %v4270 = vpack.c.bf16 %v3250, %v3244
        %v4271 = vpack.c.bf16 %v3257, %v3251
        %v4272 = vpack.c.bf16 %v3258, %v3252
        %v4273 = vpack.c.bf16 %v3259, %v3253
        %v4274 = vpack.c.bf16 %v3260, %v3254
        %v4275 = vpack.c.bf16 %v3261, %v3255
        %v4276 = vpack.c.bf16 %v3262, %v3256
        %v4277 = vpack.c.bf16 %v3269, %v3263
        %v4278 = vpack.c.bf16 %v3270, %v3264
        %v4279 = vpack.c.bf16 %v3271, %v3265
        %v4280 = vpack.c.bf16 %v3272, %v3266
        %v4281 = vpack.c.bf16 %v3273, %v3267
        %v4282 = vpack.c.bf16 %v3274, %v3268
        %v4283 = vpack.c.bf16 %v3281, %v3275
        %v4284 = vpack.c.bf16 %v3282, %v3276
        %v4285 = vpack.c.bf16 %v3283, %v3277
        %v4286 = vpack.c.bf16 %v3284, %v3278
        %v4287 = vpack.c.bf16 %v3285, %v3279
        %v4288 = vpack.c.bf16 %v3286, %v3280
        %v4289 = vpack.c.bf16 %v3293, %v3287
        %v4290 = vpack.c.bf16 %v3294, %v3288
        %v4291 = vpack.c.bf16 %v3295, %v3289
        %v4292 = vpack.c.bf16 %v3296, %v3290
        %v4293 = vpack.c.bf16 %v3297, %v3291
        %v4294 = vpack.c.bf16 %v3298, %v3292
        %v4295 = vpack.c.bf16 %v3305, %v3299
        %v4296 = vpack.c.bf16 %v3306, %v3300
        %v4297 = vpack.c.bf16 %v3307, %v3301
        %v4298 = vpack.c.bf16 %v3308, %v3302
        %v4299 = vpack.c.bf16 %v3309, %v3303
        %v4300 = vpack.c.bf16 %v3310, %v3304
        %v4301 = vpack.c.bf16 %v3317, %v3311
        %v4302 = vpack.c.bf16 %v3318, %v3312
        %v4303 = vpack.c.bf16 %v3319, %v3313
        %v4304 = vpack.c.bf16 %v3320, %v3314
        %v4305 = vpack.c.bf16 %v3321, %v3315
        %v4306 = vpack.c.bf16 %v3322, %v3316
        %v4307 = vpack.c.bf16 %v3329, %v3323
        %v4308 = vpack.c.bf16 %v3330, %v3324
        %v4309 = vpack.c.bf16 %v3331, %v3325
        %v4310 = vpack.c.bf16 %v3332, %v3326
        %v4311 = vpack.c.bf16 %v3333, %v3327
        %v4312 = vpack.c.bf16 %v3334, %v3328
        %v4313 = vpack.c.bf16 %v3341, %v3335
        %v4314 = vpack.c.bf16 %v3342, %v3336
        %v4315 = vpack.c.bf16 %v3343, %v3337
        %v4316 = vpack.c.bf16 %v3344, %v3338
        %v4317 = vpack.c.bf16 %v3345, %v3339
        %v4318 = vpack.c.bf16 %v3346, %v3340
        %v4319 = vpack.c.bf16 %v3353, %v3347
        %v4320 = vpack.c.bf16 %v3354, %v3348
        %v4321 = vpack.c.bf16 %v3355, %v3349
        %v4322 = vpack.c.bf16 %v3356, %v3350
        %v4323 = vpack.c.bf16 %v3357, %v3351
        %v4324 = vpack.c.bf16 %v3358, %v3352
        %v4325 = vpack.c.bf16 %v3365, %v3359
        %v4326 = vpack.c.bf16 %v3366, %v3360
        %v4327 = vpack.c.bf16 %v3367, %v3361
        %v4328 = vpack.c.bf16 %v3368, %v3362
        %v4329 = vpack.c.bf16 %v3369, %v3363
        %v4330 = vpack.c.bf16 %v3370, %v3364
        %v4331 = vpack.c.bf16 %v3377, %v3371
        %v4332 = vpack.c.bf16 %v3378, %v3372
        %v4333 = vpack.c.bf16 %v3379, %v3373
        %v4334 = vpack.c.bf16 %v3380, %v3374
        %v4335 = vpack.c.bf16 %v3381, %v3375
        %v4336 = vpack.c.bf16 %v3382, %v3376
        %v4337 = vpack.c.bf16 %v3389, %v3383
        %v4338 = vpack.c.bf16 %v3390, %v3384
        %v4339 = vpack.c.bf16 %v3391, %v3385
        %v4340 = vpack.c.bf16 %v3392, %v3386
        %v4341 = vpack.c.bf16 %v3393, %v3387
        %v4342 = vpack.c.bf16 %v3394, %v3388
        %v4343 = vpack.c.bf16 %v3401, %v3395
        %v4344 = vpack.c.bf16 %v3402, %v3396
        %v4345 = vpack.c.bf16 %v3403, %v3397
        %v4346 = vpack.c.bf16 %v3404, %v3398
        %v4347 = vpack.c.bf16 %v3405, %v3399
        %v4348 = vpack.c.bf16 %v3406, %v3400
        %v4349 = vpack.c.bf16 %v3413, %v3407
        %v4350 = vpack.c.bf16 %v3414, %v3408
        %v4351 = vpack.c.bf16 %v3415, %v3409
        %v4352 = vpack.c.bf16 %v3416, %v3410
        %v4353 = vpack.c.bf16 %v3417, %v3411
        %v4354 = vpack.c.bf16 %v3418, %v3412
        %v4355 = vpack.c.bf16 %v3425, %v3419
        %v4356 = vpack.c.bf16 %v3426, %v3420
        %v4357 = vpack.c.bf16 %v3427, %v3421
        %v4358 = vpack.c.bf16 %v3428, %v3422
        %v4359 = vpack.c.bf16 %v3429, %v3423
        %v4360 = vpack.c.bf16 %v3430, %v3424
        %v4361 = vpack.c.bf16 %v3437, %v3431
        %v4362 = vpack.c.bf16 %v3438, %v3432
        %v4363 = vpack.c.bf16 %v3439, %v3433
        %v4364 = vpack.c.bf16 %v3440, %v3434
        %v4365 = vpack.c.bf16 %v3441, %v3435
        %v4366 = vpack.c.bf16 %v3442, %v3436
        %v4367 = vpack.c.bf16 %v3449, %v3443
        %v4368 = vpack.c.bf16 %v3450, %v3444
        %v4369 = vpack.c.bf16 %v3451, %v3445
        %v4370 = vpack.c.bf16 %v3452, %v3446
        %v4371 = vpack.c.bf16 %v3453, %v3447
        %v4372 = vpack.c.bf16 %v3454, %v3448
        %v4373 = vpack.c.bf16 %v3461, %v3455
        %v4374 = vpack.c.bf16 %v3462, %v3456
        %v4375 = vpack.c.bf16 %v3463, %v3457
        %v4376 = vpack.c.bf16 %v3464, %v3458
        %v4377 = vpack.c.bf16 %v3465, %v3459
        %v4378 = vpack.c.bf16 %v3466, %v3460
        %v4379 = vpack.c.bf16 %v3473, %v3467
        %v4380 = vpack.c.bf16 %v3474, %v3468
        %v4381 = vpack.c.bf16 %v3475, %v3469
        %v4382 = vpack.c.bf16 %v3476, %v3470
        %v4383 = vpack.c.bf16 %v3477, %v3471
        %v4384 = vpack.c.bf16 %v3478, %v3472
        %v4385 = vpack.c.bf16 %v3485, %v3479
        %v4386 = vpack.c.bf16 %v3486, %v3480
        %v4387 = vpack.c.bf16 %v3487, %v3481
        %v4388 = vpack.c.bf16 %v3488, %v3482
        %v4389 = vpack.c.bf16 %v3489, %v3483
        %v4390 = vpack.c.bf16 %v3490, %v3484
        %v4391 = vpack.c.bf16 %v3497, %v3491
        %v4392 = vpack.c.bf16 %v3498, %v3492
        %v4393 = vpack.c.bf16 %v3499, %v3493
        %v4394 = vpack.c.bf16 %v3500, %v3494
        %v4395 = vpack.c.bf16 %v3501, %v3495
        %v4396 = vpack.c.bf16 %v3502, %v3496
        %v4397 = vpack.c.bf16 %v3509, %v3503
        %v4398 = vpack.c.bf16 %v3510, %v3504
        %v4399 = vpack.c.bf16 %v3511, %v3505
        %v4400 = vpack.c.bf16 %v3512, %v3506
        %v4401 = vpack.c.bf16 %v3513, %v3507
        %v4402 = vpack.c.bf16 %v3514, %v3508
        %v4403 = vpack.c.bf16 %v3521, %v3515
        %v4404 = vpack.c.bf16 %v3522, %v3516
        %v4405 = vpack.c.bf16 %v3523, %v3517
        %v4406 = vpack.c.bf16 %v3524, %v3518
        %v4407 = vpack.c.bf16 %v3525, %v3519
        %v4408 = vpack.c.bf16 %v3526, %v3520
        %v4409 = vpack.c.bf16 %v3533, %v3527
        %v4410 = vpack.c.bf16 %v3534, %v3528
        %v4411 = vpack.c.bf16 %v3535, %v3529
        %v4412 = vpack.c.bf16 %v3536, %v3530
        %v4413 = vpack.c.bf16 %v3537, %v3531
        %v4414 = vpack.c.bf16 %v3538, %v3532
        %v4415 = vpack.c.bf16 %v3545, %v3539
        %v4416 = vpack.c.bf16 %v3546, %v3540
        %v4417 = vpack.c.bf16 %v3547, %v3541
        %v4418 = vpack.c.bf16 %v3548, %v3542
        %v4419 = vpack.c.bf16 %v3549, %v3543
        %v4420 = vpack.c.bf16 %v3550, %v3544
        %v4421 = vpack.c.bf16 %v3557, %v3551
        %v4422 = vpack.c.bf16 %v3558, %v3552
        %v4423 = vpack.c.bf16 %v3559, %v3553
        %v4424 = vpack.c.bf16 %v3560, %v3554
        %v4425 = vpack.c.bf16 %v3561, %v3555
        %v4426 = vpack.c.bf16 %v3562, %v3556
        %v4427 = vpack.c.bf16 %v3569, %v3563
        %v4428 = vpack.c.bf16 %v3570, %v3564
        %v4429 = vpack.c.bf16 %v3571, %v3565
        %v4430 = vpack.c.bf16 %v3572, %v3566
        %v4431 = vpack.c.bf16 %v3573, %v3567
        %v4432 = vpack.c.bf16 %v3574, %v3568
        %v4433 = vpack.c.bf16 %v3581, %v3575
        %v4434 = vpack.c.bf16 %v3582, %v3576
        %v4435 = vpack.c.bf16 %v3583, %v3577
        %v4436 = vpack.c.bf16 %v3584, %v3578
        %v4437 = vpack.c.bf16 %v3585, %v3579
        %v4438 = vpack.c.bf16 %v3586, %v3580
        %v4439 = vpack.c.bf16 %v3593, %v3587
        %v4440 = vpack.c.bf16 %v3594, %v3588
        %v4441 = vpack.c.bf16 %v3595, %v3589
        %v4442 = vpack.c.bf16 %v3596, %v3590
        %v4443 = vpack.c.bf16 %v3597, %v3591
        %v4444 = vpack.c.bf16 %v3598, %v3592
        %v4445 = vpack.c.bf16 %v3605, %v3599
        %v4446 = vpack.c.bf16 %v3606, %v3600
        %v4447 = vpack.c.bf16 %v3607, %v3601
        %v4448 = vpack.c.bf16 %v3608, %v3602
        %v4449 = vpack.c.bf16 %v3609, %v3603
        %v4450 = vpack.c.bf16 %v3610, %v3604
        %v4451 = vpack.c.bf16 %v3617, %v3611
        %v4452 = vpack.c.bf16 %v3618, %v3612
        %v4453 = vpack.c.bf16 %v3619, %v3613
        %v4454 = vpack.c.bf16 %v3620, %v3614
        %v4455 = vpack.c.bf16 %v3621, %v3615
        %v4456 = vpack.c.bf16 %v3622, %v3616
        %v4457 = vpack.c.bf16 %v3629, %v3623
        %v4458 = vpack.c.bf16 %v3630, %v3624
        %v4459 = vpack.c.bf16 %v3631, %v3625
        %v4460 = vpack.c.bf16 %v3632, %v3626
        %v4461 = vpack.c.bf16 %v3633, %v3627
        %v4462 = vpack.c.bf16 %v3634, %v3628
        %v4463 = vpack.c.bf16 %v3641, %v3635
        %v4464 = vpack.c.bf16 %v3642, %v3636
        %v4465 = vpack.c.bf16 %v3643, %v3637
        %v4466 = vpack.c.bf16 %v3644, %v3638
        %v4467 = vpack.c.bf16 %v3645, %v3639
        %v4468 = vpack.c.bf16 %v3646, %v3640
        %v4469 = vpack.c.bf16 %v3653, %v3647
        %v4470 = vpack.c.bf16 %v3654, %v3648
        %v4471 = vpack.c.bf16 %v3655, %v3649
        %v4472 = vpack.c.bf16 %v3656, %v3650
        %v4473 = vpack.c.bf16 %v3657, %v3651
        %v4474 = vpack.c.bf16 %v3658, %v3652
        %v4475 = vpack.c.bf16 %v3665, %v3659
        %v4476 = vpack.c.bf16 %v3666, %v3660
        %v4477 = vpack.c.bf16 %v3667, %v3661
        %v4478 = vpack.c.bf16 %v3668, %v3662
        %v4479 = vpack.c.bf16 %v3669, %v3663
        %v4480 = vpack.c.bf16 %v3670, %v3664
        %v4481 = vpack.c.bf16 %v3677, %v3671
        %v4482 = vpack.c.bf16 %v3678, %v3672
        %v4483 = vpack.c.bf16 %v3679, %v3673
        %v4484 = vpack.c.bf16 %v3680, %v3674
        %v4485 = vpack.c.bf16 %v3681, %v3675
        %v4486 = vpack.c.bf16 %v3682, %v3676
        %v4487 = vpack.c.bf16 %v3689, %v3683
        %v4488 = vpack.c.bf16 %v3690, %v3684
        %v4489 = vpack.c.bf16 %v3691, %v3685
        %v4490 = vpack.c.bf16 %v3692, %v3686
        %v4491 = vpack.c.bf16 %v3693, %v3687
        %v4492 = vpack.c.bf16 %v3694, %v3688
        %v4493 = vpack.c.bf16 %v3701, %v3695
        %v4494 = vpack.c.bf16 %v3702, %v3696
        %v4495 = vpack.c.bf16 %v3703, %v3697
        %v4496 = vpack.c.bf16 %v3704, %v3698
        %v4497 = vpack.c.bf16 %v3705, %v3699
        %v4498 = vpack.c.bf16 %v3706, %v3700
        %v4499 = vpack.c.bf16 %v3713, %v3707
        %v4500 = vpack.c.bf16 %v3714, %v3708
        %v4501 = vpack.c.bf16 %v3715, %v3709
        %v4502 = vpack.c.bf16 %v3716, %v3710
        %v4503 = vpack.c.bf16 %v3717, %v3711
        %v4504 = vpack.c.bf16 %v3718, %v3712
        %v4505 = vpack.c.bf16 %v3725, %v3719
        %v4506 = vpack.c.bf16 %v3726, %v3720
        %v4507 = vpack.c.bf16 %v3727, %v3721
        %v4508 = vpack.c.bf16 %v3728, %v3722
        %v4509 = vpack.c.bf16 %v3729, %v3723
        %v4510 = vpack.c.bf16 %v3730, %v3724
        %v4511 = vpack.c.bf16 %v3737, %v3731
        %v4512 = vpack.c.bf16 %v3738, %v3732
        %v4513 = vpack.c.bf16 %v3739, %v3733
        %v4514 = vpack.c.bf16 %v3740, %v3734
        %v4515 = vpack.c.bf16 %v3741, %v3735
        %v4516 = vpack.c.bf16 %v3742, %v3736
        %v4517 = vpack.c.bf16 %v3749, %v3743
        %v4518 = vpack.c.bf16 %v3750, %v3744
        %v4519 = vpack.c.bf16 %v3751, %v3745
        %v4520 = vpack.c.bf16 %v3752, %v3746
        %v4521 = vpack.c.bf16 %v3753, %v3747
        %v4522 = vpack.c.bf16 %v3754, %v3748
        %v4523 = vld [vmem:[%s0] sm:$0xff]
        %v4524 = vld [vmem:[%s0 + $0x8] sm:$0xff]
        %4526 = vst [vmem:[#allocation1] ss:$9 sm:$0xff] %v4523
        %v4527 = vld [vmem:[#allocation1] sm:$0xff]
        %v4528 = vld [vmem:[#allocation1 + $0x9] sm:$0xff]
        %v4529 = vld [vmem:[#allocation1 + $0x12] sm:$0xff]
        %v4530 = vld [vmem:[#allocation1 + $0x1b] sm:$0xff]
        %v4531 = vld [vmem:[#allocation1 + $0x24] sm:$0xff]
        %v4532 = vld [vmem:[#allocation1 + $0x2d] sm:$0xff]
        %v4533 = vld [vmem:[#allocation1 + $0x36] sm:$0xff]
        %v4534 = vld [vmem:[#allocation1 + $0x3f] sm:$0xff]
        %4536 = vst [vmem:[#allocation1] ss:$9 sm:$0xff] %v4524
        %v4537 = vld [vmem:[#allocation1] sm:$0xff]
        %v4538 = vld [vmem:[#allocation1 + $0x9] sm:$0xff]
        %v4539 = vld [vmem:[#allocation1 + $0x12] sm:$0xff]
        %v4540 = vld [vmem:[#allocation1 + $0x1b] sm:$0xff]
        %v4541 = vld [vmem:[#allocation1 + $0x24] sm:$0xff]
        %v4542 = vld [vmem:[#allocation1 + $0x2d] sm:$0xff]
        %v4543 = vld [vmem:[#allocation1 + $0x36] sm:$0xff]
        %v4544 = vld [vmem:[#allocation1 + $0x3f] sm:$0xff]
        %4561 = vmatpush.bf16.msra.mxu0 %v3797
        %4562 = vmatpush.bf16.msra.mxu0 %v3791
        %4563 = vmatpush.bf16.msra.mxu0 %v3785
        %4564 = vmatpush.bf16.msra.mxu0 %v3779
        %4565 = vmatpush.bf16.msra.mxu0 %v3773
        %4566 = vmatpush.bf16.msra.mxu0 %v3767
        %4567 = vmatpush.bf16.msra.mxu0 %v3761
        %4568 = vmatpush.bf16.msra.mxu0 %v3755
        %4569 = vmatmul.bf16.gmra.mxu0 %v4527
        %v4570 = vpop.f32.mrf.mxu0
        %v4571 = vadd.f32 0.0, %v4570
        %v4572 = vpop.f32.mrf.mxu0
        %4573 = vdwg.mxu0
        %4574 = vmatpush.bf16.msra.mxu0 %v3845
        %4575 = vmatpush.bf16.msra.mxu0 %v3839
        %4576 = vmatpush.bf16.msra.mxu0 %v3833
        %4577 = vmatpush.bf16.msra.mxu0 %v3827
        %4578 = vmatpush.bf16.msra.mxu0 %v3821
        %4579 = vmatpush.bf16.msra.mxu0 %v3815
        %4580 = vmatpush.bf16.msra.mxu0 %v3809
        %4581 = vmatpush.bf16.msra.mxu0 %v3803
        %4582 = vmatmul.bf16.gmra.mxu0 %v4528
        %v4583 = vpop.f32.mrf.mxu0
        %v4584 = vadd.f32 %v4571, %v4583
        %v4585 = vpop.f32.mrf.mxu0
        %4586 = vdwg.mxu0
        %4587 = vmatpush.bf16.msra.mxu0 %v3893
        %4588 = vmatpush.bf16.msra.mxu0 %v3887
        %4589 = vmatpush.bf16.msra.mxu0 %v3881
        %4590 = vmatpush.bf16.msra.mxu0 %v3875
        %4591 = vmatpush.bf16.msra.mxu0 %v3869
        %4592 = vmatpush.bf16.msra.mxu0 %v3863
        %4593 = vmatpush.bf16.msra.mxu0 %v3857
        %4594 = vmatpush.bf16.msra.mxu0 %v3851
        %4595 = vmatmul.bf16.gmra.mxu0 %v4529
        %v4596 = vpop.f32.mrf.mxu0
        %v4597 = vadd.f32 %v4584, %v4596
        %v4598 = vpop.f32.mrf.mxu0
        %4599 = vdwg.mxu0
        %4600 = vmatpush.bf16.msra.mxu0 %v3941
        %4601 = vmatpush.bf16.msra.mxu0 %v3935
        %4602 = vmatpush.bf16.msra.mxu0 %v3929
        %4603 = vmatpush.bf16.msra.mxu0 %v3923
        %4604 = vmatpush.bf16.msra.mxu0 %v3917
        %4605 = vmatpush.bf16.msra.mxu0 %v3911
        %4606 = vmatpush.bf16.msra.mxu0 %v3905
        %4607 = vmatpush.bf16.msra.mxu0 %v3899
        %4608 = vmatmul.bf16.gmra.mxu0 %v4530
        %v4609 = vpop.f32.mrf.mxu0
        %v4610 = vadd.f32 %v4597, %v4609
        %v4611 = vpop.f32.mrf.mxu0
        %4612 = vdwg.mxu0
        %4613 = vmatpush.bf16.msra.mxu0 %v3989
        %4614 = vmatpush.bf16.msra.mxu0 %v3983
        %4615 = vmatpush.bf16.msra.mxu0 %v3977
        %4616 = vmatpush.bf16.msra.mxu0 %v3971
        %4617 = vmatpush.bf16.msra.mxu0 %v3965
        %4618 = vmatpush.bf16.msra.mxu0 %v3959
        %4619 = vmatpush.bf16.msra.mxu0 %v3953
        %4620 = vmatpush.bf16.msra.mxu0 %v3947
        %4621 = vmatmul.bf16.gmra.mxu0 %v4531
        %v4622 = vpop.f32.mrf.mxu0
        %v4623 = vadd.f32 %v4610, %v4622
        %v4624 = vpop.f32.mrf.mxu0
        %4625 = vdwg.mxu0
        %4626 = vmatpush.bf16.msra.mxu0 %v4037
        %4627 = vmatpush.bf16.msra.mxu0 %v4031
        %4628 = vmatpush.bf16.msra.mxu0 %v4025
        %4629 = vmatpush.bf16.msra.mxu0 %v4019
        %4630 = vmatpush.bf16.msra.mxu0 %v4013
        %4631 = vmatpush.bf16.msra.mxu0 %v4007
        %4632 = vmatpush.bf16.msra.mxu0 %v4001
        %4633 = vmatpush.bf16.msra.mxu0 %v3995
        %4634 = vmatmul.bf16.gmra.mxu0 %v4532
        %v4635 = vpop.f32.mrf.mxu0
        %v4636 = vadd.f32 %v4623, %v4635
        %v4637 = vpop.f32.mrf.mxu0
        %4638 = vdwg.mxu0
        %4639 = vmatpush.bf16.msra.mxu0 %v4085
        %4640 = vmatpush.bf16.msra.mxu0 %v4079
        %4641 = vmatpush.bf16.msra.mxu0 %v4073
        %4642 = vmatpush.bf16.msra.mxu0 %v4067
        %4643 = vmatpush.bf16.msra.mxu0 %v4061
        %4644 = vmatpush.bf16.msra.mxu0 %v4055
        %4645 = vmatpush.bf16.msra.mxu0 %v4049
        %4646 = vmatpush.bf16.msra.mxu0 %v4043
        %4647 = vmatmul.bf16.gmra.mxu0 %v4533
        %v4648 = vpop.f32.mrf.mxu0
        %v4649 = vadd.f32 %v4636, %v4648
        %v4650 = vpop.f32.mrf.mxu0
        %4651 = vdwg.mxu0
        %4652 = vmatpush.bf16.msra.mxu0 %v4133
        %4653 = vmatpush.bf16.msra.mxu0 %v4127
        %4654 = vmatpush.bf16.msra.mxu0 %v4121
        %4655 = vmatpush.bf16.msra.mxu0 %v4115
        %4656 = vmatpush.bf16.msra.mxu0 %v4109
        %4657 = vmatpush.bf16.msra.mxu0 %v4103
        %4658 = vmatpush.bf16.msra.mxu0 %v4097
        %4659 = vmatpush.bf16.msra.mxu0 %v4091
        %4660 = vmatmul.bf16.gmra.mxu0 %v4534
        %v4661 = vpop.f32.mrf.mxu0
        %v4662 = vadd.f32 %v4649, %v4661
        %v4663 = vpop.f32.mrf.mxu0
        %4664 = vdwg.mxu0
        %4665 = vmatpush.bf16.msra.mxu0 %v4181
        %4666 = vmatpush.bf16.msra.mxu0 %v4175
        %4667 = vmatpush.bf16.msra.mxu0 %v4169
        %4668 = vmatpush.bf16.msra.mxu0 %v4163
        %4669 = vmatpush.bf16.msra.mxu0 %v4157
        %4670 = vmatpush.bf16.msra.mxu0 %v4151
        %4671 = vmatpush.bf16.msra.mxu0 %v4145
        %4672 = vmatpush.bf16.msra.mxu0 %v4139
        %4673 = vmatmul.bf16.gmra.mxu0 %v4537
        %v4674 = vpop.f32.mrf.mxu0
        %v4675 = vadd.f32 %v4662, %v4674
        %v4676 = vpop.f32.mrf.mxu0
        %4677 = vdwg.mxu0
        %4678 = vmatpush.bf16.msra.mxu0 %v4229
        %4679 = vmatpush.bf16.msra.mxu0 %v4223
        %4680 = vmatpush.bf16.msra.mxu0 %v4217
        %4681 = vmatpush.bf16.msra.mxu0 %v4211
        %4682 = vmatpush.bf16.msra.mxu0 %v4205
        %4683 = vmatpush.bf16.msra.mxu0 %v4199
        %4684 = vmatpush.bf16.msra.mxu0 %v4193
        %4685 = vmatpush.bf16.msra.mxu0 %v4187
        %4686 = vmatmul.bf16.gmra.mxu0 %v4538
        %v4687 = vpop.f32.mrf.mxu0
        %v4688 = vadd.f32 %v4675, %v4687
        %v4689 = vpop.f32.mrf.mxu0
        %4690 = vdwg.mxu0
        %4691 = vmatpush.bf16.msra.mxu0 %v4277
        %4692 = vmatpush.bf16.msra.mxu0 %v4271
        %4693 = vmatpush.bf16.msra.mxu0 %v4265
        %4694 = vmatpush.bf16.msra.mxu0 %v4259
        %4695 = vmatpush.bf16.msra.mxu0 %v4253
        %4696 = vmatpush.bf16.msra.mxu0 %v4247
        %4697 = vmatpush.bf16.msra.mxu0 %v4241
        %4698 = vmatpush.bf16.msra.mxu0 %v4235
        %4699 = vmatmul.bf16.gmra.mxu0 %v4539
        %v4700 = vpop.f32.mrf.mxu0
        %v4701 = vadd.f32 %v4688, %v4700
        %v4702 = vpop.f32.mrf.mxu0
        %4703 = vdwg.mxu0
        %4704 = vmatpush.bf16.msra.mxu0 %v4325
        %4705 = vmatpush.bf16.msra.mxu0 %v4319
        %4706 = vmatpush.bf16.msra.mxu0 %v4313
        %4707 = vmatpush.bf16.msra.mxu0 %v4307
        %4708 = vmatpush.bf16.msra.mxu0 %v4301
        %4709 = vmatpush.bf16.msra.mxu0 %v4295
        %4710 = vmatpush.bf16.msra.mxu0 %v4289
        %4711 = vmatpush.bf16.msra.mxu0 %v4283
        %4712 = vmatmul.bf16.gmra.mxu0 %v4540
        %v4713 = vpop.f32.mrf.mxu0
        %v4714 = vadd.f32 %v4701, %v4713
        %v4715 = vpop.f32.mrf.mxu0
        %4716 = vdwg.mxu0
        %4717 = vmatpush.bf16.msra.mxu0 %v4373
        %4718 = vmatpush.bf16.msra.mxu0 %v4367
        %4719 = vmatpush.bf16.msra.mxu0 %v4361
        %4720 = vmatpush.bf16.msra.mxu0 %v4355
        %4721 = vmatpush.bf16.msra.mxu0 %v4349
        %4722 = vmatpush.bf16.msra.mxu0 %v4343
        %4723 = vmatpush.bf16.msra.mxu0 %v4337
        %4724 = vmatpush.bf16.msra.mxu0 %v4331
        %4725 = vmatmul.bf16.gmra.mxu0 %v4541
        %v4726 = vpop.f32.mrf.mxu0
        %v4727 = vadd.f32 %v4714, %v4726
        %v4728 = vpop.f32.mrf.mxu0
        %4729 = vdwg.mxu0
        %4730 = vmatpush.bf16.msra.mxu0 %v4421
        %4731 = vmatpush.bf16.msra.mxu0 %v4415
        %4732 = vmatpush.bf16.msra.mxu0 %v4409
        %4733 = vmatpush.bf16.msra.mxu0 %v4403
        %4734 = vmatpush.bf16.msra.mxu0 %v4397
        %4735 = vmatpush.bf16.msra.mxu0 %v4391
        %4736 = vmatpush.bf16.msra.mxu0 %v4385
        %4737 = vmatpush.bf16.msra.mxu0 %v4379
        %4738 = vmatmul.bf16.gmra.mxu0 %v4542
        %v4739 = vpop.f32.mrf.mxu0
        %v4740 = vadd.f32 %v4727, %v4739
        %v4741 = vpop.f32.mrf.mxu0
        %4742 = vdwg.mxu0
        %4743 = vmatpush.bf16.msra.mxu0 %v4469
        %4744 = vmatpush.bf16.msra.mxu0 %v4463
        %4745 = vmatpush.bf16.msra.mxu0 %v4457
        %4746 = vmatpush.bf16.msra.mxu0 %v4451
        %4747 = vmatpush.bf16.msra.mxu0 %v4445
        %4748 = vmatpush.bf16.msra.mxu0 %v4439
        %4749 = vmatpush.bf16.msra.mxu0 %v4433
        %4750 = vmatpush.bf16.msra.mxu0 %v4427
        %4751 = vmatmul.bf16.gmra.mxu0 %v4543
        %v4752 = vpop.f32.mrf.mxu0
        %v4753 = vadd.f32 %v4740, %v4752
        %v4754 = vpop.f32.mrf.mxu0
        %4755 = vdwg.mxu0
        %4756 = vmatpush.bf16.msra.mxu0 %v4517
        %4757 = vmatpush.bf16.msra.mxu0 %v4511
        %4758 = vmatpush.bf16.msra.mxu0 %v4505
        %4759 = vmatpush.bf16.msra.mxu0 %v4499
        %4760 = vmatpush.bf16.msra.mxu0 %v4493
        %4761 = vmatpush.bf16.msra.mxu0 %v4487
        %4762 = vmatpush.bf16.msra.mxu0 %v4481
        %4763 = vmatpush.bf16.msra.mxu0 %v4475
        %4764 = vmatmul.bf16.gmra.mxu0 %v4544
        %v4765 = vpop.f32.mrf.mxu0
        %v4766 = vadd.f32 %v4753, %v4765
        %v4767 = vpop.f32.mrf.mxu0
        %4768 = vdwg.mxu0
        %4769 = vmatpush.bf16.msra.mxu0 %v3798
        %4770 = vmatpush.bf16.msra.mxu0 %v3792
        %4771 = vmatpush.bf16.msra.mxu0 %v3786
        %4772 = vmatpush.bf16.msra.mxu0 %v3780
        %4773 = vmatpush.bf16.msra.mxu0 %v3774
        %4774 = vmatpush.bf16.msra.mxu0 %v3768
        %4775 = vmatpush.bf16.msra.mxu0 %v3762
        %4776 = vmatpush.bf16.msra.mxu0 %v3756
        %4777 = vmatmul.bf16.gmra.mxu0 %v4527
        %v4778 = vpop.f32.mrf.mxu0
        %v4779 = vadd.f32 0.0, %v4778
        %v4780 = vpop.f32.mrf.mxu0
        %4781 = vdwg.mxu0
        %4782 = vmatpush.bf16.msra.mxu0 %v3846
        %4783 = vmatpush.bf16.msra.mxu0 %v3840
        %4784 = vmatpush.bf16.msra.mxu0 %v3834
        %4785 = vmatpush.bf16.msra.mxu0 %v3828
        %4786 = vmatpush.bf16.msra.mxu0 %v3822
        %4787 = vmatpush.bf16.msra.mxu0 %v3816
        %4788 = vmatpush.bf16.msra.mxu0 %v3810
        %4789 = vmatpush.bf16.msra.mxu0 %v3804
        %4790 = vmatmul.bf16.gmra.mxu0 %v4528
        %v4791 = vpop.f32.mrf.mxu0
        %v4792 = vadd.f32 %v4779, %v4791
        %v4793 = vpop.f32.mrf.mxu0
        %4794 = vdwg.mxu0
        %4795 = vmatpush.bf16.msra.mxu0 %v3894
        %4796 = vmatpush.bf16.msra.mxu0 %v3888
        %4797 = vmatpush.bf16.msra.mxu0 %v3882
        %4798 = vmatpush.bf16.msra.mxu0 %v3876
        %4799 = vmatpush.bf16.msra.mxu0 %v3870
        %4800 = vmatpush.bf16.msra.mxu0 %v3864
        %4801 = vmatpush.bf16.msra.mxu0 %v3858
        %4802 = vmatpush.bf16.msra.mxu0 %v3852
        %4803 = vmatmul.bf16.gmra.mxu0 %v4529
        %v4804 = vpop.f32.mrf.mxu0
        %v4805 = vadd.f32 %v4792, %v4804
        %v4806 = vpop.f32.mrf.mxu0
        %4807 = vdwg.mxu0
        %4808 = vmatpush.bf16.msra.mxu0 %v3942
        %4809 = vmatpush.bf16.msra.mxu0 %v3936
        %4810 = vmatpush.bf16.msra.mxu0 %v3930
        %4811 = vmatpush.bf16.msra.mxu0 %v3924
        %4812 = vmatpush.bf16.msra.mxu0 %v3918
        %4813 = vmatpush.bf16.msra.mxu0 %v3912
        %4814 = vmatpush.bf16.msra.mxu0 %v3906
        %4815 = vmatpush.bf16.msra.mxu0 %v3900
        %4816 = vmatmul.bf16.gmra.mxu0 %v4530
        %v4817 = vpop.f32.mrf.mxu0
        %v4818 = vadd.f32 %v4805, %v4817
        %v4819 = vpop.f32.mrf.mxu0
        %4820 = vdwg.mxu0
        %4821 = vmatpush.bf16.msra.mxu0 %v3990
        %4822 = vmatpush.bf16.msra.mxu0 %v3984
        %4823 = vmatpush.bf16.msra.mxu0 %v3978
        %4824 = vmatpush.bf16.msra.mxu0 %v3972
        %4825 = vmatpush.bf16.msra.mxu0 %v3966
        %4826 = vmatpush.bf16.msra.mxu0 %v3960
        %4827 = vmatpush.bf16.msra.mxu0 %v3954
        %4828 = vmatpush.bf16.msra.mxu0 %v3948
        %4829 = vmatmul.bf16.gmra.mxu0 %v4531
        %v4830 = vpop.f32.mrf.mxu0
        %v4831 = vadd.f32 %v4818, %v4830
        %v4832 = vpop.f32.mrf.mxu0
        %4833 = vdwg.mxu0
        %4834 = vmatpush.bf16.msra.mxu0 %v4038
        %4835 = vmatpush.bf16.msra.mxu0 %v4032
        %4836 = vmatpush.bf16.msra.mxu0 %v4026
        %4837 = vmatpush.bf16.msra.mxu0 %v4020
        %4838 = vmatpush.bf16.msra.mxu0 %v4014
        %4839 = vmatpush.bf16.msra.mxu0 %v4008
        %4840 = vmatpush.bf16.msra.mxu0 %v4002
        %4841 = vmatpush.bf16.msra.mxu0 %v3996
        %4842 = vmatmul.bf16.gmra.mxu0 %v4532
        %v4843 = vpop.f32.mrf.mxu0
        %v4844 = vadd.f32 %v4831, %v4843
        %v4845 = vpop.f32.mrf.mxu0
        %4846 = vdwg.mxu0
        %4847 = vmatpush.bf16.msra.mxu0 %v4086
        %4848 = vmatpush.bf16.msra.mxu0 %v4080
        %4849 = vmatpush.bf16.msra.mxu0 %v4074
        %4850 = vmatpush.bf16.msra.mxu0 %v4068
        %4851 = vmatpush.bf16.msra.mxu0 %v4062
        %4852 = vmatpush.bf16.msra.mxu0 %v4056
        %4853 = vmatpush.bf16.msra.mxu0 %v4050
        %4854 = vmatpush.bf16.msra.mxu0 %v4044
        %4855 = vmatmul.bf16.gmra.mxu0 %v4533
        %v4856 = vpop.f32.mrf.mxu0
        %v4857 = vadd.f32 %v4844, %v4856
        %v4858 = vpop.f32.mrf.mxu0
        %4859 = vdwg.mxu0
        %4860 = vmatpush.bf16.msra.mxu0 %v4134
        %4861 = vmatpush.bf16.msra.mxu0 %v4128
        %4862 = vmatpush.bf16.msra.mxu0 %v4122
        %4863 = vmatpush.bf16.msra.mxu0 %v4116
        %4864 = vmatpush.bf16.msra.mxu0 %v4110
        %4865 = vmatpush.bf16.msra.mxu0 %v4104
        %4866 = vmatpush.bf16.msra.mxu0 %v4098
        %4867 = vmatpush.bf16.msra.mxu0 %v4092
        %4868 = vmatmul.bf16.gmra.mxu0 %v4534
        %v4869 = vpop.f32.mrf.mxu0
        %v4870 = vadd.f32 %v4857, %v4869
        %v4871 = vpop.f32.mrf.mxu0
        %4872 = vdwg.mxu0
        %4873 = vmatpush.bf16.msra.mxu0 %v4182
        %4874 = vmatpush.bf16.msra.mxu0 %v4176
        %4875 = vmatpush.bf16.msra.mxu0 %v4170
        %4876 = vmatpush.bf16.msra.mxu0 %v4164
        %4877 = vmatpush.bf16.msra.mxu0 %v4158
        %4878 = vmatpush.bf16.msra.mxu0 %v4152
        %4879 = vmatpush.bf16.msra.mxu0 %v4146
        %4880 = vmatpush.bf16.msra.mxu0 %v4140
        %4881 = vmatmul.bf16.gmra.mxu0 %v4537
        %v4882 = vpop.f32.mrf.mxu0
        %v4883 = vadd.f32 %v4870, %v4882
        %v4884 = vpop.f32.mrf.mxu0
        %4885 = vdwg.mxu0
        %4886 = vmatpush.bf16.msra.mxu0 %v4230
        %4887 = vmatpush.bf16.msra.mxu0 %v4224
        %4888 = vmatpush.bf16.msra.mxu0 %v4218
        %4889 = vmatpush.bf16.msra.mxu0 %v4212
        %4890 = vmatpush.bf16.msra.mxu0 %v4206
        %4891 = vmatpush.bf16.msra.mxu0 %v4200
        %4892 = vmatpush.bf16.msra.mxu0 %v4194
        %4893 = vmatpush.bf16.msra.mxu0 %v4188
        %4894 = vmatmul.bf16.gmra.mxu0 %v4538
        %v4895 = vpop.f32.mrf.mxu0
        %v4896 = vadd.f32 %v4883, %v4895
        %v4897 = vpop.f32.mrf.mxu0
        %4898 = vdwg.mxu0
        %4899 = vmatpush.bf16.msra.mxu0 %v4278
        %4900 = vmatpush.bf16.msra.mxu0 %v4272
        %4901 = vmatpush.bf16.msra.mxu0 %v4266
        %4902 = vmatpush.bf16.msra.mxu0 %v4260
        %4903 = vmatpush.bf16.msra.mxu0 %v4254
        %4904 = vmatpush.bf16.msra.mxu0 %v4248
        %4905 = vmatpush.bf16.msra.mxu0 %v4242
        %4906 = vmatpush.bf16.msra.mxu0 %v4236
        %4907 = vmatmul.bf16.gmra.mxu0 %v4539
        %v4908 = vpop.f32.mrf.mxu0
        %v4909 = vadd.f32 %v4896, %v4908
        %v4910 = vpop.f32.mrf.mxu0
        %4911 = vdwg.mxu0
        %4912 = vmatpush.bf16.msra.mxu0 %v4326
        %4913 = vmatpush.bf16.msra.mxu0 %v4320
        %4914 = vmatpush.bf16.msra.mxu0 %v4314
        %4915 = vmatpush.bf16.msra.mxu0 %v4308
        %4916 = vmatpush.bf16.msra.mxu0 %v4302
        %4917 = vmatpush.bf16.msra.mxu0 %v4296
        %4918 = vmatpush.bf16.msra.mxu0 %v4290
        %4919 = vmatpush.bf16.msra.mxu0 %v4284
        %4920 = vmatmul.bf16.gmra.mxu0 %v4540
        %v4921 = vpop.f32.mrf.mxu0
        %v4922 = vadd.f32 %v4909, %v4921
        %v4923 = vpop.f32.mrf.mxu0
        %4924 = vdwg.mxu0
        %4925 = vmatpush.bf16.msra.mxu0 %v4374
        %4926 = vmatpush.bf16.msra.mxu0 %v4368
        %4927 = vmatpush.bf16.msra.mxu0 %v4362
        %4928 = vmatpush.bf16.msra.mxu0 %v4356
        %4929 = vmatpush.bf16.msra.mxu0 %v4350
        %4930 = vmatpush.bf16.msra.mxu0 %v4344
        %4931 = vmatpush.bf16.msra.mxu0 %v4338
        %4932 = vmatpush.bf16.msra.mxu0 %v4332
        %4933 = vmatmul.bf16.gmra.mxu0 %v4541
        %v4934 = vpop.f32.mrf.mxu0
        %v4935 = vadd.f32 %v4922, %v4934
        %v4936 = vpop.f32.mrf.mxu0
        %4937 = vdwg.mxu0
        %4938 = vmatpush.bf16.msra.mxu0 %v4422
        %4939 = vmatpush.bf16.msra.mxu0 %v4416
        %4940 = vmatpush.bf16.msra.mxu0 %v4410
        %4941 = vmatpush.bf16.msra.mxu0 %v4404
        %4942 = vmatpush.bf16.msra.mxu0 %v4398
        %4943 = vmatpush.bf16.msra.mxu0 %v4392
        %4944 = vmatpush.bf16.msra.mxu0 %v4386
        %4945 = vmatpush.bf16.msra.mxu0 %v4380
        %4946 = vmatmul.bf16.gmra.mxu0 %v4542
        %v4947 = vpop.f32.mrf.mxu0
        %v4948 = vadd.f32 %v4935, %v4947
        %v4949 = vpop.f32.mrf.mxu0
        %4950 = vdwg.mxu0
        %4951 = vmatpush.bf16.msra.mxu0 %v4470
        %4952 = vmatpush.bf16.msra.mxu0 %v4464
        %4953 = vmatpush.bf16.msra.mxu0 %v4458
        %4954 = vmatpush.bf16.msra.mxu0 %v4452
        %4955 = vmatpush.bf16.msra.mxu0 %v4446
        %4956 = vmatpush.bf16.msra.mxu0 %v4440
        %4957 = vmatpush.bf16.msra.mxu0 %v4434
        %4958 = vmatpush.bf16.msra.mxu0 %v4428
        %4959 = vmatmul.bf16.gmra.mxu0 %v4543
        %v4960 = vpop.f32.mrf.mxu0
        %v4961 = vadd.f32 %v4948, %v4960
        %v4962 = vpop.f32.mrf.mxu0
        %4963 = vdwg.mxu0
        %4964 = vmatpush.bf16.msra.mxu0 %v4518
        %4965 = vmatpush.bf16.msra.mxu0 %v4512
        %4966 = vmatpush.bf16.msra.mxu0 %v4506
        %4967 = vmatpush.bf16.msra.mxu0 %v4500
        %4968 = vmatpush.bf16.msra.mxu0 %v4494
        %4969 = vmatpush.bf16.msra.mxu0 %v4488
        %4970 = vmatpush.bf16.msra.mxu0 %v4482
        %4971 = vmatpush.bf16.msra.mxu0 %v4476
        %4972 = vmatmul.bf16.gmra.mxu0 %v4544
        %v4973 = vpop.f32.mrf.mxu0
        %v4974 = vadd.f32 %v4961, %v4973
        %v4975 = vpop.f32.mrf.mxu0
        %4976 = vdwg.mxu0
        %4977 = vmatpush.bf16.msra.mxu0 %v3799
        %4978 = vmatpush.bf16.msra.mxu0 %v3793
        %4979 = vmatpush.bf16.msra.mxu0 %v3787
        %4980 = vmatpush.bf16.msra.mxu0 %v3781
        %4981 = vmatpush.bf16.msra.mxu0 %v3775
        %4982 = vmatpush.bf16.msra.mxu0 %v3769
        %4983 = vmatpush.bf16.msra.mxu0 %v3763
        %4984 = vmatpush.bf16.msra.mxu0 %v3757
        %4985 = vmatmul.bf16.gmra.mxu0 %v4527
        %v4986 = vpop.f32.mrf.mxu0
        %v4987 = vadd.f32 0.0, %v4986
        %v4988 = vpop.f32.mrf.mxu0
        %4989 = vdwg.mxu0
        %4990 = vmatpush.bf16.msra.mxu0 %v3847
        %4991 = vmatpush.bf16.msra.mxu0 %v3841
        %4992 = vmatpush.bf16.msra.mxu0 %v3835
        %4993 = vmatpush.bf16.msra.mxu0 %v3829
        %4994 = vmatpush.bf16.msra.mxu0 %v3823
        %4995 = vmatpush.bf16.msra.mxu0 %v3817
        %4996 = vmatpush.bf16.msra.mxu0 %v3811
        %4997 = vmatpush.bf16.msra.mxu0 %v3805
        %4998 = vmatmul.bf16.gmra.mxu0 %v4528
        %v4999 = vpop.f32.mrf.mxu0
        %v5000 = vadd.f32 %v4987, %v4999
        %v5001 = vpop.f32.mrf.mxu0
        %5002 = vdwg.mxu0
        %5003 = vmatpush.bf16.msra.mxu0 %v3895
        %5004 = vmatpush.bf16.msra.mxu0 %v3889
        %5005 = vmatpush.bf16.msra.mxu0 %v3883
        %5006 = vmatpush.bf16.msra.mxu0 %v3877
        %5007 = vmatpush.bf16.msra.mxu0 %v3871
        %5008 = vmatpush.bf16.msra.mxu0 %v3865
        %5009 = vmatpush.bf16.msra.mxu0 %v3859
        %5010 = vmatpush.bf16.msra.mxu0 %v3853
        %5011 = vmatmul.bf16.gmra.mxu0 %v4529
        %v5012 = vpop.f32.mrf.mxu0
        %v5013 = vadd.f32 %v5000, %v5012
        %v5014 = vpop.f32.mrf.mxu0
        %5015 = vdwg.mxu0
        %5016 = vmatpush.bf16.msra.mxu0 %v3943
        %5017 = vmatpush.bf16.msra.mxu0 %v3937
        %5018 = vmatpush.bf16.msra.mxu0 %v3931
        %5019 = vmatpush.bf16.msra.mxu0 %v3925
        %5020 = vmatpush.bf16.msra.mxu0 %v3919
        %5021 = vmatpush.bf16.msra.mxu0 %v3913
        %5022 = vmatpush.bf16.msra.mxu0 %v3907
        %5023 = vmatpush.bf16.msra.mxu0 %v3901
        %5024 = vmatmul.bf16.gmra.mxu0 %v4530
        %v5025 = vpop.f32.mrf.mxu0
        %v5026 = vadd.f32 %v5013, %v5025
        %v5027 = vpop.f32.mrf.mxu0
        %5028 = vdwg.mxu0
        %5029 = vmatpush.bf16.msra.mxu0 %v3991
        %5030 = vmatpush.bf16.msra.mxu0 %v3985
        %5031 = vmatpush.bf16.msra.mxu0 %v3979
        %5032 = vmatpush.bf16.msra.mxu0 %v3973
        %5033 = vmatpush.bf16.msra.mxu0 %v3967
        %5034 = vmatpush.bf16.msra.mxu0 %v3961
        %5035 = vmatpush.bf16.msra.mxu0 %v3955
        %5036 = vmatpush.bf16.msra.mxu0 %v3949
        %5037 = vmatmul.bf16.gmra.mxu0 %v4531
        %v5038 = vpop.f32.mrf.mxu0
        %v5039 = vadd.f32 %v5026, %v5038
        %v5040 = vpop.f32.mrf.mxu0
        %5041 = vdwg.mxu0
        %5042 = vmatpush.bf16.msra.mxu0 %v4039
        %5043 = vmatpush.bf16.msra.mxu0 %v4033
        %5044 = vmatpush.bf16.msra.mxu0 %v4027
        %5045 = vmatpush.bf16.msra.mxu0 %v4021
        %5046 = vmatpush.bf16.msra.mxu0 %v4015
        %5047 = vmatpush.bf16.msra.mxu0 %v4009
        %5048 = vmatpush.bf16.msra.mxu0 %v4003
        %5049 = vmatpush.bf16.msra.mxu0 %v3997
        %5050 = vmatmul.bf16.gmra.mxu0 %v4532
        %v5051 = vpop.f32.mrf.mxu0
        %v5052 = vadd.f32 %v5039, %v5051
        %v5053 = vpop.f32.mrf.mxu0
        %5054 = vdwg.mxu0
        %5055 = vmatpush.bf16.msra.mxu0 %v4087
        %5056 = vmatpush.bf16.msra.mxu0 %v4081
        %5057 = vmatpush.bf16.msra.mxu0 %v4075
        %5058 = vmatpush.bf16.msra.mxu0 %v4069
        %5059 = vmatpush.bf16.msra.mxu0 %v4063
        %5060 = vmatpush.bf16.msra.mxu0 %v4057
        %5061 = vmatpush.bf16.msra.mxu0 %v4051
        %5062 = vmatpush.bf16.msra.mxu0 %v4045
        %5063 = vmatmul.bf16.gmra.mxu0 %v4533
        %v5064 = vpop.f32.mrf.mxu0
        %v5065 = vadd.f32 %v5052, %v5064
        %v5066 = vpop.f32.mrf.mxu0
        %5067 = vdwg.mxu0
        %5068 = vmatpush.bf16.msra.mxu0 %v4135
        %5069 = vmatpush.bf16.msra.mxu0 %v4129
        %5070 = vmatpush.bf16.msra.mxu0 %v4123
        %5071 = vmatpush.bf16.msra.mxu0 %v4117
        %5072 = vmatpush.bf16.msra.mxu0 %v4111
        %5073 = vmatpush.bf16.msra.mxu0 %v4105
        %5074 = vmatpush.bf16.msra.mxu0 %v4099
        %5075 = vmatpush.bf16.msra.mxu0 %v4093
        %5076 = vmatmul.bf16.gmra.mxu0 %v4534
        %v5077 = vpop.f32.mrf.mxu0
        %v5078 = vadd.f32 %v5065, %v5077
        %v5079 = vpop.f32.mrf.mxu0
        %5080 = vdwg.mxu0
        %5081 = vmatpush.bf16.msra.mxu0 %v4183
        %5082 = vmatpush.bf16.msra.mxu0 %v4177
        %5083 = vmatpush.bf16.msra.mxu0 %v4171
        %5084 = vmatpush.bf16.msra.mxu0 %v4165
        %5085 = vmatpush.bf16.msra.mxu0 %v4159
        %5086 = vmatpush.bf16.msra.mxu0 %v4153
        %5087 = vmatpush.bf16.msra.mxu0 %v4147
        %5088 = vmatpush.bf16.msra.mxu0 %v4141
        %5089 = vmatmul.bf16.gmra.mxu0 %v4537
        %v5090 = vpop.f32.mrf.mxu0
        %v5091 = vadd.f32 %v5078, %v5090
        %v5092 = vpop.f32.mrf.mxu0
        %5093 = vdwg.mxu0
        %5094 = vmatpush.bf16.msra.mxu0 %v4231
        %5095 = vmatpush.bf16.msra.mxu0 %v4225
        %5096 = vmatpush.bf16.msra.mxu0 %v4219
        %5097 = vmatpush.bf16.msra.mxu0 %v4213
        %5098 = vmatpush.bf16.msra.mxu0 %v4207
        %5099 = vmatpush.bf16.msra.mxu0 %v4201
        %5100 = vmatpush.bf16.msra.mxu0 %v4195
        %5101 = vmatpush.bf16.msra.mxu0 %v4189
        %5102 = vmatmul.bf16.gmra.mxu0 %v4538
        %v5103 = vpop.f32.mrf.mxu0
        %v5104 = vadd.f32 %v5091, %v5103
        %v5105 = vpop.f32.mrf.mxu0
        %5106 = vdwg.mxu0
        %5107 = vmatpush.bf16.msra.mxu0 %v4279
        %5108 = vmatpush.bf16.msra.mxu0 %v4273
        %5109 = vmatpush.bf16.msra.mxu0 %v4267
        %5110 = vmatpush.bf16.msra.mxu0 %v4261
        %5111 = vmatpush.bf16.msra.mxu0 %v4255
        %5112 = vmatpush.bf16.msra.mxu0 %v4249
        %5113 = vmatpush.bf16.msra.mxu0 %v4243
        %5114 = vmatpush.bf16.msra.mxu0 %v4237
        %5115 = vmatmul.bf16.gmra.mxu0 %v4539
        %v5116 = vpop.f32.mrf.mxu0
        %v5117 = vadd.f32 %v5104, %v5116
        %v5118 = vpop.f32.mrf.mxu0
        %5119 = vdwg.mxu0
        %5120 = vmatpush.bf16.msra.mxu0 %v4327
        %5121 = vmatpush.bf16.msra.mxu0 %v4321
        %5122 = vmatpush.bf16.msra.mxu0 %v4315
        %5123 = vmatpush.bf16.msra.mxu0 %v4309
        %5124 = vmatpush.bf16.msra.mxu0 %v4303
        %5125 = vmatpush.bf16.msra.mxu0 %v4297
        %5126 = vmatpush.bf16.msra.mxu0 %v4291
        %5127 = vmatpush.bf16.msra.mxu0 %v4285
        %5128 = vmatmul.bf16.gmra.mxu0 %v4540
        %v5129 = vpop.f32.mrf.mxu0
        %v5130 = vadd.f32 %v5117, %v5129
        %v5131 = vpop.f32.mrf.mxu0
        %5132 = vdwg.mxu0
        %5133 = vmatpush.bf16.msra.mxu0 %v4375
        %5134 = vmatpush.bf16.msra.mxu0 %v4369
        %5135 = vmatpush.bf16.msra.mxu0 %v4363
        %5136 = vmatpush.bf16.msra.mxu0 %v4357
        %5137 = vmatpush.bf16.msra.mxu0 %v4351
        %5138 = vmatpush.bf16.msra.mxu0 %v4345
        %5139 = vmatpush.bf16.msra.mxu0 %v4339
        %5140 = vmatpush.bf16.msra.mxu0 %v4333
        %5141 = vmatmul.bf16.gmra.mxu0 %v4541
        %v5142 = vpop.f32.mrf.mxu0
        %v5143 = vadd.f32 %v5130, %v5142
        %v5144 = vpop.f32.mrf.mxu0
        %5145 = vdwg.mxu0
        %5146 = vmatpush.bf16.msra.mxu0 %v4423
        %5147 = vmatpush.bf16.msra.mxu0 %v4417
        %5148 = vmatpush.bf16.msra.mxu0 %v4411
        %5149 = vmatpush.bf16.msra.mxu0 %v4405
        %5150 = vmatpush.bf16.msra.mxu0 %v4399
        %5151 = vmatpush.bf16.msra.mxu0 %v4393
        %5152 = vmatpush.bf16.msra.mxu0 %v4387
        %5153 = vmatpush.bf16.msra.mxu0 %v4381
        %5154 = vmatmul.bf16.gmra.mxu0 %v4542
        %v5155 = vpop.f32.mrf.mxu0
        %v5156 = vadd.f32 %v5143, %v5155
        %v5157 = vpop.f32.mrf.mxu0
        %5158 = vdwg.mxu0
        %5159 = vmatpush.bf16.msra.mxu0 %v4471
        %5160 = vmatpush.bf16.msra.mxu0 %v4465
        %5161 = vmatpush.bf16.msra.mxu0 %v4459
        %5162 = vmatpush.bf16.msra.mxu0 %v4453
        %5163 = vmatpush.bf16.msra.mxu0 %v4447
        %5164 = vmatpush.bf16.msra.mxu0 %v4441
        %5165 = vmatpush.bf16.msra.mxu0 %v4435
        %5166 = vmatpush.bf16.msra.mxu0 %v4429
        %5167 = vmatmul.bf16.gmra.mxu0 %v4543
        %v5168 = vpop.f32.mrf.mxu0
        %v5169 = vadd.f32 %v5156, %v5168
        %v5170 = vpop.f32.mrf.mxu0
        %5171 = vdwg.mxu0
        %5172 = vmatpush.bf16.msra.mxu0 %v4519
        %5173 = vmatpush.bf16.msra.mxu0 %v4513
        %5174 = vmatpush.bf16.msra.mxu0 %v4507
        %5175 = vmatpush.bf16.msra.mxu0 %v4501
        %5176 = vmatpush.bf16.msra.mxu0 %v4495
        %5177 = vmatpush.bf16.msra.mxu0 %v4489
        %5178 = vmatpush.bf16.msra.mxu0 %v4483
        %5179 = vmatpush.bf16.msra.mxu0 %v4477
        %5180 = vmatmul.bf16.gmra.mxu0 %v4544
        %v5181 = vpop.f32.mrf.mxu0
        %v5182 = vadd.f32 %v5169, %v5181
        %v5183 = vpop.f32.mrf.mxu0
        %5184 = vdwg.mxu0
        %5185 = vmatpush.bf16.msra.mxu0 %v3800
        %5186 = vmatpush.bf16.msra.mxu0 %v3794
        %5187 = vmatpush.bf16.msra.mxu0 %v3788
        %5188 = vmatpush.bf16.msra.mxu0 %v3782
        %5189 = vmatpush.bf16.msra.mxu0 %v3776
        %5190 = vmatpush.bf16.msra.mxu0 %v3770
        %5191 = vmatpush.bf16.msra.mxu0 %v3764
        %5192 = vmatpush.bf16.msra.mxu0 %v3758
        %5193 = vmatmul.bf16.gmra.mxu0 %v4527
        %v5194 = vpop.f32.mrf.mxu0
        %v5195 = vadd.f32 0.0, %v5194
        %v5196 = vpop.f32.mrf.mxu0
        %5197 = vdwg.mxu0
        %5198 = vmatpush.bf16.msra.mxu0 %v3848
        %5199 = vmatpush.bf16.msra.mxu0 %v3842
        %5200 = vmatpush.bf16.msra.mxu0 %v3836
        %5201 = vmatpush.bf16.msra.mxu0 %v3830
        %5202 = vmatpush.bf16.msra.mxu0 %v3824
        %5203 = vmatpush.bf16.msra.mxu0 %v3818
        %5204 = vmatpush.bf16.msra.mxu0 %v3812
        %5205 = vmatpush.bf16.msra.mxu0 %v3806
        %5206 = vmatmul.bf16.gmra.mxu0 %v4528
        %v5207 = vpop.f32.mrf.mxu0
        %v5208 = vadd.f32 %v5195, %v5207
        %v5209 = vpop.f32.mrf.mxu0
        %5210 = vdwg.mxu0
        %5211 = vmatpush.bf16.msra.mxu0 %v3896
        %5212 = vmatpush.bf16.msra.mxu0 %v3890
        %5213 = vmatpush.bf16.msra.mxu0 %v3884
        %5214 = vmatpush.bf16.msra.mxu0 %v3878
        %5215 = vmatpush.bf16.msra.mxu0 %v3872
        %5216 = vmatpush.bf16.msra.mxu0 %v3866
        %5217 = vmatpush.bf16.msra.mxu0 %v3860
        %5218 = vmatpush.bf16.msra.mxu0 %v3854
        %5219 = vmatmul.bf16.gmra.mxu0 %v4529
        %v5220 = vpop.f32.mrf.mxu0
        %v5221 = vadd.f32 %v5208, %v5220
        %v5222 = vpop.f32.mrf.mxu0
        %5223 = vdwg.mxu0
        %5224 = vmatpush.bf16.msra.mxu0 %v3944
        %5225 = vmatpush.bf16.msra.mxu0 %v3938
        %5226 = vmatpush.bf16.msra.mxu0 %v3932
        %5227 = vmatpush.bf16.msra.mxu0 %v3926
        %5228 = vmatpush.bf16.msra.mxu0 %v3920
        %5229 = vmatpush.bf16.msra.mxu0 %v3914
        %5230 = vmatpush.bf16.msra.mxu0 %v3908
        %5231 = vmatpush.bf16.msra.mxu0 %v3902
        %5232 = vmatmul.bf16.gmra.mxu0 %v4530
        %v5233 = vpop.f32.mrf.mxu0
        %v5234 = vadd.f32 %v5221, %v5233
        %v5235 = vpop.f32.mrf.mxu0
        %5236 = vdwg.mxu0
        %5237 = vmatpush.bf16.msra.mxu0 %v3992
        %5238 = vmatpush.bf16.msra.mxu0 %v3986
        %5239 = vmatpush.bf16.msra.mxu0 %v3980
        %5240 = vmatpush.bf16.msra.mxu0 %v3974
        %5241 = vmatpush.bf16.msra.mxu0 %v3968
        %5242 = vmatpush.bf16.msra.mxu0 %v3962
        %5243 = vmatpush.bf16.msra.mxu0 %v3956
        %5244 = vmatpush.bf16.msra.mxu0 %v3950
        %5245 = vmatmul.bf16.gmra.mxu0 %v4531
        %v5246 = vpop.f32.mrf.mxu0
        %v5247 = vadd.f32 %v5234, %v5246
        %v5248 = vpop.f32.mrf.mxu0
        %5249 = vdwg.mxu0
        %5250 = vmatpush.bf16.msra.mxu0 %v4040
        %5251 = vmatpush.bf16.msra.mxu0 %v4034
        %5252 = vmatpush.bf16.msra.mxu0 %v4028
        %5253 = vmatpush.bf16.msra.mxu0 %v4022
        %5254 = vmatpush.bf16.msra.mxu0 %v4016
        %5255 = vmatpush.bf16.msra.mxu0 %v4010
        %5256 = vmatpush.bf16.msra.mxu0 %v4004
        %5257 = vmatpush.bf16.msra.mxu0 %v3998
        %5258 = vmatmul.bf16.gmra.mxu0 %v4532
        %v5259 = vpop.f32.mrf.mxu0
        %v5260 = vadd.f32 %v5247, %v5259
        %v5261 = vpop.f32.mrf.mxu0
        %5262 = vdwg.mxu0
        %5263 = vmatpush.bf16.msra.mxu0 %v4088
        %5264 = vmatpush.bf16.msra.mxu0 %v4082
        %5265 = vmatpush.bf16.msra.mxu0 %v4076
        %5266 = vmatpush.bf16.msra.mxu0 %v4070
        %5267 = vmatpush.bf16.msra.mxu0 %v4064
        %5268 = vmatpush.bf16.msra.mxu0 %v4058
        %5269 = vmatpush.bf16.msra.mxu0 %v4052
        %5270 = vmatpush.bf16.msra.mxu0 %v4046
        %5271 = vmatmul.bf16.gmra.mxu0 %v4533
        %v5272 = vpop.f32.mrf.mxu0
        %v5273 = vadd.f32 %v5260, %v5272
        %v5274 = vpop.f32.mrf.mxu0
        %5275 = vdwg.mxu0
        %5276 = vmatpush.bf16.msra.mxu0 %v4136
        %5277 = vmatpush.bf16.msra.mxu0 %v4130
        %5278 = vmatpush.bf16.msra.mxu0 %v4124
        %5279 = vmatpush.bf16.msra.mxu0 %v4118
        %5280 = vmatpush.bf16.msra.mxu0 %v4112
        %5281 = vmatpush.bf16.msra.mxu0 %v4106
        %5282 = vmatpush.bf16.msra.mxu0 %v4100
        %5283 = vmatpush.bf16.msra.mxu0 %v4094
        %5284 = vmatmul.bf16.gmra.mxu0 %v4534
        %v5285 = vpop.f32.mrf.mxu0
        %v5286 = vadd.f32 %v5273, %v5285
        %v5287 = vpop.f32.mrf.mxu0
        %5288 = vdwg.mxu0
        %5289 = vmatpush.bf16.msra.mxu0 %v4184
        %5290 = vmatpush.bf16.msra.mxu0 %v4178
        %5291 = vmatpush.bf16.msra.mxu0 %v4172
        %5292 = vmatpush.bf16.msra.mxu0 %v4166
        %5293 = vmatpush.bf16.msra.mxu0 %v4160
        %5294 = vmatpush.bf16.msra.mxu0 %v4154
        %5295 = vmatpush.bf16.msra.mxu0 %v4148
        %5296 = vmatpush.bf16.msra.mxu0 %v4142
        %5297 = vmatmul.bf16.gmra.mxu0 %v4537
        %v5298 = vpop.f32.mrf.mxu0
        %v5299 = vadd.f32 %v5286, %v5298
        %v5300 = vpop.f32.mrf.mxu0
        %5301 = vdwg.mxu0
        %5302 = vmatpush.bf16.msra.mxu0 %v4232
        %5303 = vmatpush.bf16.msra.mxu0 %v4226
        %5304 = vmatpush.bf16.msra.mxu0 %v4220
        %5305 = vmatpush.bf16.msra.mxu0 %v4214
        %5306 = vmatpush.bf16.msra.mxu0 %v4208
        %5307 = vmatpush.bf16.msra.mxu0 %v4202
        %5308 = vmatpush.bf16.msra.mxu0 %v4196
        %5309 = vmatpush.bf16.msra.mxu0 %v4190
        %5310 = vmatmul.bf16.gmra.mxu0 %v4538
        %v5311 = vpop.f32.mrf.mxu0
        %v5312 = vadd.f32 %v5299, %v5311
        %v5313 = vpop.f32.mrf.mxu0
        %5314 = vdwg.mxu0
        %5315 = vmatpush.bf16.msra.mxu0 %v4280
        %5316 = vmatpush.bf16.msra.mxu0 %v4274
        %5317 = vmatpush.bf16.msra.mxu0 %v4268
        %5318 = vmatpush.bf16.msra.mxu0 %v4262
        %5319 = vmatpush.bf16.msra.mxu0 %v4256
        %5320 = vmatpush.bf16.msra.mxu0 %v4250
        %5321 = vmatpush.bf16.msra.mxu0 %v4244
        %5322 = vmatpush.bf16.msra.mxu0 %v4238
        %5323 = vmatmul.bf16.gmra.mxu0 %v4539
        %v5324 = vpop.f32.mrf.mxu0
        %v5325 = vadd.f32 %v5312, %v5324
        %v5326 = vpop.f32.mrf.mxu0
        %5327 = vdwg.mxu0
        %5328 = vmatpush.bf16.msra.mxu0 %v4328
        %5329 = vmatpush.bf16.msra.mxu0 %v4322
        %5330 = vmatpush.bf16.msra.mxu0 %v4316
        %5331 = vmatpush.bf16.msra.mxu0 %v4310
        %5332 = vmatpush.bf16.msra.mxu0 %v4304
        %5333 = vmatpush.bf16.msra.mxu0 %v4298
        %5334 = vmatpush.bf16.msra.mxu0 %v4292
        %5335 = vmatpush.bf16.msra.mxu0 %v4286
        %5336 = vmatmul.bf16.gmra.mxu0 %v4540
        %v5337 = vpop.f32.mrf.mxu0
        %v5338 = vadd.f32 %v5325, %v5337
        %v5339 = vpop.f32.mrf.mxu0
        %5340 = vdwg.mxu0
        %5341 = vmatpush.bf16.msra.mxu0 %v4376
        %5342 = vmatpush.bf16.msra.mxu0 %v4370
        %5343 = vmatpush.bf16.msra.mxu0 %v4364
        %5344 = vmatpush.bf16.msra.mxu0 %v4358
        %5345 = vmatpush.bf16.msra.mxu0 %v4352
        %5346 = vmatpush.bf16.msra.mxu0 %v4346
        %5347 = vmatpush.bf16.msra.mxu0 %v4340
        %5348 = vmatpush.bf16.msra.mxu0 %v4334
        %5349 = vmatmul.bf16.gmra.mxu0 %v4541
        %v5350 = vpop.f32.mrf.mxu0
        %v5351 = vadd.f32 %v5338, %v5350
        %v5352 = vpop.f32.mrf.mxu0
        %5353 = vdwg.mxu0
        %5354 = vmatpush.bf16.msra.mxu0 %v4424
        %5355 = vmatpush.bf16.msra.mxu0 %v4418
        %5356 = vmatpush.bf16.msra.mxu0 %v4412
        %5357 = vmatpush.bf16.msra.mxu0 %v4406
        %5358 = vmatpush.bf16.msra.mxu0 %v4400
        %5359 = vmatpush.bf16.msra.mxu0 %v4394
        %5360 = vmatpush.bf16.msra.mxu0 %v4388
        %5361 = vmatpush.bf16.msra.mxu0 %v4382
        %5362 = vmatmul.bf16.gmra.mxu0 %v4542
        %v5363 = vpop.f32.mrf.mxu0
        %v5364 = vadd.f32 %v5351, %v5363
        %v5365 = vpop.f32.mrf.mxu0
        %5366 = vdwg.mxu0
        %5367 = vmatpush.bf16.msra.mxu0 %v4472
        %5368 = vmatpush.bf16.msra.mxu0 %v4466
        %5369 = vmatpush.bf16.msra.mxu0 %v4460
        %5370 = vmatpush.bf16.msra.mxu0 %v4454
        %5371 = vmatpush.bf16.msra.mxu0 %v4448
        %5372 = vmatpush.bf16.msra.mxu0 %v4442
        %5373 = vmatpush.bf16.msra.mxu0 %v4436
        %5374 = vmatpush.bf16.msra.mxu0 %v4430
        %5375 = vmatmul.bf16.gmra.mxu0 %v4543
        %v5376 = vpop.f32.mrf.mxu0
        %v5377 = vadd.f32 %v5364, %v5376
        %v5378 = vpop.f32.mrf.mxu0
        %5379 = vdwg.mxu0
        %5380 = vmatpush.bf16.msra.mxu0 %v4520
        %5381 = vmatpush.bf16.msra.mxu0 %v4514
        %5382 = vmatpush.bf16.msra.mxu0 %v4508
        %5383 = vmatpush.bf16.msra.mxu0 %v4502
        %5384 = vmatpush.bf16.msra.mxu0 %v4496
        %5385 = vmatpush.bf16.msra.mxu0 %v4490
        %5386 = vmatpush.bf16.msra.mxu0 %v4484
        %5387 = vmatpush.bf16.msra.mxu0 %v4478
        %5388 = vmatmul.bf16.gmra.mxu0 %v4544
        %v5389 = vpop.f32.mrf.mxu0
        %v5390 = vadd.f32 %v5377, %v5389
        %v5391 = vpop.f32.mrf.mxu0
        %5392 = vdwg.mxu0
        %5393 = vmatpush.bf16.msra.mxu0 %v3801
        %5394 = vmatpush.bf16.msra.mxu0 %v3795
        %5395 = vmatpush.bf16.msra.mxu0 %v3789
        %5396 = vmatpush.bf16.msra.mxu0 %v3783
        %5397 = vmatpush.bf16.msra.mxu0 %v3777
        %5398 = vmatpush.bf16.msra.mxu0 %v3771
        %5399 = vmatpush.bf16.msra.mxu0 %v3765
        %5400 = vmatpush.bf16.msra.mxu0 %v3759
        %5401 = vmatmul.bf16.gmra.mxu0 %v4527
        %v5402 = vpop.f32.mrf.mxu0
        %v5403 = vadd.f32 0.0, %v5402
        %v5404 = vpop.f32.mrf.mxu0
        %5405 = vdwg.mxu0
        %5406 = vmatpush.bf16.msra.mxu0 %v3849
        %5407 = vmatpush.bf16.msra.mxu0 %v3843
        %5408 = vmatpush.bf16.msra.mxu0 %v3837
        %5409 = vmatpush.bf16.msra.mxu0 %v3831
        %5410 = vmatpush.bf16.msra.mxu0 %v3825
        %5411 = vmatpush.bf16.msra.mxu0 %v3819
        %5412 = vmatpush.bf16.msra.mxu0 %v3813
        %5413 = vmatpush.bf16.msra.mxu0 %v3807
        %5414 = vmatmul.bf16.gmra.mxu0 %v4528
        %v5415 = vpop.f32.mrf.mxu0
        %v5416 = vadd.f32 %v5403, %v5415
        %v5417 = vpop.f32.mrf.mxu0
        %5418 = vdwg.mxu0
        %5419 = vmatpush.bf16.msra.mxu0 %v3897
        %5420 = vmatpush.bf16.msra.mxu0 %v3891
        %5421 = vmatpush.bf16.msra.mxu0 %v3885
        %5422 = vmatpush.bf16.msra.mxu0 %v3879
        %5423 = vmatpush.bf16.msra.mxu0 %v3873
        %5424 = vmatpush.bf16.msra.mxu0 %v3867
        %5425 = vmatpush.bf16.msra.mxu0 %v3861
        %5426 = vmatpush.bf16.msra.mxu0 %v3855
        %5427 = vmatmul.bf16.gmra.mxu0 %v4529
        %v5428 = vpop.f32.mrf.mxu0
        %v5429 = vadd.f32 %v5416, %v5428
        %v5430 = vpop.f32.mrf.mxu0
        %5431 = vdwg.mxu0
        %5432 = vmatpush.bf16.msra.mxu0 %v3945
        %5433 = vmatpush.bf16.msra.mxu0 %v3939
        %5434 = vmatpush.bf16.msra.mxu0 %v3933
        %5435 = vmatpush.bf16.msra.mxu0 %v3927
        %5436 = vmatpush.bf16.msra.mxu0 %v3921
        %5437 = vmatpush.bf16.msra.mxu0 %v3915
        %5438 = vmatpush.bf16.msra.mxu0 %v3909
        %5439 = vmatpush.bf16.msra.mxu0 %v3903
        %5440 = vmatmul.bf16.gmra.mxu0 %v4530
        %v5441 = vpop.f32.mrf.mxu0
        %v5442 = vadd.f32 %v5429, %v5441
        %v5443 = vpop.f32.mrf.mxu0
        %5444 = vdwg.mxu0
        %5445 = vmatpush.bf16.msra.mxu0 %v3993
        %5446 = vmatpush.bf16.msra.mxu0 %v3987
        %5447 = vmatpush.bf16.msra.mxu0 %v3981
        %5448 = vmatpush.bf16.msra.mxu0 %v3975
        %5449 = vmatpush.bf16.msra.mxu0 %v3969
        %5450 = vmatpush.bf16.msra.mxu0 %v3963
        %5451 = vmatpush.bf16.msra.mxu0 %v3957
        %5452 = vmatpush.bf16.msra.mxu0 %v3951
        %5453 = vmatmul.bf16.gmra.mxu0 %v4531
        %v5454 = vpop.f32.mrf.mxu0
        %v5455 = vadd.f32 %v5442, %v5454
        %v5456 = vpop.f32.mrf.mxu0
        %5457 = vdwg.mxu0
        %5458 = vmatpush.bf16.msra.mxu0 %v4041
        %5459 = vmatpush.bf16.msra.mxu0 %v4035
        %5460 = vmatpush.bf16.msra.mxu0 %v4029
        %5461 = vmatpush.bf16.msra.mxu0 %v4023
        %5462 = vmatpush.bf16.msra.mxu0 %v4017
        %5463 = vmatpush.bf16.msra.mxu0 %v4011
        %5464 = vmatpush.bf16.msra.mxu0 %v4005
        %5465 = vmatpush.bf16.msra.mxu0 %v3999
        %5466 = vmatmul.bf16.gmra.mxu0 %v4532
        %v5467 = vpop.f32.mrf.mxu0
        %v5468 = vadd.f32 %v5455, %v5467
        %v5469 = vpop.f32.mrf.mxu0
        %5470 = vdwg.mxu0
        %5471 = vmatpush.bf16.msra.mxu0 %v4089
        %5472 = vmatpush.bf16.msra.mxu0 %v4083
        %5473 = vmatpush.bf16.msra.mxu0 %v4077
        %5474 = vmatpush.bf16.msra.mxu0 %v4071
        %5475 = vmatpush.bf16.msra.mxu0 %v4065
        %5476 = vmatpush.bf16.msra.mxu0 %v4059
        %5477 = vmatpush.bf16.msra.mxu0 %v4053
        %5478 = vmatpush.bf16.msra.mxu0 %v4047
        %5479 = vmatmul.bf16.gmra.mxu0 %v4533
        %v5480 = vpop.f32.mrf.mxu0
        %v5481 = vadd.f32 %v5468, %v5480
        %v5482 = vpop.f32.mrf.mxu0
        %5483 = vdwg.mxu0
        %5484 = vmatpush.bf16.msra.mxu0 %v4137
        %5485 = vmatpush.bf16.msra.mxu0 %v4131
        %5486 = vmatpush.bf16.msra.mxu0 %v4125
        %5487 = vmatpush.bf16.msra.mxu0 %v4119
        %5488 = vmatpush.bf16.msra.mxu0 %v4113
        %5489 = vmatpush.bf16.msra.mxu0 %v4107
        %5490 = vmatpush.bf16.msra.mxu0 %v4101
        %5491 = vmatpush.bf16.msra.mxu0 %v4095
        %5492 = vmatmul.bf16.gmra.mxu0 %v4534
        %v5493 = vpop.f32.mrf.mxu0
        %v5494 = vadd.f32 %v5481, %v5493
        %v5495 = vpop.f32.mrf.mxu0
        %5496 = vdwg.mxu0
        %5497 = vmatpush.bf16.msra.mxu0 %v4185
        %5498 = vmatpush.bf16.msra.mxu0 %v4179
        %5499 = vmatpush.bf16.msra.mxu0 %v4173
        %5500 = vmatpush.bf16.msra.mxu0 %v4167
        %5501 = vmatpush.bf16.msra.mxu0 %v4161
        %5502 = vmatpush.bf16.msra.mxu0 %v4155
        %5503 = vmatpush.bf16.msra.mxu0 %v4149
        %5504 = vmatpush.bf16.msra.mxu0 %v4143
        %5505 = vmatmul.bf16.gmra.mxu0 %v4537
        %v5506 = vpop.f32.mrf.mxu0
        %v5507 = vadd.f32 %v5494, %v5506
        %v5508 = vpop.f32.mrf.mxu0
        %5509 = vdwg.mxu0
        %5510 = vmatpush.bf16.msra.mxu0 %v4233
        %5511 = vmatpush.bf16.msra.mxu0 %v4227
        %5512 = vmatpush.bf16.msra.mxu0 %v4221
        %5513 = vmatpush.bf16.msra.mxu0 %v4215
        %5514 = vmatpush.bf16.msra.mxu0 %v4209
        %5515 = vmatpush.bf16.msra.mxu0 %v4203
        %5516 = vmatpush.bf16.msra.mxu0 %v4197
        %5517 = vmatpush.bf16.msra.mxu0 %v4191
        %5518 = vmatmul.bf16.gmra.mxu0 %v4538
        %v5519 = vpop.f32.mrf.mxu0
        %v5520 = vadd.f32 %v5507, %v5519
        %v5521 = vpop.f32.mrf.mxu0
        %5522 = vdwg.mxu0
        %5523 = vmatpush.bf16.msra.mxu0 %v4281
        %5524 = vmatpush.bf16.msra.mxu0 %v4275
        %5525 = vmatpush.bf16.msra.mxu0 %v4269
        %5526 = vmatpush.bf16.msra.mxu0 %v4263
        %5527 = vmatpush.bf16.msra.mxu0 %v4257
        %5528 = vmatpush.bf16.msra.mxu0 %v4251
        %5529 = vmatpush.bf16.msra.mxu0 %v4245
        %5530 = vmatpush.bf16.msra.mxu0 %v4239
        %5531 = vmatmul.bf16.gmra.mxu0 %v4539
        %v5532 = vpop.f32.mrf.mxu0
        %v5533 = vadd.f32 %v5520, %v5532
        %v5534 = vpop.f32.mrf.mxu0
        %5535 = vdwg.mxu0
        %5536 = vmatpush.bf16.msra.mxu0 %v4329
        %5537 = vmatpush.bf16.msra.mxu0 %v4323
        %5538 = vmatpush.bf16.msra.mxu0 %v4317
        %5539 = vmatpush.bf16.msra.mxu0 %v4311
        %5540 = vmatpush.bf16.msra.mxu0 %v4305
        %5541 = vmatpush.bf16.msra.mxu0 %v4299
        %5542 = vmatpush.bf16.msra.mxu0 %v4293
        %5543 = vmatpush.bf16.msra.mxu0 %v4287
        %5544 = vmatmul.bf16.gmra.mxu0 %v4540
        %v5545 = vpop.f32.mrf.mxu0
        %v5546 = vadd.f32 %v5533, %v5545
        %v5547 = vpop.f32.mrf.mxu0
        %5548 = vdwg.mxu0
        %5549 = vmatpush.bf16.msra.mxu0 %v4377
        %5550 = vmatpush.bf16.msra.mxu0 %v4371
        %5551 = vmatpush.bf16.msra.mxu0 %v4365
        %5552 = vmatpush.bf16.msra.mxu0 %v4359
        %5553 = vmatpush.bf16.msra.mxu0 %v4353
        %5554 = vmatpush.bf16.msra.mxu0 %v4347
        %5555 = vmatpush.bf16.msra.mxu0 %v4341
        %5556 = vmatpush.bf16.msra.mxu0 %v4335
        %5557 = vmatmul.bf16.gmra.mxu0 %v4541
        %v5558 = vpop.f32.mrf.mxu0
        %v5559 = vadd.f32 %v5546, %v5558
        %v5560 = vpop.f32.mrf.mxu0
        %5561 = vdwg.mxu0
        %5562 = vmatpush.bf16.msra.mxu0 %v4425
        %5563 = vmatpush.bf16.msra.mxu0 %v4419
        %5564 = vmatpush.bf16.msra.mxu0 %v4413
        %5565 = vmatpush.bf16.msra.mxu0 %v4407
        %5566 = vmatpush.bf16.msra.mxu0 %v4401
        %5567 = vmatpush.bf16.msra.mxu0 %v4395
        %5568 = vmatpush.bf16.msra.mxu0 %v4389
        %5569 = vmatpush.bf16.msra.mxu0 %v4383
        %5570 = vmatmul.bf16.gmra.mxu0 %v4542
        %v5571 = vpop.f32.mrf.mxu0
        %v5572 = vadd.f32 %v5559, %v5571
        %v5573 = vpop.f32.mrf.mxu0
        %5574 = vdwg.mxu0
        %5575 = vmatpush.bf16.msra.mxu0 %v4473
        %5576 = vmatpush.bf16.msra.mxu0 %v4467
        %5577 = vmatpush.bf16.msra.mxu0 %v4461
        %5578 = vmatpush.bf16.msra.mxu0 %v4455
        %5579 = vmatpush.bf16.msra.mxu0 %v4449
        %5580 = vmatpush.bf16.msra.mxu0 %v4443
        %5581 = vmatpush.bf16.msra.mxu0 %v4437
        %5582 = vmatpush.bf16.msra.mxu0 %v4431
        %5583 = vmatmul.bf16.gmra.mxu0 %v4543
        %v5584 = vpop.f32.mrf.mxu0
        %v5585 = vadd.f32 %v5572, %v5584
        %v5586 = vpop.f32.mrf.mxu0
        %5587 = vdwg.mxu0
        %5588 = vmatpush.bf16.msra.mxu0 %v4521
        %5589 = vmatpush.bf16.msra.mxu0 %v4515
        %5590 = vmatpush.bf16.msra.mxu0 %v4509
        %5591 = vmatpush.bf16.msra.mxu0 %v4503
        %5592 = vmatpush.bf16.msra.mxu0 %v4497
        %5593 = vmatpush.bf16.msra.mxu0 %v4491
        %5594 = vmatpush.bf16.msra.mxu0 %v4485
        %5595 = vmatpush.bf16.msra.mxu0 %v4479
        %5596 = vmatmul.bf16.gmra.mxu0 %v4544
        %v5597 = vpop.f32.mrf.mxu0
        %v5598 = vadd.f32 %v5585, %v5597
        %v5599 = vpop.f32.mrf.mxu0
        %5600 = vdwg.mxu0
        %5601 = vmatpush.bf16.msra.mxu0 %v3802
        %5602 = vmatpush.bf16.msra.mxu0 %v3796
        %5603 = vmatpush.bf16.msra.mxu0 %v3790
        %5604 = vmatpush.bf16.msra.mxu0 %v3784
        %5605 = vmatpush.bf16.msra.mxu0 %v3778
        %5606 = vmatpush.bf16.msra.mxu0 %v3772
        %5607 = vmatpush.bf16.msra.mxu0 %v3766
        %5608 = vmatpush.bf16.msra.mxu0 %v3760
        %5609 = vmatmul.bf16.gmra.mxu0 %v4527
        %v5610 = vpop.f32.mrf.mxu0
        %v5611 = vadd.f32 0.0, %v5610
        %v5612 = vpop.f32.mrf.mxu0
        %5613 = vdwg.mxu0
        %5614 = vmatpush.bf16.msra.mxu0 %v3850
        %5615 = vmatpush.bf16.msra.mxu0 %v3844
        %5616 = vmatpush.bf16.msra.mxu0 %v3838
        %5617 = vmatpush.bf16.msra.mxu0 %v3832
        %5618 = vmatpush.bf16.msra.mxu0 %v3826
        %5619 = vmatpush.bf16.msra.mxu0 %v3820
        %5620 = vmatpush.bf16.msra.mxu0 %v3814
        %5621 = vmatpush.bf16.msra.mxu0 %v3808
        %5622 = vmatmul.bf16.gmra.mxu0 %v4528
        %v5623 = vpop.f32.mrf.mxu0
        %v5624 = vadd.f32 %v5611, %v5623
        %v5625 = vpop.f32.mrf.mxu0
        %5626 = vdwg.mxu0
        %5627 = vmatpush.bf16.msra.mxu0 %v3898
        %5628 = vmatpush.bf16.msra.mxu0 %v3892
        %5629 = vmatpush.bf16.msra.mxu0 %v3886
        %5630 = vmatpush.bf16.msra.mxu0 %v3880
        %5631 = vmatpush.bf16.msra.mxu0 %v3874
        %5632 = vmatpush.bf16.msra.mxu0 %v3868
        %5633 = vmatpush.bf16.msra.mxu0 %v3862
        %5634 = vmatpush.bf16.msra.mxu0 %v3856
        %5635 = vmatmul.bf16.gmra.mxu0 %v4529
        %v5636 = vpop.f32.mrf.mxu0
        %v5637 = vadd.f32 %v5624, %v5636
        %v5638 = vpop.f32.mrf.mxu0
        %5639 = vdwg.mxu0
        %5640 = vmatpush.bf16.msra.mxu0 %v3946
        %5641 = vmatpush.bf16.msra.mxu0 %v3940
        %5642 = vmatpush.bf16.msra.mxu0 %v3934
        %5643 = vmatpush.bf16.msra.mxu0 %v3928
        %5644 = vmatpush.bf16.msra.mxu0 %v3922
        %5645 = vmatpush.bf16.msra.mxu0 %v3916
        %5646 = vmatpush.bf16.msra.mxu0 %v3910
        %5647 = vmatpush.bf16.msra.mxu0 %v3904
        %5648 = vmatmul.bf16.gmra.mxu0 %v4530
        %v5649 = vpop.f32.mrf.mxu0
        %v5650 = vadd.f32 %v5637, %v5649
        %v5651 = vpop.f32.mrf.mxu0
        %5652 = vdwg.mxu0
        %5653 = vmatpush.bf16.msra.mxu0 %v3994
        %5654 = vmatpush.bf16.msra.mxu0 %v3988
        %5655 = vmatpush.bf16.msra.mxu0 %v3982
        %5656 = vmatpush.bf16.msra.mxu0 %v3976
        %5657 = vmatpush.bf16.msra.mxu0 %v3970
        %5658 = vmatpush.bf16.msra.mxu0 %v3964
        %5659 = vmatpush.bf16.msra.mxu0 %v3958
        %5660 = vmatpush.bf16.msra.mxu0 %v3952
        %5661 = vmatmul.bf16.gmra.mxu0 %v4531
        %v5662 = vpop.f32.mrf.mxu0
        %v5663 = vadd.f32 %v5650, %v5662
        %v5664 = vpop.f32.mrf.mxu0
        %5665 = vdwg.mxu0
        %5666 = vmatpush.bf16.msra.mxu0 %v4042
        %5667 = vmatpush.bf16.msra.mxu0 %v4036
        %5668 = vmatpush.bf16.msra.mxu0 %v4030
        %5669 = vmatpush.bf16.msra.mxu0 %v4024
        %5670 = vmatpush.bf16.msra.mxu0 %v4018
        %5671 = vmatpush.bf16.msra.mxu0 %v4012
        %5672 = vmatpush.bf16.msra.mxu0 %v4006
        %5673 = vmatpush.bf16.msra.mxu0 %v4000
        %5674 = vmatmul.bf16.gmra.mxu0 %v4532
        %v5675 = vpop.f32.mrf.mxu0
        %v5676 = vadd.f32 %v5663, %v5675
        %v5677 = vpop.f32.mrf.mxu0
        %5678 = vdwg.mxu0
        %5679 = vmatpush.bf16.msra.mxu0 %v4090
        %5680 = vmatpush.bf16.msra.mxu0 %v4084
        %5681 = vmatpush.bf16.msra.mxu0 %v4078
        %5682 = vmatpush.bf16.msra.mxu0 %v4072
        %5683 = vmatpush.bf16.msra.mxu0 %v4066
        %5684 = vmatpush.bf16.msra.mxu0 %v4060
        %5685 = vmatpush.bf16.msra.mxu0 %v4054
        %5686 = vmatpush.bf16.msra.mxu0 %v4048
        %5687 = vmatmul.bf16.gmra.mxu0 %v4533
        %v5688 = vpop.f32.mrf.mxu0
        %v5689 = vadd.f32 %v5676, %v5688
        %v5690 = vpop.f32.mrf.mxu0
        %5691 = vdwg.mxu0
        %5692 = vmatpush.bf16.msra.mxu0 %v4138
        %5693 = vmatpush.bf16.msra.mxu0 %v4132
        %5694 = vmatpush.bf16.msra.mxu0 %v4126
        %5695 = vmatpush.bf16.msra.mxu0 %v4120
        %5696 = vmatpush.bf16.msra.mxu0 %v4114
        %5697 = vmatpush.bf16.msra.mxu0 %v4108
        %5698 = vmatpush.bf16.msra.mxu0 %v4102
        %5699 = vmatpush.bf16.msra.mxu0 %v4096
        %5700 = vmatmul.bf16.gmra.mxu0 %v4534
        %v5701 = vpop.f32.mrf.mxu0
        %v5702 = vadd.f32 %v5689, %v5701
        %v5703 = vpop.f32.mrf.mxu0
        %5704 = vdwg.mxu0
        %5705 = vmatpush.bf16.msra.mxu0 %v4186
        %5706 = vmatpush.bf16.msra.mxu0 %v4180
        %5707 = vmatpush.bf16.msra.mxu0 %v4174
        %5708 = vmatpush.bf16.msra.mxu0 %v4168
        %5709 = vmatpush.bf16.msra.mxu0 %v4162
        %5710 = vmatpush.bf16.msra.mxu0 %v4156
        %5711 = vmatpush.bf16.msra.mxu0 %v4150
        %5712 = vmatpush.bf16.msra.mxu0 %v4144
        %5713 = vmatmul.bf16.gmra.mxu0 %v4537
        %v5714 = vpop.f32.mrf.mxu0
        %v5715 = vadd.f32 %v5702, %v5714
        %v5716 = vpop.f32.mrf.mxu0
        %5717 = vdwg.mxu0
        %5718 = vmatpush.bf16.msra.mxu0 %v4234
        %5719 = vmatpush.bf16.msra.mxu0 %v4228
        %5720 = vmatpush.bf16.msra.mxu0 %v4222
        %5721 = vmatpush.bf16.msra.mxu0 %v4216
        %5722 = vmatpush.bf16.msra.mxu0 %v4210
        %5723 = vmatpush.bf16.msra.mxu0 %v4204
        %5724 = vmatpush.bf16.msra.mxu0 %v4198
        %5725 = vmatpush.bf16.msra.mxu0 %v4192
        %5726 = vmatmul.bf16.gmra.mxu0 %v4538
        %v5727 = vpop.f32.mrf.mxu0
        %v5728 = vadd.f32 %v5715, %v5727
        %v5729 = vpop.f32.mrf.mxu0
        %5730 = vdwg.mxu0
        %5731 = vmatpush.bf16.msra.mxu0 %v4282
        %5732 = vmatpush.bf16.msra.mxu0 %v4276
        %5733 = vmatpush.bf16.msra.mxu0 %v4270
        %5734 = vmatpush.bf16.msra.mxu0 %v4264
        %5735 = vmatpush.bf16.msra.mxu0 %v4258
        %5736 = vmatpush.bf16.msra.mxu0 %v4252
        %5737 = vmatpush.bf16.msra.mxu0 %v4246
        %5738 = vmatpush.bf16.msra.mxu0 %v4240
        %5739 = vmatmul.bf16.gmra.mxu0 %v4539
        %v5740 = vpop.f32.mrf.mxu0
        %v5741 = vadd.f32 %v5728, %v5740
        %v5742 = vpop.f32.mrf.mxu0
        %5743 = vdwg.mxu0
        %5744 = vmatpush.bf16.msra.mxu0 %v4330
        %5745 = vmatpush.bf16.msra.mxu0 %v4324
        %5746 = vmatpush.bf16.msra.mxu0 %v4318
        %5747 = vmatpush.bf16.msra.mxu0 %v4312
        %5748 = vmatpush.bf16.msra.mxu0 %v4306
        %5749 = vmatpush.bf16.msra.mxu0 %v4300
        %5750 = vmatpush.bf16.msra.mxu0 %v4294
        %5751 = vmatpush.bf16.msra.mxu0 %v4288
        %5752 = vmatmul.bf16.gmra.mxu0 %v4540
        %v5753 = vpop.f32.mrf.mxu0
        %v5754 = vadd.f32 %v5741, %v5753
        %v5755 = vpop.f32.mrf.mxu0
        %5756 = vdwg.mxu0
        %5757 = vmatpush.bf16.msra.mxu0 %v4378
        %5758 = vmatpush.bf16.msra.mxu0 %v4372
        %5759 = vmatpush.bf16.msra.mxu0 %v4366
        %5760 = vmatpush.bf16.msra.mxu0 %v4360
        %5761 = vmatpush.bf16.msra.mxu0 %v4354
        %5762 = vmatpush.bf16.msra.mxu0 %v4348
        %5763 = vmatpush.bf16.msra.mxu0 %v4342
        %5764 = vmatpush.bf16.msra.mxu0 %v4336
        %5765 = vmatmul.bf16.gmra.mxu0 %v4541
        %v5766 = vpop.f32.mrf.mxu0
        %v5767 = vadd.f32 %v5754, %v5766
        %v5768 = vpop.f32.mrf.mxu0
        %5769 = vdwg.mxu0
        %5770 = vmatpush.bf16.msra.mxu0 %v4426
        %5771 = vmatpush.bf16.msra.mxu0 %v4420
        %5772 = vmatpush.bf16.msra.mxu0 %v4414
        %5773 = vmatpush.bf16.msra.mxu0 %v4408
        %5774 = vmatpush.bf16.msra.mxu0 %v4402
        %5775 = vmatpush.bf16.msra.mxu0 %v4396
        %5776 = vmatpush.bf16.msra.mxu0 %v4390
        %5777 = vmatpush.bf16.msra.mxu0 %v4384
        %5778 = vmatmul.bf16.gmra.mxu0 %v4542
        %v5779 = vpop.f32.mrf.mxu0
        %v5780 = vadd.f32 %v5767, %v5779
        %v5781 = vpop.f32.mrf.mxu0
        %5782 = vdwg.mxu0
        %5783 = vmatpush.bf16.msra.mxu0 %v4474
        %5784 = vmatpush.bf16.msra.mxu0 %v4468
        %5785 = vmatpush.bf16.msra.mxu0 %v4462
        %5786 = vmatpush.bf16.msra.mxu0 %v4456
        %5787 = vmatpush.bf16.msra.mxu0 %v4450
        %5788 = vmatpush.bf16.msra.mxu0 %v4444
        %5789 = vmatpush.bf16.msra.mxu0 %v4438
        %5790 = vmatpush.bf16.msra.mxu0 %v4432
        %5791 = vmatmul.bf16.gmra.mxu0 %v4543
        %v5792 = vpop.f32.mrf.mxu0
        %v5793 = vadd.f32 %v5780, %v5792
        %v5794 = vpop.f32.mrf.mxu0
        %5795 = vdwg.mxu0
        %5796 = vmatpush.bf16.msra.mxu0 %v4522
        %5797 = vmatpush.bf16.msra.mxu0 %v4516
        %5798 = vmatpush.bf16.msra.mxu0 %v4510
        %5799 = vmatpush.bf16.msra.mxu0 %v4504
        %5800 = vmatpush.bf16.msra.mxu0 %v4498
        %5801 = vmatpush.bf16.msra.mxu0 %v4492
        %5802 = vmatpush.bf16.msra.mxu0 %v4486
        %5803 = vmatpush.bf16.msra.mxu0 %v4480
        %5804 = vmatmul.bf16.gmra.mxu0 %v4544
        %v5805 = vpop.f32.mrf.mxu0
        %v5806 = vadd.f32 %v5793, %v5805
        %v5807 = vpop.f32.mrf.mxu0
        %5808 = vdwg.mxu0
        %v5809 = vld [vmem:[%s244] sm:$0x3f]
        %v5811 = vperm.slane %v5809, 0
        %v5812 = vperm.slane %v5809, 1
        %v5813 = vperm.slane %v5809, 2
        %v5814 = vperm.slane %v5809, 3
        %v5815 = vperm.slane %v5809, 4
        %v5816 = vperm.slane %v5809, 5
        %v5823 = vmul.f32 %v4766, %v5811
        %v5824 = vmul.f32 %v4974, %v5812
        %v5825 = vmul.f32 %v5182, %v5813
        %v5826 = vmul.f32 %v5390, %v5814
        %v5827 = vmul.f32 %v5598, %v5815
        %v5828 = vmul.f32 %v5806, %v5816
        %v5829 = vld [vmem:[%s254] sm:$0x3f]
        %v5831 = vperm.slane %v5829, 0
        %v5832 = vperm.slane %v5829, 1
        %v5833 = vperm.slane %v5829, 2
        %v5834 = vperm.slane %v5829, 3
        %v5835 = vperm.slane %v5829, 4
        %v5836 = vperm.slane %v5829, 5
        %v5843 = vadd.f32 %v5823, %v5831
        %v5844 = vadd.f32 %v5824, %v5832
        %v5845 = vadd.f32 %v5825, %v5833
        %v5846 = vadd.f32 %v5826, %v5834
        %v5847 = vadd.f32 %v5827, %v5835
        %v5848 = vadd.f32 %v5828, %v5836
        %v5849 = vtanh.pop %v5843
        %v5850 = vtanh.pop %v5844
        %v5851 = vtanh.pop %v5845
        %v5852 = vtanh.pop %v5846
        %v5853 = vtanh.pop %v5847
        %v5854 = vtanh.pop %v5848
        %v5861 = vrot.slane %v5850, 6
        %v5862 = vrot.slane %v5851, 4
        %v5863 = vrot.slane %v5852, 2
        %v5864 = vrot.slane %v5854, 6
        %vm5865 = vcmask 1041408
        %v5866 = vsel %vm5865, %v5849, %v5861
        %vm5867 = vcmask 1045508
        %v5868 = vsel %vm5867, %v5862, %v5863
        %vm5869 = vcmask 1043456
        %v5870 = vsel %vm5869, %v5866, %v5868
        %v5871 = vsel %vm5865, %v5853, %v5864
        %5874 = vst [vmem:[%s297] sm:$0xff] %v5870
        %5875 = vst [vmem:[%s297 + $0x8] sm:$0xf] %v5871
        %s5876 = smul.u32 6, %s21
        %p5877 = scmp.lt.s32.totalorder %s5876, 11
        %s5878 = scalar_select %p5877, %s5876, 11
        %s5879 = smul.addr %s5878, 2
        %s5880 = scalar_lea.vmem %s4, %s5879
        // Predicated region
        $region49: #{gen_forward.1} parent=35 // pred_check
          %p5881 = pneg %p138
        $region50: #{gen_forward.1} parent=35 // pred_check_branch
          %5883 = sbr.rel (%p5881) target = $region52
        $region51: #{gen_forward.1} parent=35 // pred_region
          %s5884 = smul.u32 6, %s21
        $region52: #{gen_forward.1} parent=35 // pred_fallthru
          _
      $region36: #{gen_forward.1} parent=5 // pred_fallthru
        _
      %p5885 = scmp.le.s32.totalorder 2, %s16
      // Predicated region
      $region53: #{gen_forward.1} parent=5 // pred_check
        %p5886 = pneg %p5885
      $region54: #{gen_forward.1} parent=5 // pred_check_branch
        %5888 = sbr.rel (%p5886) target = $region56
      $region55: #{gen_forward.1} parent=5 // pred_region
        %s5889 = ssub.s32 %s16, 2
        // Predicated region
        $region57: #{gen_forward.1} parent=55 // pred_check
          %p5890 = pneg %p144
        $region58: #{gen_forward.1} parent=55 // pred_check_branch
          %5892 = sbr.rel (%p5890) target = $region60
        $region59: #{gen_forward.1} parent=55 // pred_region
          %s5893 = smul.u32 6, %s22
          %p5894 = scmp.lt.s32.totalorder %s5893, 11
          %s5895 = scalar_select %p5894, %s5893, 11
          %s5896 = smul.addr %s5895, 2
          %s5897 = scalar_lea.vmem %s4, %s5896
        $region60: #{gen_forward.1} parent=55 // pred_fallthru
          _
      $region56: #{gen_forward.1} parent=5 // pred_fallthru
        _
    $region6: #{gen_forward.1} parent=1 // loop_footer
      %s20 = sadd.s32 1, %s16
    $region7: #{gen_forward.1} parent=1 // loop_footer_branch
      %15 = sbr.rel target = $region3
    $region8: #{gen_forward.1} parent=1 // loop_exit
      _
    %5898 = vsyncpa [#allocation3], 1
    %s5899 = scalar_lea.sflag [#allocation3], 1
    %5900 = vsyncpa %s5899, 1
    %5901 = vsyncpa [#allocation5], 1
    %s5902 = scalar_lea.sflag [#allocation5], 1
    %5903 = vsyncpa %s5902, 1

</llo_original>
